<compile_context>
chip_gen: v5e
topology: v5e:2x2
jax: 0.10.0
libtpu: 0.0.40
codegen_flags: <defaults>
</compile_context>

<pallas_src>
import math

import jax
import jax.numpy as jnp
from jax.experimental import pallas as pl
from jax.experimental.pallas import tpu as pltpu

NEG_INF = -1e9


def _round_up(x, m):
    return (x + m - 1) // m * m


def _scoped_vmem_bytes(blocks):
    """Conservative scoped-VMEM request: 2x (double-buffer) the summed block bytes + headroom,
    floored at 32 MiB (>= every generation's default) and capped at v7x physical 64 MiB."""
    total = sum(math.prod(s) * jnp.dtype(d).itemsize for s, d in blocks)
    return int(min(64 << 20, max(32 << 20, 2 * total + (4 << 20))))


# ----------------------- kernel 1: sequential GRU + attention + concat -------------------
def _recurrent_kernel(x_ref,                # (Bp, Hp)    cdt  embedded token, step t
                      h0_ref,               # (Bp, Hp)    f32  initial hidden
                      enc_ref,              # (Bp, S, Hp) f32  encoder outputs
                      w_ih_ref, w_hh_ref,   # (Hp, 3Hp)   cdt  GRU weights (pre-transposed)
                      b_ih_ref, b_hh_ref,   # (1, 3Hp)    f32
                      w_cat_ref,            # (2Hp, Hp)   cdt
                      b_cat_ref,            # (1, Hp)     f32
                      cat_ref,              # (Bp, Hp)    cdt  out: concat_output, step t
                      hid_ref,              # (Bp, Hp)    f32  out: new hidden, step t
                      h_sc):                # (Bp, Hp)    f32  scratch: hidden carry
    t = pl.program_id(0)
    Hp = h_sc.shape[1]
    cdt = w_ih_ref.dtype                    # MXU operand dtype (bf16 by default)

    @pl.when(t == 0)
    def _():
        h_sc[...] = h0_ref[...]

    x = x_ref[...]                          # already in cdt (cast once in the wrapper)
    h = h_sc[...]                           # f32 carry

    # ---- GRU cell (seq_len=1); PyTorch gate order r, z, n; gate math in f32 ----
    gi = jnp.dot(x, w_ih_ref[...], preferred_element_type=jnp.float32) + b_ih_ref[...]
    gh = jnp.dot(h.astype(cdt), w_hh_ref[...],
                 preferred_element_type=jnp.float32) + b_hh_ref[...]
    r = jax.nn.sigmoid(gi[:, 0:Hp] + gh[:, 0:Hp])
    z = jax.nn.sigmoid(gi[:, Hp:2 * Hp] + gh[:, Hp:2 * Hp])
    n = jnp.tanh(gi[:, 2 * Hp:3 * Hp] + r * gh[:, 2 * Hp:3 * Hp])
    h_new = (1.0 - z) * n + z * h           # (Bp, Hp) f32 == rnn_output

    # ---- dot attention on VPU (multiply) + XLU (reduce); MXU slot stays free ----
    enc = enc_ref[...]                                            # (Bp, S, Hp) f32
    e = jnp.sum(h_new[:, None, :] * enc, axis=-1)                 # (Bp, S) lane reduce
    e = e - jnp.max(e, axis=-1, keepdims=True)
    p = jnp.exp(e)
    p = p * pl.reciprocal(jnp.sum(p, axis=-1, keepdims=True), approx=True)  # EUP slot
    ctx = jnp.sum(p[:, :, None] * enc, axis=1)                    # (Bp, Hp) sublane reduce

    # ---- concat([rnn_output, context]) -> single fused K=2H projection + tanh ----
    cat = jnp.concatenate([h_new, ctx], axis=-1)                  # (Bp, 2Hp) f32
    concat_out = jnp.tanh(
        jnp.dot(cat.astype(cdt), w_cat_ref[...], preferred_element_type=jnp.float32)
        + b_cat_ref[...])

    cat_ref[...] = concat_out.astype(cat_ref.dtype)
    hid_ref[...] = h_new
    h_sc[...] = h_new                                             # carry to step t+1


# -------------- kernel 2: batched output projection + online softmax over vocab ----------
def _proj_softmax_kernel(x_ref,             # (TM, Hp) cdt  concat_output rows
                         w_ref,             # (Hp, TN) cdt  w_out tile (streamed)
                         b_ref,             # (1, TN)  f32  b_out tile (padded lanes = -1e9)
                         out_ref,           # (TM, Vp) f32  probs row-stripe (VMEM resident)
                         m_sc, l_sc):       # (TM, 1)  f32  running max / running sum(exp)
    v = pl.program_id(1)
    tn = w_ref.shape[1]

    @pl.when(v == 0)
    def _():
        m_sc[...] = jnp.full_like(m_sc, -jnp.inf)
        l_sc[...] = jnp.zeros_like(l_sc)
        out_ref[...] = jnp.zeros_like(out_ref)

    logits = (jnp.dot(x_ref[...], w_ref[...], preferred_element_type=jnp.float32)
              + b_ref[...])                                       # (TM, TN) f32
    m_prev = m_sc[...]
    m_new = jnp.maximum(m_prev, jnp.max(logits, axis=-1, keepdims=True))
    corr = jnp.exp(m_prev - m_new)                                # (TM, 1); 0 at v == 0
    p = jnp.exp(logits - m_new)                                   # (TM, TN)
    l_sc[...] = corr * l_sc[...] + jnp.sum(p, axis=-1, keepdims=True)
    m_sc[...] = m_new

    @pl.when(v > 0)
    def _():
        out_ref[...] = out_ref[...] * corr                        # rescale earlier tiles

    col = pl.multiple_of(v * tn, tn)                              # tn is a multiple of 128
    out_ref[:, pl.ds(col, tn)] = p

    @pl.when(v == pl.num_programs(1) - 1)
    def _():
        # Exact normalization (NOT approx) so probabilities sum to 1 to f32 accuracy.
        out_ref[...] = out_ref[...] * (1.0 / l_sc[...])


# ----------------------------------- parameter prep --------------------------------------
def _prepare_params(p, H, V, Hp, Vp, cdt):
    """Pad the (pre-transposed) parameters to lane-dense layouts; weights in compute dtype."""
    w_ih = jnp.zeros((Hp, 3 * Hp), cdt)
    w_hh = jnp.zeros((Hp, 3 * Hp), cdt)
    b_ih = jnp.zeros((1, 3 * Hp), jnp.float32)
    b_hh = jnp.zeros((1, 3 * Hp), jnp.float32)
    for g in range(3):   # PyTorch gate order r, z, n -- pad each gate block separately
        w_ih = w_ih.at[:H, g * Hp:g * Hp + H].set(p['w_ih_t'][:, g * H:(g + 1) * H].astype(cdt))
        w_hh = w_hh.at[:H, g * Hp:g * Hp + H].set(p['w_hh_t'][:, g * H:(g + 1) * H].astype(cdt))
        b_ih = b_ih.at[:, g * Hp:g * Hp + H].set(p['b_ih'][:, g * H:(g + 1) * H])
        b_hh = b_hh.at[:, g * Hp:g * Hp + H].set(p['b_hh'][:, g * H:(g + 1) * H])

    w_cat = jnp.zeros((2 * Hp, Hp), cdt)
    w_cat = w_cat.at[:H, :H].set(p['w_cat_t'][:H, :].astype(cdt))
    w_cat = w_cat.at[Hp:Hp + H, :H].set(p['w_cat_t'][H:2 * H, :].astype(cdt))
    b_cat = jnp.zeros((1, Hp), jnp.float32).at[:, :H].set(p['b_cat'])

    w_out = jnp.zeros((Hp, Vp), cdt).at[:H, :V].set(p['w_out_t'].astype(cdt))
    # b_out stays f32 so the -1e9 pad reliably underflows to probability 0.
    b_out = jnp.full((1, Vp), NEG_INF, jnp.float32).at[:, :V].set(p['b_out'])
    return w_ih, w_hh, b_ih, b_hh, w_cat, b_cat, w_out, b_out


# -------------------------------------- wrapper -------------------------------------------
def luong_decoder_decode(token_ids, last_hidden, encoder_outputs, params, *,
                         compute_dtype=jnp.bfloat16, vocab_tile=128, row_tile=128):
    """Run T teacher-forced decoder steps.

    token_ids:       (T, B) int32
    last_hidden:     (1, B, H) f32   initial GRU hidden state
    encoder_outputs: (S, B, H) f32   (PyTorch seq-first layout, unpadded S)
    Returns (probs (T, B, output_size) f32, hiddens (T, B, H) f32).
    """
    T, B = token_ids.shape
    S = encoder_outputs.shape[0]
    H = last_hidden.shape[-1]
    V = params['w_out_t'].shape[1]

    Hp = _round_up(H, 128)
    Bp = _round_up(B, 8)
    TN = vocab_tile                       # multiple of 128 (128-aligned -> good on v5e too)
    Vp = _round_up(V, TN)
    cdt = compute_dtype

    (w_ih, w_hh, b_ih, b_hh, w_cat, b_cat, w_out, b_out) = _prepare_params(
        params, H, V, Hp, Vp, cdt)

    # Embedding gather hoisted out of the kernel; streamed in as one (Bp, Hp) block/step.
    emb_x = jnp.take(params['emb'], token_ids, axis=0)            # (T, B, H)
    x = jnp.zeros((T, Bp, Hp), cdt).at[:, :B, :H].set(emb_x.astype(cdt))
    h0 = jnp.zeros((Bp, Hp), jnp.float32).at[:B, :H].set(last_hidden[0])
    enc = jnp.zeros((Bp, S, Hp), jnp.float32).at[:B, :, :H].set(
        jnp.transpose(encoder_outputs, (1, 0, 2)))                # (B, S, H), f32 (VPU/XLU)

    # ------------------ kernel 1: sequential GRU + attention + concat --------------------
    k1_vmem = _scoped_vmem_bytes([
        ((Bp, Hp), cdt), ((Bp, Hp), jnp.float32), ((Bp, S, Hp), jnp.float32),
        ((Hp, 3 * Hp), cdt), ((Hp, 3 * Hp), cdt),
        ((1, 3 * Hp), jnp.float32), ((1, 3 * Hp), jnp.float32),
        ((2 * Hp, Hp), cdt), ((1, Hp), jnp.float32),
        ((Bp, Hp), cdt), ((Bp, Hp), jnp.float32), ((Bp, Hp), jnp.float32),
    ])

    def run_recurrent(single_buffer):
        c2 = lambda t: (0, 0)
        c3 = lambda t: (0, 0, 0)

        def const_spec(shape, imap):
            # Constant-index operands are DMA'd once; single-buffer them when supported.
            if single_buffer:
                return pl.BlockSpec(shape, imap, pipeline_mode=pl.Buffered(1))
            return pl.BlockSpec(shape, imap)

        grid_spec = pltpu.PrefetchScalarGridSpec(
            num_scalar_prefetch=0,
            grid=(T,),
            in_specs=[
                pl.BlockSpec((None, Bp, Hp), lambda t: (t, 0, 0)),   # embedded x_t (pipelined)
                const_spec((Bp, Hp), c2),                            # h0
                const_spec((Bp, S, Hp), c3),                         # encoder outputs
                const_spec((Hp, 3 * Hp), c2),                        # w_ih^T
                const_spec((Hp, 3 * Hp), c2),                        # w_hh^T
                const_spec((1, 3 * Hp), c2),                         # b_ih
                const_spec((1, 3 * Hp), c2),                         # b_hh
                const_spec((2 * Hp, Hp), c2),                        # w_concat^T
                const_spec((1, Hp), c2),                             # b_concat
            ],
            out_specs=(
                pl.BlockSpec((None, Bp, Hp), lambda t: (t, 0, 0)),   # concat_output
                pl.BlockSpec((None, Bp, Hp), lambda t: (t, 0, 0)),   # hidden state
            ),
            scratch_shapes=[pltpu.VMEM((Bp, Hp), jnp.float32)],      # hidden-state carry
        )
        return pl.pallas_call(
            _recurrent_kernel,
            grid_spec=grid_spec,
            out_shape=(jax.ShapeDtypeStruct((T, Bp, Hp), cdt),
                       jax.ShapeDtypeStruct((T, Bp, Hp), jnp.float32)),
            compiler_params=pltpu.CompilerParams(
                dimension_semantics=("arbitrary",),   # hidden state carries across steps
                vmem_limit_bytes=k1_vmem),
        )(x, h0, enc, w_ih, w_hh, b_ih, b_hh, w_cat, b_cat)

    try:
        cat_out, hiddens = run_recurrent(single_buffer=hasattr(pl, "Buffered"))
    except Exception:    # jax version without BlockSpec pipeline_mode / Buffered(1) support
        cat_out, hiddens = run_recurrent(single_buffer=False)

    # --------------- kernel 2: batched output projection + online softmax ----------------
    R = T * Bp
    TM = min(row_tile, R)                 # R is a multiple of 8 (Bp is), so TM is too
    Rp = _round_up(R, TM)
    rows = cat_out.reshape(R, Hp)
    if Rp != R:
        rows = jnp.zeros((Rp, Hp), cdt).at[:R].set(rows)

    k2_vmem = _scoped_vmem_bytes([
        ((TM, Hp), cdt), ((Hp, TN), cdt), ((1, TN), jnp.float32),
        ((TM, Vp), jnp.float32), ((TM, 1), jnp.float32), ((TM, 1), jnp.float32),
    ])

    probs_full = pl.pallas_call(
        _proj_softmax_kernel,
        grid_spec=pltpu.PrefetchScalarGridSpec(
            num_scalar_prefetch=0,
            grid=(Rp // TM, Vp // TN),
            in_specs=[
                pl.BlockSpec((TM, Hp), lambda r, v: (r, 0)),      # concat_output rows
                pl.BlockSpec((Hp, TN), lambda r, v: (0, v)),      # w_out tile (streamed)
                pl.BlockSpec((1, TN), lambda r, v: (0, v)),       # b_out tile (pad = -1e9)
            ],
            out_specs=pl.BlockSpec((TM, Vp), lambda r, v: (r, 0)),
            scratch_shapes=[pltpu.VMEM((TM, 1), jnp.float32),
                            pltpu.VMEM((TM, 1), jnp.float32)],
        ),
        out_shape=jax.ShapeDtypeStruct((Rp, Vp), jnp.float32),
        compiler_params=pltpu.CompilerParams(
            dimension_semantics=("parallel", "arbitrary"),        # rows parallel (megacore)
            vmem_limit_bytes=k2_vmem),
    )(rows, w_out, b_out)

    probs = probs_full[:R].reshape(T, Bp, Vp)[:, :B, :V]
    return probs, hiddens[:, :B, :H]


def luong_decoder_forward(input_step, last_hidden, encoder_outputs, params, **kw):
    """Single decoder step -- same signature/semantics as the PyTorch forward (T == 1)."""
    probs, hiddens = luong_decoder_decode(input_step, last_hidden, encoder_outputs,
                                          params, **kw)
    return probs[0], hiddens                  # ((B, output_size), (1, B, H))


# --------------------------------- pure-JAX reference -------------------------------------
def reference_forward(input_step, last_hidden, encoder_outputs, p):
    hp = jax.lax.Precision.HIGHEST
    x = p['emb'][input_step[0]]
    h = last_hidden[0]
    H = h.shape[1]
    gi = jnp.dot(x, p['w_ih_t'], precision=hp) + p['b_ih'][0]
    gh = jnp.dot(h, p['w_hh_t'], precision=hp) + p['b_hh'][0]
    r = jax.nn.sigmoid(gi[:, :H] + gh[:, :H])
    z = jax.nn.sigmoid(gi[:, H:2 * H] + gh[:, H:2 * H])
    n = jnp.tanh(gi[:, 2 * H:] + r * gh[:, 2 * H:])
    h_new = (1 - z) * n + z * h
    e = jnp.sum(h_new[None] * encoder_outputs, axis=2).T
    w = jax.nn.softmax(e, axis=1)
    ctx = jnp.einsum('bs,sbh->bh', w, encoder_outputs, precision=hp)
    cc = jnp.tanh(jnp.dot(jnp.concatenate([h_new, ctx], axis=1), p['w_cat_t'], precision=hp)
                  + p['b_cat'][0])
    out = jax.nn.softmax(jnp.dot(cc, p['w_out_t'], precision=hp) + p['b_out'][0], axis=1)
    return out, h_new[None]


def reference_decode(token_ids, last_hidden, encoder_outputs, p):
    outs, hids = [], []
    h = last_hidden
    for t in range(token_ids.shape[0]):
        o, h = reference_forward(token_ids[t][None], h, encoder_outputs, p)
        outs.append(o)
        hids.append(h[0])
    return jnp.stack(outs), jnp.stack(hids)


if __name__ == "__main__":
    VOCAB, HIDDEN, OUTPUT = 50, 32, 64
    BATCH, SEQ, STEPS = 4, 8, 5

    key = jax.random.PRNGKey(0)
    ks = jax.random.split(key, 12)

    params = {
        'emb':      jax.random.normal(ks[0], (VOCAB, HIDDEN), jnp.float32) * 0.1,
        'w_ih_t':   jax.random.normal(ks[1], (HIDDEN, 3 * HIDDEN), jnp.float32) * 0.1,
        'w_hh_t':   jax.random.normal(ks[2], (HIDDEN, 3 * HIDDEN), jnp.float32) * 0.1,
        'b_ih':     jax.random.normal(ks[3], (1, 3 * HIDDEN), jnp.float32) * 0.1,
        'b_hh':     jax.random.normal(ks[4], (1, 3 * HIDDEN), jnp.float32) * 0.1,
        'w_cat_t':  jax.random.normal(ks[5], (2 * HIDDEN, HIDDEN), jnp.float32) * 0.1,
        'b_cat':    jax.random.normal(ks[6], (1, HIDDEN), jnp.float32) * 0.1,
        'w_out_t':  jax.random.normal(ks[7], (HIDDEN, OUTPUT), jnp.float32) * 0.1,
        'b_out':    jax.random.normal(ks[8], (1, OUTPUT), jnp.float32) * 0.1,
    }

    token_ids = jax.random.randint(ks[9], (STEPS, BATCH), 0, VOCAB, dtype=jnp.int32)
    last_hidden = jax.random.normal(ks[10], (1, BATCH, HIDDEN), jnp.float32)
    encoder_outputs = jax.random.normal(ks[11], (SEQ, BATCH, HIDDEN), jnp.float32)

    ref_probs, ref_hiddens = reference_decode(token_ids, last_hidden, encoder_outputs, params)

    # ---- f32 MXU operands: tight comparison against the f32 reference ----
    probs, hiddens = luong_decoder_decode(token_ids, last_hidden, encoder_outputs, params,
                                          compute_dtype=jnp.float32)
    probs, hiddens = jax.block_until_ready((probs, hiddens))
    assert probs.shape == (STEPS, BATCH, OUTPUT)
    assert hiddens.shape == (STEPS, BATCH, HIDDEN)
    assert jnp.allclose(hiddens, ref_hiddens, atol=5e-4, rtol=1e-3), \
        float(jnp.max(jnp.abs(hiddens - ref_hiddens)))
    assert jnp.allclose(probs, ref_probs, atol=2e-3, rtol=2e-3), \
        float(jnp.max(jnp.abs(probs - ref_probs)))
    # Exact (non-approx) final softmax normalization -> rows sum to 1.
    assert jnp.allclose(jnp.sum(probs, axis=-1), 1.0, atol=1e-3)

    # ---- default bf16 MXU operands (f32 accumulation): loose sanity checks ----
    probs_bf, hid_bf = luong_decoder_decode(token_ids, last_hidden, encoder_outputs, params)
    probs_bf, hid_bf = jax.block_until_ready((probs_bf, hid_bf))
    assert bool(jnp.all(jnp.isfinite(probs_bf))) and bool(jnp.all(jnp.isfinite(hid_bf)))
    assert jnp.allclose(jnp.sum(probs_bf, axis=-1), 1.0, atol=1e-2)
    assert float(jnp.max(jnp.abs(probs_bf - ref_probs))) < 5e-2
    assert float(jnp.max(jnp.abs(hid_bf - ref_hiddens))) < 1e-1

    # ---- single-step path: identical to the original module forward (T == 1) ----
    out1, hid1 = luong_decoder_forward(token_ids[:1], last_hidden, encoder_outputs, params,
                                       compute_dtype=jnp.float32)
    out1, hid1 = jax.block_until_ready((out1, hid1))
    ref_out1, ref_hid1 = reference_forward(token_ids[:1], last_hidden, encoder_outputs, params)
    assert out1.shape == (BATCH, OUTPUT) and hid1.shape == (1, BATCH, HIDDEN)
    assert jnp.allclose(out1, ref_out1, atol=2e-3, rtol=2e-3)
    assert jnp.allclose(hid1, ref_hid1, atol=5e-4, rtol=1e-3)

    print("KERNEL_OK")
</pallas_src>

<mosaic_0001>
module attributes {stable_mosaic.version = 11 : i64} {
  func.func @_recurrent_kernel(%arg0: i32, %arg1: memref<1x8x128xf32, #tpu.memory_space<vmem>>, %arg2: memref<8x128xf32, #tpu.memory_space<vmem>>, %arg3: memref<8x8x128xf32, #tpu.memory_space<vmem>>, %arg4: memref<128x384xf32, #tpu.memory_space<vmem>>, %arg5: memref<128x384xf32, #tpu.memory_space<vmem>>, %arg6: memref<1x384xf32, #tpu.memory_space<vmem>>, %arg7: memref<1x384xf32, #tpu.memory_space<vmem>>, %arg8: memref<256x128xf32, #tpu.memory_space<vmem>>, %arg9: memref<1x128xf32, #tpu.memory_space<vmem>>, %arg10: memref<1x8x128xf32, #tpu.memory_space<vmem>>, %arg11: memref<1x8x128xf32, #tpu.memory_space<vmem>>, %arg12: memref<8x128xf32, #tpu.memory_space<vmem>>) attributes {dimension_semantics = [#tpu.dimension_semantics<arbitrary>], iteration_bounds = array<i64: 5>, scalar_prefetch = 0 : i64, scratch_operands = 1 : i64, tpu.core_type = #tpu.core_type<tc>, window_params = [{transform_indices = @transform_0, window_bounds = array<i64: 1, 8, 128>}, {pipeline_mode = #tpu.pipeline_mode<synchronous>, transform_indices = @transform_1, window_bounds = array<i64: 8, 128>}, {pipeline_mode = #tpu.pipeline_mode<synchronous>, transform_indices = @transform_2, window_bounds = array<i64: 8, 8, 128>}, {pipeline_mode = #tpu.pipeline_mode<synchronous>, transform_indices = @transform_3, window_bounds = array<i64: 128, 384>}, {pipeline_mode = #tpu.pipeline_mode<synchronous>, transform_indices = @transform_4, window_bounds = array<i64: 128, 384>}, {pipeline_mode = #tpu.pipeline_mode<synchronous>, transform_indices = @transform_5, window_bounds = array<i64: 1, 384>}, {pipeline_mode = #tpu.pipeline_mode<synchronous>, transform_indices = @transform_6, window_bounds = array<i64: 1, 384>}, {pipeline_mode = #tpu.pipeline_mode<synchronous>, transform_indices = @transform_7, window_bounds = array<i64: 256, 128>}, {pipeline_mode = #tpu.pipeline_mode<synchronous>, transform_indices = @transform_8, window_bounds = array<i64: 1, 128>}, {transform_indices = @transform_9, window_bounds = array<i64: 1, 8, 128>}, {transform_indices = @transform_10, window_bounds = array<i64: 1, 8, 128>}]} {
    %c0_i32 = arith.constant 0 : i32
    %0 = arith.cmpi eq, %arg0, %c0_i32 : i32
    %1 = arith.extui %0 : i1 to i32
    %c0_i32_0 = arith.constant 0 : i32
    %2 = arith.cmpi ne, %1, %c0_i32_0 : i32
    scf.if %2 {
      %c0_37 = arith.constant 0 : index
      %c0_38 = arith.constant 0 : index
      %75 = vector.load %arg2[%c0_37, %c0_38] : memref<8x128xf32, #tpu.memory_space<vmem>>, vector<8x128xf32>
      %c0_39 = arith.constant 0 : index
      %c0_40 = arith.constant 0 : index
      %76 = vector.load %arg12[%c0_39, %c0_40] : memref<8x128xf32, #tpu.memory_space<vmem>>, vector<8x128xf32>
      tpu.vector_store %arg12[%c0_39, %c0_40], %75 {strides = array<i32>} : memref<8x128xf32, #tpu.memory_space<vmem>>, vector<8x128xf32>,
    } else {
    }
    %c0 = arith.constant 0 : index
    %c0_1 = arith.constant 0 : index
    %c0_2 = arith.constant 0 : index
    %3 = vector.load %arg1[%c0, %c0_1, %c0_2] : memref<1x8x128xf32, #tpu.memory_space<vmem>>, vector<1x8x128xf32>
    %4 = vector.shape_cast %3 : vector<1x8x128xf32> to vector<8x128xf32>
    %c0_3 = arith.constant 0 : index
    %c0_4 = arith.constant 0 : index
    %5 = vector.load %arg12[%c0_3, %c0_4] : memref<8x128xf32, #tpu.memory_space<vmem>>, vector<8x128xf32>
    %c0_5 = arith.constant 0 : index
    %c0_6 = arith.constant 0 : index
    %6 = vector.load %arg4[%c0_5, %c0_6] : memref<128x384xf32, #tpu.memory_space<vmem>>, vector<128x384xf32>
    %cst = arith.constant dense<0.000000e+00> : vector<8x384xf32>
    %7 = tpu.matmul %4, %6, %cst {dimension_numbers = #tpu.dot_dimension_numbers<[1], [0], [0], [1], [0, 0, 1, 1], [], []>} : vector<8x128xf32>, vector<128x384xf32>, vector<8x384xf32> -> vector<8x384xf32>
    %c0_7 = arith.constant 0 : index
    %c0_8 = arith.constant 0 : index
    %8 = vector.load %arg6[%c0_7, %c0_8] : memref<1x384xf32, #tpu.memory_space<vmem>>, vector<1x384xf32>
    %9 = vector.broadcast %8 : vector<1x384xf32> to vector<8x384xf32>
    %10 = arith.addf %7, %9 : vector<8x384xf32>
    %c0_9 = arith.constant 0 : index
    %c0_10 = arith.constant 0 : index
    %11 = vector.load %arg5[%c0_9, %c0_10] : memref<128x384xf32, #tpu.memory_space<vmem>>, vector<128x384xf32>
    %cst_11 = arith.constant dense<0.000000e+00> : vector<8x384xf32>
    %12 = tpu.matmul %5, %11, %cst_11 {dimension_numbers = #tpu.dot_dimension_numbers<[1], [0], [0], [1], [0, 0, 1, 1], [], []>} : vector<8x128xf32>, vector<128x384xf32>, vector<8x384xf32> -> vector<8x384xf32>
    %c0_12 = arith.constant 0 : index
    %c0_13 = arith.constant 0 : index
    %13 = vector.load %arg7[%c0_12, %c0_13] : memref<1x384xf32, #tpu.memory_space<vmem>>, vector<1x384xf32>
    %14 = vector.broadcast %13 : vector<1x384xf32> to vector<8x384xf32>
    %15 = arith.addf %12, %14 : vector<8x384xf32>
    %16 = vector.extract_strided_slice %10 {offsets = [0, 0], sizes = [8, 128], strides = [1, 1]} : vector<8x384xf32> to vector<8x128xf32>
    %17 = vector.extract_strided_slice %15 {offsets = [0, 0], sizes = [8, 128], strides = [1, 1]} : vector<8x384xf32> to vector<8x128xf32>
    %18 = arith.addf %16, %17 : vector<8x128xf32>
    %19 = arith.negf %18 : vector<8x128xf32>
    %20 = math.exp %19 : vector<8x128xf32>
    %cst_14 = arith.constant 1.000000e+00 : f32
    %21 = vector.broadcast %cst_14 : f32 to vector<8x128xf32>
    %22 = arith.addf %21, %20 : vector<8x128xf32>
    %23 = arith.divf %21, %22 : vector<8x128xf32>
    %24 = vector.extract_strided_slice %10 {offsets = [0, 128], sizes = [8, 128], strides = [1, 1]} : vector<8x384xf32> to vector<8x128xf32>
    %25 = vector.extract_strided_slice %15 {offsets = [0, 128], sizes = [8, 128], strides = [1, 1]} : vector<8x384xf32> to vector<8x128xf32>
    %26 = arith.addf %24, %25 : vector<8x128xf32>
    %27 = arith.negf %26 : vector<8x128xf32>
    %28 = math.exp %27 : vector<8x128xf32>
    %cst_15 = arith.constant 1.000000e+00 : f32
    %29 = vector.broadcast %cst_15 : f32 to vector<8x128xf32>
    %30 = arith.addf %29, %28 : vector<8x128xf32>
    %31 = arith.divf %29, %30 : vector<8x128xf32>
    %32 = vector.extract_strided_slice %10 {offsets = [0, 256], sizes = [8, 128], strides = [1, 1]} : vector<8x384xf32> to vector<8x128xf32>
    %33 = vector.extract_strided_slice %15 {offsets = [0, 256], sizes = [8, 128], strides = [1, 1]} : vector<8x384xf32> to vector<8x128xf32>
    %34 = arith.mulf %23, %33 : vector<8x128xf32>
    %35 = arith.addf %32, %34 : vector<8x128xf32>
    %36 = math.tanh %35 : vector<8x128xf32>
    %cst_16 = arith.constant 1.000000e+00 : f32
    %37 = vector.broadcast %cst_16 : f32 to vector<8x128xf32>
    %38 = arith.subf %37, %31 : vector<8x128xf32>
    %39 = arith.mulf %38, %36 : vector<8x128xf32>
    %40 = arith.mulf %31, %5 : vector<8x128xf32>
    %41 = arith.addf %39, %40 : vector<8x128xf32>
    %c0_17 = arith.constant 0 : index
    %c0_18 = arith.constant 0 : index
    %c0_19 = arith.constant 0 : index
    %42 = vector.load %arg3[%c0_17, %c0_18, %c0_19] : memref<8x8x128xf32, #tpu.memory_space<vmem>>, vector<8x8x128xf32>
    %43 = vector.shape_cast %41 : vector<8x128xf32> to vector<8x1x128xf32>
    %44 = vector.broadcast %43 : vector<8x1x128xf32> to vector<8x8x128xf32>
    %45 = arith.mulf %44, %42 : vector<8x8x128xf32>
    %cst_20 = arith.constant dense<0.000000e+00> : vector<8x8xf32>
    %46 = vector.multi_reduction <add>, %45, %cst_20 [2] : vector<8x8x128xf32> to vector<8x8xf32>
    %cst_21 = arith.constant dense<0xFF800000> : vector<8xf32>
    %47 = vector.multi_reduction <maximumf>, %46, %cst_21 [1] : vector<8x8xf32> to vector<8xf32>
    %48 = vector.shape_cast %47 : vector<8xf32> to vector<8x1xf32>
    %49 = vector.broadcast %48 : vector<8x1xf32> to vector<8x8xf32>
    %50 = arith.subf %46, %49 : vector<8x8xf32>
    %51 = math.exp %50 : vector<8x8xf32>
    %cst_22 = arith.constant dense<0.000000e+00> : vector<8xf32>
    %52 = vector.multi_reduction <add>, %51, %cst_22 [1] : vector<8x8xf32> to vector<8xf32>
    %53 = vector.shape_cast %52 : vector<8xf32> to vector<8x1xf32>
    %54 = tpu.reciprocal %53 {approx = true} : vector<8x1xf32> -> vector<8x1xf32>
    %55 = vector.broadcast %54 : vector<8x1xf32> to vector<8x8xf32>
    %56 = arith.mulf %51, %55 : vector<8x8xf32>
    %57 = vector.shape_cast %56 : vector<8x8xf32> to vector<8x8x1xf32>
    %58 = vector.broadcast %57 : vector<8x8x1xf32> to vector<8x8x128xf32>
    %59 = arith.mulf %58, %42 : vector<8x8x128xf32>
    %cst_23 = arith.constant dense<0.000000e+00> : vector<8x128xf32>
    %60 = vector.multi_reduction <add>, %59, %cst_23 [1] : vector<8x8x128xf32> to vector<8x128xf32>
    %61 = tpu.concatenate %41, %60 in 1 : vector<8x128xf32>, vector<8x128xf32> -> vector<8x256xf32>
    %c0_24 = arith.constant 0 : index
    %c0_25 = arith.constant 0 : index
    %62 = vector.load %arg8[%c0_24, %c0_25] : memref<256x128xf32, #tpu.memory_space<vmem>>, vector<256x128xf32>
    %cst_26 = arith.constant dense<0.000000e+00> : vector<8x128xf32>
    %63 = tpu.matmul %61, %62, %cst_26 {dimension_numbers = #tpu.dot_dimension_numbers<[1], [0], [0], [1], [0, 0, 1, 1], [], []>} : vector<8x256xf32>, vector<256x128xf32>, vector<8x128xf32> -> vector<8x128xf32>
    %c0_27 = arith.constant 0 : index
    %c0_28 = arith.constant 0 : index
    %64 = vector.load %arg9[%c0_27, %c0_28] : memref<1x128xf32, #tpu.memory_space<vmem>>, vector<1x128xf32>
    %65 = vector.broadcast %64 : vector<1x128xf32> to vector<8x128xf32>
    %66 = arith.addf %63, %65 : vector<8x128xf32>
    %67 = math.tanh %66 : vector<8x128xf32>
    %c0_29 = arith.constant 0 : index
    %c0_30 = arith.constant 0 : index
    %c0_31 = arith.constant 0 : index
    %68 = vector.load %arg10[%c0_29, %c0_30, %c0_31] : memref<1x8x128xf32, #tpu.memory_space<vmem>>, vector<1x8x128xf32>
    %69 = vector.shape_cast %68 : vector<1x8x128xf32> to vector<8x128xf32>
    %70 = vector.shape_cast %67 : vector<8x128xf32> to vector<1x8x128xf32>
    tpu.vector_store %arg10[%c0_29, %c0_30, %c0_31], %70 {strides = array<i32>} : memref<1x8x128xf32, #tpu.memory_space<vmem>>, vector<1x8x128xf32>,
    %c0_32 = arith.constant 0 : index
    %c0_33 = arith.constant 0 : index
    %c0_34 = arith.constant 0 : index
    %71 = vector.load %arg11[%c0_32, %c0_33, %c0_34] : memref<1x8x128xf32, #tpu.memory_space<vmem>>, vector<1x8x128xf32>
    %72 = vector.shape_cast %71 : vector<1x8x128xf32> to vector<8x128xf32>
    %73 = vector.shape_cast %41 : vector<8x128xf32> to vector<1x8x128xf32>
    tpu.vector_store %arg11[%c0_32, %c0_33, %c0_34], %73 {strides = array<i32>} : memref<1x8x128xf32, #tpu.memory_space<vmem>>, vector<1x8x128xf32>,
    %c0_35 = arith.constant 0 : index
    %c0_36 = arith.constant 0 : index
    %74 = vector.load %arg12[%c0_35, %c0_36] : memref<8x128xf32, #tpu.memory_space<vmem>>, vector<8x128xf32>
    tpu.vector_store %arg12[%c0_35, %c0_36], %41 {strides = array<i32>} : memref<8x128xf32, #tpu.memory_space<vmem>>, vector<8x128xf32>,
    return
  }
  func.func @transform_0(%arg0: i32) -> (i32, i32, i32) {
    %c0_i32 = arith.constant 0 : i32
    %c0_i32_0 = arith.constant 0 : i32
    %c0_i32_1 = arith.constant 0 : i32
    return %arg0, %c0_i32, %c0_i32_0 : i32, i32, i32
  }
  func.func @transform_1(%arg0: i32) -> (i32, i32) {
    %c0_i32 = arith.constant 0 : i32
    %c0_i32_0 = arith.constant 0 : i32
    %c0_i32_1 = arith.constant 0 : i32
    return %c0_i32, %c0_i32_0 : i32, i32
  }
  func.func @transform_2(%arg0: i32) -> (i32, i32, i32) {
    %c0_i32 = arith.constant 0 : i32
    %c0_i32_0 = arith.constant 0 : i32
    %c0_i32_1 = arith.constant 0 : i32
    %c0_i32_2 = arith.constant 0 : i32
    return %c0_i32, %c0_i32_0, %c0_i32_1 : i32, i32, i32
  }
  func.func @transform_3(%arg0: i32) -> (i32, i32) {
    %c0_i32 = arith.constant 0 : i32
    %c0_i32_0 = arith.constant 0 : i32
    %c0_i32_1 = arith.constant 0 : i32
    return %c0_i32, %c0_i32_0 : i32, i32
  }
  func.func @transform_4(%arg0: i32) -> (i32, i32) {
    %c0_i32 = arith.constant 0 : i32
    %c0_i32_0 = arith.constant 0 : i32
    %c0_i32_1 = arith.constant 0 : i32
    return %c0_i32, %c0_i32_0 : i32, i32
  }
  func.func @transform_5(%arg0: i32) -> (i32, i32) {
    %c0_i32 = arith.constant 0 : i32
    %c0_i32_0 = arith.constant 0 : i32
    %c0_i32_1 = arith.constant 0 : i32
    return %c0_i32, %c0_i32_0 : i32, i32
  }
  func.func @transform_6(%arg0: i32) -> (i32, i32) {
    %c0_i32 = arith.constant 0 : i32
    %c0_i32_0 = arith.constant 0 : i32
    %c0_i32_1 = arith.constant 0 : i32
    return %c0_i32, %c0_i32_0 : i32, i32
  }
  func.func @transform_7(%arg0: i32) -> (i32, i32) {
    %c0_i32 = arith.constant 0 : i32
    %c0_i32_0 = arith.constant 0 : i32
    %c0_i32_1 = arith.constant 0 : i32
    return %c0_i32, %c0_i32_0 : i32, i32
  }
  func.func @transform_8(%arg0: i32) -> (i32, i32) {
    %c0_i32 = arith.constant 0 : i32
    %c0_i32_0 = arith.constant 0 : i32
    %c0_i32_1 = arith.constant 0 : i32
    return %c0_i32, %c0_i32_0 : i32, i32
  }
  func.func @transform_9(%arg0: i32) -> (i32, i32, i32) {
    %c0_i32 = arith.constant 0 : i32
    %c0_i32_0 = arith.constant 0 : i32
    %c0_i32_1 = arith.constant 0 : i32
    return %arg0, %c0_i32, %c0_i32_0 : i32, i32, i32
  }
  func.func @transform_10(%arg0: i32) -> (i32, i32, i32) {
    %c0_i32 = arith.constant 0 : i32
    %c0_i32_0 = arith.constant 0 : i32
    %c0_i32_1 = arith.constant 0 : i32
    return %arg0, %c0_i32, %c0_i32_0 : i32, i32, i32
  }
}

module attributes {stable_mosaic.version = 11 : i64} {
  func.func @_recurrent_kernel(%arg0: i32, %arg1: memref<1x8x128xf32, #tpu.memory_space<vmem>>, %arg2: memref<8x128xf32, #tpu.memory_space<vmem>>, %arg3: memref<8x8x128xf32, #tpu.memory_space<vmem>>, %arg4: memref<128x384xf32, #tpu.memory_space<vmem>>, %arg5: memref<128x384xf32, #tpu.memory_space<vmem>>, %arg6: memref<1x384xf32, #tpu.memory_space<vmem>>, %arg7: memref<1x384xf32, #tpu.memory_space<vmem>>, %arg8: memref<256x128xf32, #tpu.memory_space<vmem>>, %arg9: memref<1x128xf32, #tpu.memory_space<vmem>>, %arg10: memref<1x8x128xf32, #tpu.memory_space<vmem>>, %arg11: memref<1x8x128xf32, #tpu.memory_space<vmem>>, %arg12: memref<8x128xf32, #tpu.memory_space<vmem>>) attributes {dimension_semantics = [#tpu.dimension_semantics<arbitrary>], iteration_bounds = array<i64: 5>, scalar_prefetch = 0 : i64, scratch_operands = 1 : i64, tpu.core_type = #tpu.core_type<tc>, window_params = [{transform_indices = @transform_0, window_bounds = array<i64: 1, 8, 128>}, {pipeline_mode = #tpu.pipeline_mode<synchronous>, transform_indices = @transform_1, window_bounds = array<i64: 8, 128>}, {pipeline_mode = #tpu.pipeline_mode<synchronous>, transform_indices = @transform_2, window_bounds = array<i64: 8, 8, 128>}, {pipeline_mode = #tpu.pipeline_mode<synchronous>, transform_indices = @transform_3, window_bounds = array<i64: 128, 384>}, {pipeline_mode = #tpu.pipeline_mode<synchronous>, transform_indices = @transform_4, window_bounds = array<i64: 128, 384>}, {pipeline_mode = #tpu.pipeline_mode<synchronous>, transform_indices = @transform_5, window_bounds = array<i64: 1, 384>}, {pipeline_mode = #tpu.pipeline_mode<synchronous>, transform_indices = @transform_6, window_bounds = array<i64: 1, 384>}, {pipeline_mode = #tpu.pipeline_mode<synchronous>, transform_indices = @transform_7, window_bounds = array<i64: 256, 128>}, {pipeline_mode = #tpu.pipeline_mode<synchronous>, transform_indices = @transform_8, window_bounds = array<i64: 1, 128>}, {transform_indices = @transform_9, window_bounds = array<i64: 1, 8, 128>}, {transform_indices = @transform_10, window_bounds = array<i64: 1, 8, 128>}]} {
    %c0_i32 = arith.constant 0 : i32
    %0 = arith.cmpi eq, %arg0, %c0_i32 : i32
    %1 = arith.extui %0 : i1 to i32
    %c0_i32_0 = arith.constant 0 : i32
    %2 = arith.cmpi ne, %1, %c0_i32_0 : i32
    scf.if %2 {
      %c0_37 = arith.constant 0 : index
      %c0_38 = arith.constant 0 : index
      %75 = vector.load %arg2[%c0_37, %c0_38] : memref<8x128xf32, #tpu.memory_space<vmem>>, vector<8x128xf32>
      %c0_39 = arith.constant 0 : index
      %c0_40 = arith.constant 0 : index
      %76 = vector.load %arg12[%c0_39, %c0_40] : memref<8x128xf32, #tpu.memory_space<vmem>>, vector<8x128xf32>
      tpu.vector_store %arg12[%c0_39, %c0_40], %75 {strides = array<i32>} : memref<8x128xf32, #tpu.memory_space<vmem>>, vector<8x128xf32>,
    } else {
    }
    %c0 = arith.constant 0 : index
    %c0_1 = arith.constant 0 : index
    %c0_2 = arith.constant 0 : index
    %3 = vector.load %arg1[%c0, %c0_1, %c0_2] : memref<1x8x128xf32, #tpu.memory_space<vmem>>, vector<1x8x128xf32>
    %4 = vector.shape_cast %3 : vector<1x8x128xf32> to vector<8x128xf32>
    %c0_3 = arith.constant 0 : index
    %c0_4 = arith.constant 0 : index
    %5 = vector.load %arg12[%c0_3, %c0_4] : memref<8x128xf32, #tpu.memory_space<vmem>>, vector<8x128xf32>
    %c0_5 = arith.constant 0 : index
    %c0_6 = arith.constant 0 : index
    %6 = vector.load %arg4[%c0_5, %c0_6] : memref<128x384xf32, #tpu.memory_space<vmem>>, vector<128x384xf32>
    %cst = arith.constant dense<0.000000e+00> : vector<8x384xf32>
    %7 = tpu.matmul %4, %6, %cst {dimension_numbers = #tpu.dot_dimension_numbers<[1], [0], [0], [1], [0, 0, 1, 1], [], []>} : vector<8x128xf32>, vector<128x384xf32>, vector<8x384xf32> -> vector<8x384xf32>
    %c0_7 = arith.constant 0 : index
    %c0_8 = arith.constant 0 : index
    %8 = vector.load %arg6[%c0_7, %c0_8] : memref<1x384xf32, #tpu.memory_space<vmem>>, vector<1x384xf32>
    %9 = vector.broadcast %8 : vector<1x384xf32> to vector<8x384xf32>
    %10 = arith.addf %7, %9 : vector<8x384xf32>
    %c0_9 = arith.constant 0 : index
    %c0_10 = arith.constant 0 : index
    %11 = vector.load %arg5[%c0_9, %c0_10] : memref<128x384xf32, #tpu.memory_space<vmem>>, vector<128x384xf32>
    %cst_11 = arith.constant dense<0.000000e+00> : vector<8x384xf32>
    %12 = tpu.matmul %5, %11, %cst_11 {dimension_numbers = #tpu.dot_dimension_numbers<[1], [0], [0], [1], [0, 0, 1, 1], [], []>} : vector<8x128xf32>, vector<128x384xf32>, vector<8x384xf32> -> vector<8x384xf32>
    %c0_12 = arith.constant 0 : index
    %c0_13 = arith.constant 0 : index
    %13 = vector.load %arg7[%c0_12, %c0_13] : memref<1x384xf32, #tpu.memory_space<vmem>>, vector<1x384xf32>
    %14 = vector.broadcast %13 : vector<1x384xf32> to vector<8x384xf32>
    %15 = arith.addf %12, %14 : vector<8x384xf32>
    %16 = vector.extract_strided_slice %10 {offsets = [0, 0], sizes = [8, 128], strides = [1, 1]} : vector<8x384xf32> to vector<8x128xf32>
    %17 = vector.extract_strided_slice %15 {offsets = [0, 0], sizes = [8, 128], strides = [1, 1]} : vector<8x384xf32> to vector<8x128xf32>
    %18 = arith.addf %16, %17 : vector<8x128xf32>
    %19 = arith.negf %18 : vector<8x128xf32>
    %20 = math.exp %19 : vector<8x128xf32>
    %cst_14 = arith.constant 1.000000e+00 : f32
    %21 = vector.broadcast %cst_14 : f32 to vector<8x128xf32>
    %22 = arith.addf %21, %20 : vector<8x128xf32>
    %23 = arith.divf %21, %22 : vector<8x128xf32>
    %24 = vector.extract_strided_slice %10 {offsets = [0, 128], sizes = [8, 128], strides = [1, 1]} : vector<8x384xf32> to vector<8x128xf32>
    %25 = vector.extract_strided_slice %15 {offsets = [0, 128], sizes = [8, 128], strides = [1, 1]} : vector<8x384xf32> to vector<8x128xf32>
    %26 = arith.addf %24, %25 : vector<8x128xf32>
    %27 = arith.negf %26 : vector<8x128xf32>
    %28 = math.exp %27 : vector<8x128xf32>
    %cst_15 = arith.constant 1.000000e+00 : f32
    %29 = vector.broadcast %cst_15 : f32 to vector<8x128xf32>
    %30 = arith.addf %29, %28 : vector<8x128xf32>
    %31 = arith.divf %29, %30 : vector<8x128xf32>
    %32 = vector.extract_strided_slice %10 {offsets = [0, 256], sizes = [8, 128], strides = [1, 1]} : vector<8x384xf32> to vector<8x128xf32>
    %33 = vector.extract_strided_slice %15 {offsets = [0, 256], sizes = [8, 128], strides = [1, 1]} : vector<8x384xf32> to vector<8x128xf32>
    %34 = arith.mulf %23, %33 : vector<8x128xf32>
    %35 = arith.addf %32, %34 : vector<8x128xf32>
    %36 = math.tanh %35 : vector<8x128xf32>
    %cst_16 = arith.constant 1.000000e+00 : f32
    %37 = vector.broadcast %cst_16 : f32 to vector<8x128xf32>
    %38 = arith.subf %37, %31 : vector<8x128xf32>
    %39 = arith.mulf %38, %36 : vector<8x128xf32>
    %40 = arith.mulf %31, %5 : vector<8x128xf32>
    %41 = arith.addf %39, %40 : vector<8x128xf32>
    %c0_17 = arith.constant 0 : index
    %c0_18 = arith.constant 0 : index
    %c0_19 = arith.constant 0 : index
    %42 = vector.load %arg3[%c0_17, %c0_18, %c0_19] : memref<8x8x128xf32, #tpu.memory_space<vmem>>, vector<8x8x128xf32>
    %43 = vector.shape_cast %41 : vector<8x128xf32> to vector<8x1x128xf32>
    %44 = vector.broadcast %43 : vector<8x1x128xf32> to vector<8x8x128xf32>
    %45 = arith.mulf %44, %42 : vector<8x8x128xf32>
    %cst_20 = arith.constant dense<0.000000e+00> : vector<8x8xf32>
    %46 = vector.multi_reduction <add>, %45, %cst_20 [2] : vector<8x8x128xf32> to vector<8x8xf32>
    %cst_21 = arith.constant dense<0xFF800000> : vector<8xf32>
    %47 = vector.multi_reduction <maximumf>, %46, %cst_21 [1] : vector<8x8xf32> to vector<8xf32>
    %48 = vector.shape_cast %47 : vector<8xf32> to vector<8x1xf32>
    %49 = vector.broadcast %48 : vector<8x1xf32> to vector<8x8xf32>
    %50 = arith.subf %46, %49 : vector<8x8xf32>
    %51 = math.exp %50 : vector<8x8xf32>
    %cst_22 = arith.constant dense<0.000000e+00> : vector<8xf32>
    %52 = vector.multi_reduction <add>, %51, %cst_22 [1] : vector<8x8xf32> to vector<8xf32>
    %53 = vector.shape_cast %52 : vector<8xf32> to vector<8x1xf32>
    %54 = tpu.reciprocal %53 {approx = true} : vector<8x1xf32> -> vector<8x1xf32>
    %55 = vector.broadcast %54 : vector<8x1xf32> to vector<8x8xf32>
    %56 = arith.mulf %51, %55 : vector<8x8xf32>
    %57 = vector.shape_cast %56 : vector<8x8xf32> to vector<8x8x1xf32>
    %58 = vector.broadcast %57 : vector<8x8x1xf32> to vector<8x8x128xf32>
    %59 = arith.mulf %58, %42 : vector<8x8x128xf32>
    %cst_23 = arith.constant dense<0.000000e+00> : vector<8x128xf32>
    %60 = vector.multi_reduction <add>, %59, %cst_23 [1] : vector<8x8x128xf32> to vector<8x128xf32>
    %61 = tpu.concatenate %41, %60 in 1 : vector<8x128xf32>, vector<8x128xf32> -> vector<8x256xf32>
    %c0_24 = arith.constant 0 : index
    %c0_25 = arith.constant 0 : index
    %62 = vector.load %arg8[%c0_24, %c0_25] : memref<256x128xf32, #tpu.memory_space<vmem>>, vector<256x128xf32>
    %cst_26 = arith.constant dense<0.000000e+00> : vector<8x128xf32>
    %63 = tpu.matmul %61, %62, %cst_26 {dimension_numbers = #tpu.dot_dimension_numbers<[1], [0], [0], [1], [0, 0, 1, 1], [], []>} : vector<8x256xf32>, vector<256x128xf32>, vector<8x128xf32> -> vector<8x128xf32>
    %c0_27 = arith.constant 0 : index
    %c0_28 = arith.constant 0 : index
    %64 = vector.load %arg9[%c0_27, %c0_28] : memref<1x128xf32, #tpu.memory_space<vmem>>, vector<1x128xf32>
    %65 = vector.broadcast %64 : vector<1x128xf32> to vector<8x128xf32>
    %66 = arith.addf %63, %65 : vector<8x128xf32>
    %67 = math.tanh %66 : vector<8x128xf32>
    %c0_29 = arith.constant 0 : index
    %c0_30 = arith.constant 0 : index
    %c0_31 = arith.constant 0 : index
    %68 = vector.load %arg10[%c0_29, %c0_30, %c0_31] : memref<1x8x128xf32, #tpu.memory_space<vmem>>, vector<1x8x128xf32>
    %69 = vector.shape_cast %68 : vector<1x8x128xf32> to vector<8x128xf32>
    %70 = vector.shape_cast %67 : vector<8x128xf32> to vector<1x8x128xf32>
    tpu.vector_store %arg10[%c0_29, %c0_30, %c0_31], %70 {strides = array<i32>} : memref<1x8x128xf32, #tpu.memory_space<vmem>>, vector<1x8x128xf32>,
    %c0_32 = arith.constant 0 : index
    %c0_33 = arith.constant 0 : index
    %c0_34 = arith.constant 0 : index
    %71 = vector.load %arg11[%c0_32, %c0_33, %c0_34] : memref<1x8x128xf32, #tpu.memory_space<vmem>>, vector<1x8x128xf32>
    %72 = vector.shape_cast %71 : vector<1x8x128xf32> to vector<8x128xf32>
    %73 = vector.shape_cast %41 : vector<8x128xf32> to vector<1x8x128xf32>
    tpu.vector_store %arg11[%c0_32, %c0_33, %c0_34], %73 {strides = array<i32>} : memref<1x8x128xf32, #tpu.memory_space<vmem>>, vector<1x8x128xf32>,
    %c0_35 = arith.constant 0 : index
    %c0_36 = arith.constant 0 : index
    %74 = vector.load %arg12[%c0_35, %c0_36] : memref<8x128xf32, #tpu.memory_space<vmem>>, vector<8x128xf32>
    tpu.vector_store %arg12[%c0_35, %c0_36], %41 {strides = array<i32>} : memref<8x128xf32, #tpu.memory_space<vmem>>, vector<8x128xf32>,
    return
  }
  func.func @transform_0(%arg0: i32) -> (i32, i32, i32) {
    %c0_i32 = arith.constant 0 : i32
    %c0_i32_0 = arith.constant 0 : i32
    %c0_i32_1 = arith.constant 0 : i32
    return %arg0, %c0_i32, %c0_i32_0 : i32, i32, i32
  }
  func.func @transform_1(%arg0: i32) -> (i32, i32) {
    %c0_i32 = arith.constant 0 : i32
    %c0_i32_0 = arith.constant 0 : i32
    %c0_i32_1 = arith.constant 0 : i32
    return %c0_i32, %c0_i32_0 : i32, i32
  }
  func.func @transform_2(%arg0: i32) -> (i32, i32, i32) {
    %c0_i32 = arith.constant 0 : i32
    %c0_i32_0 = arith.constant 0 : i32
    %c0_i32_1 = arith.constant 0 : i32
    %c0_i32_2 = arith.constant 0 : i32
    return %c0_i32, %c0_i32_0, %c0_i32_1 : i32, i32, i32
  }
  func.func @transform_3(%arg0: i32) -> (i32, i32) {
    %c0_i32 = arith.constant 0 : i32
    %c0_i32_0 = arith.constant 0 : i32
    %c0_i32_1 = arith.constant 0 : i32
    return %c0_i32, %c0_i32_0 : i32, i32
  }
  func.func @transform_4(%arg0: i32) -> (i32, i32) {
    %c0_i32 = arith.constant 0 : i32
    %c0_i32_0 = arith.constant 0 : i32
    %c0_i32_1 = arith.constant 0 : i32
    return %c0_i32, %c0_i32_0 : i32, i32
  }
  func.func @transform_5(%arg0: i32) -> (i32, i32) {
    %c0_i32 = arith.constant 0 : i32
    %c0_i32_0 = arith.constant 0 : i32
    %c0_i32_1 = arith.constant 0 : i32
    return %c0_i32, %c0_i32_0 : i32, i32
  }
  func.func @transform_6(%arg0: i32) -> (i32, i32) {
    %c0_i32 = arith.constant 0 : i32
    %c0_i32_0 = arith.constant 0 : i32
    %c0_i32_1 = arith.constant 0 : i32
    return %c0_i32, %c0_i32_0 : i32, i32
  }
  func.func @transform_7(%arg0: i32) -> (i32, i32) {
    %c0_i32 = arith.constant 0 : i32
    %c0_i32_0 = arith.constant 0 : i32
    %c0_i32_1 = arith.constant 0 : i32
    return %c0_i32, %c0_i32_0 : i32, i32
  }
  func.func @transform_8(%arg0: i32) -> (i32, i32) {
    %c0_i32 = arith.constant 0 : i32
    %c0_i32_0 = arith.constant 0 : i32
    %c0_i32_1 = arith.constant 0 : i32
    return %c0_i32, %c0_i32_0 : i32, i32
  }
  func.func @transform_9(%arg0: i32) -> (i32, i32, i32) {
    %c0_i32 = arith.constant 0 : i32
    %c0_i32_0 = arith.constant 0 : i32
    %c0_i32_1 = arith.constant 0 : i32
    return %arg0, %c0_i32, %c0_i32_0 : i32, i32, i32
  }
  func.func @transform_10(%arg0: i32) -> (i32, i32, i32) {
    %c0_i32 = arith.constant 0 : i32
    %c0_i32_0 = arith.constant 0 : i32
    %c0_i32_1 = arith.constant 0 : i32
    return %arg0, %c0_i32, %c0_i32_0 : i32, i32, i32
  }
}

</mosaic_0001>

<llo_original>
// kernel: tpu_custom_call.1
$region0: #{tpu_custom_call.1}
  #allocation0 [shape = 'u32[]', space=smem, size = 0x4, offset = 0x4, fixed_abs, tag = 'smem constant byte address 0x4 - core index']
  #allocation1 [shape = 'u32[72,128]{1,0:T(1,128)}', space=vmem, size = 0x9000, scoped, tag = 'internal scratch']
  #allocation2 [shape = 'f32[8,128]{1,0:T(8,128)}', space=vmem, size = 0x1000, scoped, tag = 'scratch operand']
  %s0 = inlined_call_operand.hbm [shape: f32[5,8,128], index: 0, kind: input, shape index: {}]
  %s1 = inlined_call_operand.hbm [shape: f32[8,128], index: 1, kind: input, shape index: {}]
  %s2 = inlined_call_operand.hbm [shape: f32[8,8,128], index: 2, kind: input, shape index: {}]
  %s3 = inlined_call_operand.hbm [shape: f32[128,384], index: 3, kind: input, shape index: {}]
  %s4 = inlined_call_operand.hbm [shape: f32[128,384], index: 4, kind: input, shape index: {}]
  %s5 = inlined_call_operand.vmem [shape: f32[1,384], index: 5, kind: input, shape index: {}]
  %s6 = inlined_call_operand.hbm [shape: f32[1,384], index: 6, kind: input, shape index: {}]
  %s7 = inlined_call_operand.hbm [shape: f32[256,128], index: 7, kind: input, shape index: {}]
  %s8 = inlined_call_operand.vmem [shape: f32[1,128], index: 8, kind: input, shape index: {}]
  %s9 = inlined_call_operand.hbm [shape: f32[5,8,128], index: 9, kind: output, shape index: {0}]
  %s10 = inlined_call_operand.hbm [shape: f32[5,8,128], index: 10, kind: output, shape index: {1}]
  %11 = xla_tuple %s9, %s10
  %s12 = sld [smem:[#allocation0]]
  $region109: #{tpu_custom_call.1} parent=0
    _
  %s14 = ssub.s32 1, %s12
  %s15 = scalar_select 0, %s14, %s12
  $region1: #{tpu_custom_call.1} parent=0
    #allocation3 [shape = 'u8[8192]{0}', space=vmem, size = 0x2000, scoped, tag = 'input window, operand 0']
    #allocation4 [shape = 's32[2]{0}', space=sflag, size = 0x8, scoped, tag = 'scoped memory for tpu_custom_call.1']
    #allocation5 [shape = 's32[2]{0}', space=sflag, size = 0x8, scoped, tag = 'scoped memory for tpu_custom_call.1']
    #allocation6 [shape = 'u8[4096]{0}', space=vmem, size = 0x1000, scoped, tag = 'input window, operand 1, single buffered']
    #allocation7 [shape = 's32[1]{0}', space=sflag, size = 0x4, scoped, tag = 'scoped memory for tpu_custom_call.1']
    #allocation8 [shape = 'u8[32768]{0}', space=vmem, size = 0x8000, scoped, tag = 'input window, operand 2, single buffered']
    #allocation9 [shape = 'u8[196608]{0}', space=vmem, size = 0x30000, scoped, tag = 'input window, operand 3, single buffered']
    #allocation10 [shape = 's32[1]{0}', space=sflag, size = 0x4, scoped, tag = 'scoped memory for tpu_custom_call.1']
    #allocation11 [shape = 'u8[196608]{0}', space=vmem, size = 0x30000, scoped, tag = 'input window, operand 4, single buffered']
    #allocation12 [shape = 'u8[1536]{0}', space=vmem, size = 0x800, scoped, tag = 'input window, operand 6, single buffered']
    #allocation13 [shape = 's32[1]{0}', space=sflag, size = 0x4, scoped, tag = 'scoped memory for tpu_custom_call.1']
    #allocation14 [shape = 'u8[131072]{0}', space=vmem, size = 0x20000, scoped, tag = 'input window, operand 7, single buffered']
    #allocation15 [shape = 'u8[8192]{0}', space=vmem, size = 0x2000, scoped, tag = 'output window, operand 0']
    #allocation16 [shape = 'u8[8192]{0}', space=vmem, size = 0x2000, scoped, tag = 'output window, operand 1']
    #allocation17 [shape = 's32[2]{0}', space=sflag, size = 0x8, scoped, tag = 'scoped memory for tpu_custom_call.1']
    %16 = vsyncpa [#allocation4], 0
    %s17 = scalar_lea.sflag [#allocation4], 1
    %18 = vsyncpa %s17, 0
    %19 = vsyncpa [#allocation7], 0
    %20 = vsyncpa [#allocation10], 0
    %21 = vsyncpa [#allocation13], 0
    %22 = vsyncpa [#allocation5], 0
    %s23 = scalar_lea.sflag [#allocation5], 1
    %24 = vsyncpa %s23, 0
    %25 = vsyncpa [#allocation17], 0
    %s26 = scalar_lea.sflag [#allocation17], 1
    %27 = vsyncpa %s26, 0
    loop: start=0, step=1, limit=7
    $region2: #{tpu_custom_call.1} parent=1 // loop_pre_header
      _
    $region3: #{tpu_custom_call.1} parent=1 // loop_header
      %s29 = sphi 0, %s33
      %p30 = scmp.ge.s32.totalorder %s29, 7
      %s39 = sphi 0, %s41
      %s42 = sphi 0, %s39
      %s43 = sphi 0, %s42
      %s59 = sphi 0, %s43
      %s63 = sphi 0, %s63
      %s65 = sphi 0, %s63
      %s66 = sphi 0, %s65
      %s80 = sphi 0, %s66
      %s84 = sphi 0, %s84
      %s86 = sphi 0, %s84
      %s87 = sphi 0, %s86
      %s101 = sphi 0, %s87
      %s105 = sphi 0, %s105
      %s107 = sphi 0, %s105
      %s108 = sphi 0, %s107
      %s122 = sphi 0, %s108
      %s126 = sphi 0, %s126
      %s128 = sphi 0, %s126
      %s129 = sphi 0, %s128
      %s143 = sphi 0, %s129
      %s147 = sphi 0, %s147
      %s149 = sphi 0, %s147
      %s150 = sphi 0, %s149
      %s164 = sphi 0, %s150
      %s168 = sphi 0, %s168
      %s170 = sphi 0, %s168
      %s171 = sphi 0, %s170
      %s185 = sphi 0, %s171
      %s189 = sphi 0, %s189
      %s191 = sphi 0, %s189
      %s192 = sphi 0, %s191
      %s206 = sphi 0, %s192
      %s210 = sphi 0, %s210
      %s212 = sphi 0, %s210
      %s213 = sphi 0, %s212
      %s227 = sphi 0, %s213
      %s233 = sphi 0, %s235
      %s236 = sphi 0, %s233
      %s237 = sphi 0, %s236
      %s253 = sphi 0, %s237
      %s259 = sphi 0, %s261
      %s262 = sphi 0, %s259
      %s263 = sphi 0, %s262
      %s279 = sphi 0, %s263
    $region4: #{tpu_custom_call.1} parent=1 // loop_header_branch
      %32 = sbr.rel (%p30) target = $region8
    $region5: #{tpu_custom_call.1} parent=1 // loop_body
      %s34 = ssub.s32 %s29, 1
      %s35 = ssub.s32 %s29, 2
      %s36 = sadd.s32 %s29, 1
      %s37 = ssub.s32 %s29, %s36
      %p38 = scmp.eq.s32.totalorder %s37, 0
      %s40 = sadd.s32 %s39, 1
      %s41 = scalar_select %p38, %s39, %s40
      %p44 = pneg %p38
      %p45 = scmp.eq.s32.totalorder %s29, 4
      %p46 = por %p44, %p45
      %p47 = scmp.ne.s32.totalorder %s39, %s42
      %p48 = scmp.eq.s32.totalorder %s29, 0
      %p49 = por %p47, %p48
      %p50 = scmp.ne.s32.totalorder %s39, %s42
      %p51 = scmp.eq.s32.totalorder %s34, 4
      %p52 = por %p50, %p51
      %p53 = scmp.ne.s32.totalorder %s42, %s43
      %p54 = scmp.eq.s32.totalorder %s34, 0
      %p55 = por %p53, %p54
      %p56 = scmp.ne.s32.totalorder %s42, %s43
      %p57 = scmp.eq.s32.totalorder %s35, 4
      %p58 = por %p56, %p57
      %p60 = scmp.ne.s32.totalorder %s43, %s59
      %p61 = scmp.eq.s32.totalorder %s35, 0
      %p62 = por %p60, %p61
      %s64 = sadd.s32 %s63, 1
      %p67 = scmp.eq.s32.totalorder %s29, 4
      %p68 = scmp.ne.s32.totalorder %s63, %s65
      %p69 = scmp.eq.s32.totalorder %s29, 0
      %p70 = por %p68, %p69
      %p71 = scmp.ne.s32.totalorder %s63, %s65
      %p72 = scmp.eq.s32.totalorder %s34, 4
      %p73 = por %p71, %p72
      %p74 = scmp.ne.s32.totalorder %s65, %s66
      %p75 = scmp.eq.s32.totalorder %s34, 0
      %p76 = por %p74, %p75
      %p77 = scmp.ne.s32.totalorder %s65, %s66
      %p78 = scmp.eq.s32.totalorder %s35, 4
      %p79 = por %p77, %p78
      %p81 = scmp.ne.s32.totalorder %s66, %s80
      %p82 = scmp.eq.s32.totalorder %s35, 0
      %p83 = por %p81, %p82
      %s85 = sadd.s32 %s84, 1
      %p88 = scmp.eq.s32.totalorder %s29, 4
      %p89 = scmp.ne.s32.totalorder %s84, %s86
      %p90 = scmp.eq.s32.totalorder %s29, 0
      %p91 = por %p89, %p90
      %p92 = scmp.ne.s32.totalorder %s84, %s86
      %p93 = scmp.eq.s32.totalorder %s34, 4
      %p94 = por %p92, %p93
      %p95 = scmp.ne.s32.totalorder %s86, %s87
      %p96 = scmp.eq.s32.totalorder %s34, 0
      %p97 = por %p95, %p96
      %p98 = scmp.ne.s32.totalorder %s86, %s87
      %p99 = scmp.eq.s32.totalorder %s35, 4
      %p100 = por %p98, %p99
      %p102 = scmp.ne.s32.totalorder %s87, %s101
      %p103 = scmp.eq.s32.totalorder %s35, 0
      %p104 = por %p102, %p103
      %s106 = sadd.s32 %s105, 1
      %p109 = scmp.eq.s32.totalorder %s29, 4
      %p110 = scmp.ne.s32.totalorder %s105, %s107
      %p111 = scmp.eq.s32.totalorder %s29, 0
      %p112 = por %p110, %p111
      %p113 = scmp.ne.s32.totalorder %s105, %s107
      %p114 = scmp.eq.s32.totalorder %s34, 4
      %p115 = por %p113, %p114
      %p116 = scmp.ne.s32.totalorder %s107, %s108
      %p117 = scmp.eq.s32.totalorder %s34, 0
      %p118 = por %p116, %p117
      %p119 = scmp.ne.s32.totalorder %s107, %s108
      %p120 = scmp.eq.s32.totalorder %s35, 4
      %p121 = por %p119, %p120
      %p123 = scmp.ne.s32.totalorder %s108, %s122
      %p124 = scmp.eq.s32.totalorder %s35, 0
      %p125 = por %p123, %p124
      %s127 = sadd.s32 %s126, 1
      %p130 = scmp.eq.s32.totalorder %s29, 4
      %p131 = scmp.ne.s32.totalorder %s126, %s128
      %p132 = scmp.eq.s32.totalorder %s29, 0
      %p133 = por %p131, %p132
      %p134 = scmp.ne.s32.totalorder %s126, %s128
      %p135 = scmp.eq.s32.totalorder %s34, 4
      %p136 = por %p134, %p135
      %p137 = scmp.ne.s32.totalorder %s128, %s129
      %p138 = scmp.eq.s32.totalorder %s34, 0
      %p139 = por %p137, %p138
      %p140 = scmp.ne.s32.totalorder %s128, %s129
      %p141 = scmp.eq.s32.totalorder %s35, 4
      %p142 = por %p140, %p141
      %p144 = scmp.ne.s32.totalorder %s129, %s143
      %p145 = scmp.eq.s32.totalorder %s35, 0
      %p146 = por %p144, %p145
      %s148 = sadd.s32 %s147, 1
      %p151 = scmp.eq.s32.totalorder %s29, 4
      %p152 = scmp.ne.s32.totalorder %s147, %s149
      %p153 = scmp.eq.s32.totalorder %s29, 0
      %p154 = por %p152, %p153
      %p155 = scmp.ne.s32.totalorder %s147, %s149
      %p156 = scmp.eq.s32.totalorder %s34, 4
      %p157 = por %p155, %p156
      %p158 = scmp.ne.s32.totalorder %s149, %s150
      %p159 = scmp.eq.s32.totalorder %s34, 0
      %p160 = por %p158, %p159
      %p161 = scmp.ne.s32.totalorder %s149, %s150
      %p162 = scmp.eq.s32.totalorder %s35, 4
      %p163 = por %p161, %p162
      %p165 = scmp.ne.s32.totalorder %s150, %s164
      %p166 = scmp.eq.s32.totalorder %s35, 0
      %p167 = por %p165, %p166
      %s169 = sadd.s32 %s168, 1
      %p172 = scmp.eq.s32.totalorder %s29, 4
      %p173 = scmp.ne.s32.totalorder %s168, %s170
      %p174 = scmp.eq.s32.totalorder %s29, 0
      %p175 = por %p173, %p174
      %p176 = scmp.ne.s32.totalorder %s168, %s170
      %p177 = scmp.eq.s32.totalorder %s34, 4
      %p178 = por %p176, %p177
      %p179 = scmp.ne.s32.totalorder %s170, %s171
      %p180 = scmp.eq.s32.totalorder %s34, 0
      %p181 = por %p179, %p180
      %p182 = scmp.ne.s32.totalorder %s170, %s171
      %p183 = scmp.eq.s32.totalorder %s35, 4
      %p184 = por %p182, %p183
      %p186 = scmp.ne.s32.totalorder %s171, %s185
      %p187 = scmp.eq.s32.totalorder %s35, 0
      %p188 = por %p186, %p187
      %s190 = sadd.s32 %s189, 1
      %p193 = scmp.eq.s32.totalorder %s29, 4
      %p194 = scmp.ne.s32.totalorder %s189, %s191
      %p195 = scmp.eq.s32.totalorder %s29, 0
      %p196 = por %p194, %p195
      %p197 = scmp.ne.s32.totalorder %s189, %s191
      %p198 = scmp.eq.s32.totalorder %s34, 4
      %p199 = por %p197, %p198
      %p200 = scmp.ne.s32.totalorder %s191, %s192
      %p201 = scmp.eq.s32.totalorder %s34, 0
      %p202 = por %p200, %p201
      %p203 = scmp.ne.s32.totalorder %s191, %s192
      %p204 = scmp.eq.s32.totalorder %s35, 4
      %p205 = por %p203, %p204
      %p207 = scmp.ne.s32.totalorder %s192, %s206
      %p208 = scmp.eq.s32.totalorder %s35, 0
      %p209 = por %p207, %p208
      %s211 = sadd.s32 %s210, 1
      %p214 = scmp.eq.s32.totalorder %s29, 4
      %p215 = scmp.ne.s32.totalorder %s210, %s212
      %p216 = scmp.eq.s32.totalorder %s29, 0
      %p217 = por %p215, %p216
      %p218 = scmp.ne.s32.totalorder %s210, %s212
      %p219 = scmp.eq.s32.totalorder %s34, 4
      %p220 = por %p218, %p219
      %p221 = scmp.ne.s32.totalorder %s212, %s213
      %p222 = scmp.eq.s32.totalorder %s34, 0
      %p223 = por %p221, %p222
      %p224 = scmp.ne.s32.totalorder %s212, %s213
      %p225 = scmp.eq.s32.totalorder %s35, 4
      %p226 = por %p224, %p225
      %p228 = scmp.ne.s32.totalorder %s213, %s227
      %p229 = scmp.eq.s32.totalorder %s35, 0
      %p230 = por %p228, %p229
      %s231 = ssub.s32 %s29, %s36
      %p232 = scmp.eq.s32.totalorder %s231, 0
      %s234 = sadd.s32 %s233, 1
      %s235 = scalar_select %p232, %s233, %s234
      %p238 = pneg %p232
      %p239 = scmp.eq.s32.totalorder %s29, 4
      %p240 = por %p238, %p239
      %p241 = scmp.ne.s32.totalorder %s233, %s236
      %p242 = scmp.eq.s32.totalorder %s29, 0
      %p243 = por %p241, %p242
      %p244 = scmp.ne.s32.totalorder %s233, %s236
      %p245 = scmp.eq.s32.totalorder %s34, 4
      %p246 = por %p244, %p245
      %p247 = scmp.ne.s32.totalorder %s236, %s237
      %p248 = scmp.eq.s32.totalorder %s34, 0
      %p249 = por %p247, %p248
      %p250 = scmp.ne.s32.totalorder %s236, %s237
      %p251 = scmp.eq.s32.totalorder %s35, 4
      %p252 = por %p250, %p251
      %p254 = scmp.ne.s32.totalorder %s237, %s253
      %p255 = scmp.eq.s32.totalorder %s35, 0
      %p256 = por %p254, %p255
      %s257 = ssub.s32 %s29, %s36
      %p258 = scmp.eq.s32.totalorder %s257, 0
      %s260 = sadd.s32 %s259, 1
      %s261 = scalar_select %p258, %s259, %s260
      %p264 = pneg %p258
      %p265 = scmp.eq.s32.totalorder %s29, 4
      %p266 = por %p264, %p265
      %p267 = scmp.ne.s32.totalorder %s259, %s262
      %p268 = scmp.eq.s32.totalorder %s29, 0
      %p269 = por %p267, %p268
      %p270 = scmp.ne.s32.totalorder %s259, %s262
      %p271 = scmp.eq.s32.totalorder %s34, 4
      %p272 = por %p270, %p271
      %p273 = scmp.ne.s32.totalorder %s262, %s263
      %p274 = scmp.eq.s32.totalorder %s34, 0
      %p275 = por %p273, %p274
      %p276 = scmp.ne.s32.totalorder %s262, %s263
      %p277 = scmp.eq.s32.totalorder %s35, 4
      %p278 = por %p276, %p277
      %p280 = scmp.ne.s32.totalorder %s263, %s279
      %p281 = scmp.eq.s32.totalorder %s35, 0
      %p282 = por %p280, %p281
      %p283 = scmp.le.s32.totalorder 1, %s29
      %p284 = scmp.lt.s32.totalorder %s29, 6
      %p285 = pnand %p283, %p284
      %p286 = pneg %p285
      // Predicated region
      $region9: #{tpu_custom_call.1} parent=5 // pred_check
        _
      $region10: #{tpu_custom_call.1} parent=5 // pred_check_branch
        %288 = sbr.rel (%p285) target = $region12
      $region11: #{tpu_custom_call.1} parent=5 // pred_region
        %s289 = ssub.s32 %s29, 1
        // Predicated region
        $region13: #{tpu_custom_call.1} parent=11 // pred_check
          %p290 = pneg %p76
        $region14: #{tpu_custom_call.1} parent=11 // pred_check_branch
          %292 = sbr.rel (%p290) target = $region16
        $region15: #{tpu_custom_call.1} parent=11 // pred_region
          %294 = vsyncadd [#allocation7], 0
          %s296 = sshll.u32 %s1, 4
          %s297 = int_to_ptr.hbm [resolvable:$true] %s296
          %s298 = sshll.u32 [#allocation6], 4
          %s299 = int_to_ptr.vmem [resolvable:$true] %s298
          %301 = dma.hbm_to_vmem [thread:$0]  %s297, 128, %s299, [#allocation7]
        $region16: #{tpu_custom_call.1} parent=11 // pred_fallthru
          _
        // Predicated region
        $region17: #{tpu_custom_call.1} parent=11 // pred_check
          %p302 = pneg %p97
        $region18: #{tpu_custom_call.1} parent=11 // pred_check_branch
          %304 = sbr.rel (%p302) target = $region20
        $region19: #{tpu_custom_call.1} parent=11 // pred_region
          %306 = vsyncadd [#allocation7], 0
          %s307 = sshll.u32 %s2, 4
          %s308 = int_to_ptr.hbm [resolvable:$true] %s307
          %s309 = sshll.u32 [#allocation8], 4
          %s310 = int_to_ptr.vmem [resolvable:$true] %s309
          %315 = dma.hbm_to_vmem [thread:$0]  %s308, 1024, %s310, [#allocation7], 128, 128, 8
        $region20: #{tpu_custom_call.1} parent=11 // pred_fallthru
          _
        // Predicated region
        $region21: #{tpu_custom_call.1} parent=11 // pred_check
          %p316 = pneg %p118
        $region22: #{tpu_custom_call.1} parent=11 // pred_check_branch
          %318 = sbr.rel (%p316) target = $region24
        $region23: #{tpu_custom_call.1} parent=11 // pred_region
          %320 = vsyncadd [#allocation10], 0
          %s321 = sshll.u32 %s3, 4
          %s322 = int_to_ptr.hbm [resolvable:$true] %s321
          %s323 = sshll.u32 [#allocation9], 4
          %s324 = int_to_ptr.vmem [resolvable:$true] %s323
          %329 = dma.hbm_to_vmem [thread:$0]  %s322, 6144, %s324, [#allocation10], 384, 384, 24
        $region24: #{tpu_custom_call.1} parent=11 // pred_fallthru
          _
        // Predicated region
        $region25: #{tpu_custom_call.1} parent=11 // pred_check
          %p330 = pneg %p139
        $region26: #{tpu_custom_call.1} parent=11 // pred_check_branch
          %332 = sbr.rel (%p330) target = $region28
        $region27: #{tpu_custom_call.1} parent=11 // pred_region
          %334 = vsyncadd [#allocation10], 0
          %s335 = sshll.u32 %s4, 4
          %s336 = int_to_ptr.hbm [resolvable:$true] %s335
          %s337 = sshll.u32 [#allocation11], 4
          %s338 = int_to_ptr.vmem [resolvable:$true] %s337
          %343 = dma.hbm_to_vmem [thread:$0]  %s336, 6144, %s338, [#allocation10], 384, 384, 24
        $region28: #{tpu_custom_call.1} parent=11 // pred_fallthru
          _
        // Predicated region
        $region29: #{tpu_custom_call.1} parent=11 // pred_check
          %p344 = pneg %p160
        $region30: #{tpu_custom_call.1} parent=11 // pred_check_branch
          %346 = sbr.rel (%p344) target = $region32
        $region31: #{tpu_custom_call.1} parent=11 // pred_region
          _
        $region32: #{tpu_custom_call.1} parent=11 // pred_fallthru
          _
        // Predicated region
        $region33: #{tpu_custom_call.1} parent=11 // pred_check
          %p347 = pneg %p181
        $region34: #{tpu_custom_call.1} parent=11 // pred_check_branch
          %349 = sbr.rel (%p347) target = $region36
        $region35: #{tpu_custom_call.1} parent=11 // pred_region
          %351 = vsyncadd [#allocation13], 0
          %s353 = sshll.u32 %s6, 4
          %s354 = int_to_ptr.hbm [resolvable:$true] %s353
          %s355 = sshll.u32 [#allocation12], 4
          %s356 = int_to_ptr.vmem [resolvable:$true] %s355
          %358 = dma.hbm_to_vmem [thread:$0]  %s354, 48, %s356, [#allocation13]
        $region36: #{tpu_custom_call.1} parent=11 // pred_fallthru
          _
        // Predicated region
        $region37: #{tpu_custom_call.1} parent=11 // pred_check
          %p359 = pneg %p202
        $region38: #{tpu_custom_call.1} parent=11 // pred_check_branch
          %361 = sbr.rel (%p359) target = $region40
        $region39: #{tpu_custom_call.1} parent=11 // pred_region
          %363 = vsyncadd [#allocation13], 0
          %s364 = sshll.u32 %s7, 4
          %s365 = int_to_ptr.hbm [resolvable:$true] %s364
          %s366 = sshll.u32 [#allocation14], 4
          %s367 = int_to_ptr.vmem [resolvable:$true] %s366
          %372 = dma.hbm_to_vmem [thread:$0]  %s365, 4096, %s367, [#allocation13], 128, 128, 8
        $region40: #{tpu_custom_call.1} parent=11 // pred_fallthru
          _
        // Predicated region
        $region41: #{tpu_custom_call.1} parent=11 // pred_check
          %p373 = pneg %p223
        $region42: #{tpu_custom_call.1} parent=11 // pred_check_branch
          %375 = sbr.rel (%p373) target = $region44
        $region43: #{tpu_custom_call.1} parent=11 // pred_region
          _
        $region44: #{tpu_custom_call.1} parent=11 // pred_fallthru
          _
      $region12: #{tpu_custom_call.1} parent=5 // pred_fallthru
        _
      %p376 = scmp.lt.s32.totalorder %s29, 5
      // Predicated region
      $region45: #{tpu_custom_call.1} parent=5 // pred_check
        %p377 = pneg %p376
      $region46: #{tpu_custom_call.1} parent=5 // pred_check_branch
        %379 = sbr.rel (%p377) target = $region48
      $region47: #{tpu_custom_call.1} parent=5 // pred_region
        // Predicated region
        $region49: #{tpu_custom_call.1} parent=47 // pred_check
          %p380 = pneg %p49
        $region50: #{tpu_custom_call.1} parent=47 // pred_check_branch
          %382 = sbr.rel (%p380) target = $region52
        $region51: #{tpu_custom_call.1} parent=47 // pred_region
          %s383 = sand.u32 %s39, 1
          %s384 = scalar_lea.sflag [#allocation4], %s383
          %s385 = sand.u32 %s39, 1
          %s386 = smul.addr %s385, 8
          %s387 = scalar_lea.vmem [#allocation3], %s386
          %389 = vsyncadd %s384, 0
          %s390 = smul.addr %s29, 8
          %s391 = scalar_lea.hbm %s0, %s390
          %s393 = sshll.u32 %s391, 4
          %s394 = int_to_ptr.hbm [resolvable:$true] %s393
          %s395 = sshll.u32 %s387, 4
          %s396 = int_to_ptr.vmem [resolvable:$true] %s395
          %398 = dma.hbm_to_vmem [thread:$0]  %s394, 128, %s396, %s384
        $region52: #{tpu_custom_call.1} parent=47 // pred_fallthru
          _
      $region48: #{tpu_custom_call.1} parent=5 // pred_fallthru
        _
      %p399 = scmp.le.s32.totalorder 1, %s29
      %p400 = scmp.lt.s32.totalorder %s29, 6
      %p401 = pnand %p399, %p400
      %p402 = pneg %p401
      // Predicated region
      $region53: #{tpu_custom_call.1} parent=5 // pred_check
        _
      $region54: #{tpu_custom_call.1} parent=5 // pred_check_branch
        %404 = sbr.rel (%p401) target = $region56
      $region55: #{tpu_custom_call.1} parent=5 // pred_region
        %s405 = ssub.s32 %s29, 1
        %s406 = sand.u32 %s42, 1
        %s407 = scalar_lea.sflag [#allocation4], %s406
        %s408 = sand.u32 %s42, 1
        %s409 = smul.addr %s408, 8
        %s410 = scalar_lea.vmem [#allocation3], %s409
        // Predicated region
        $region57: #{tpu_custom_call.1} parent=55 // pred_check
          %p411 = pneg %p55
        $region58: #{tpu_custom_call.1} parent=55 // pred_check_branch
          %413 = sbr.rel (%p411) target = $region60
        $region59: #{tpu_custom_call.1} parent=55 // pred_region
          %415 = dma.done %s407, 128
        $region60: #{tpu_custom_call.1} parent=55 // pred_fallthru
          _
        // Predicated region
        $region61: #{tpu_custom_call.1} parent=55 // pred_check
          %p416 = pneg %p76
        $region62: #{tpu_custom_call.1} parent=55 // pred_check_branch
          %418 = sbr.rel (%p416) target = $region64
        $region63: #{tpu_custom_call.1} parent=55 // pred_region
          %420 = dma.done [#allocation7], 128
        $region64: #{tpu_custom_call.1} parent=55 // pred_fallthru
          _
        // Predicated region
        $region65: #{tpu_custom_call.1} parent=55 // pred_check
          %p421 = pneg %p97
        $region66: #{tpu_custom_call.1} parent=55 // pred_check_branch
          %423 = sbr.rel (%p421) target = $region68
        $region67: #{tpu_custom_call.1} parent=55 // pred_region
          %425 = dma.done [#allocation7], 1024
        $region68: #{tpu_custom_call.1} parent=55 // pred_fallthru
          _
        // Predicated region
        $region69: #{tpu_custom_call.1} parent=55 // pred_check
          %p426 = pneg %p118
        $region70: #{tpu_custom_call.1} parent=55 // pred_check_branch
          %428 = sbr.rel (%p426) target = $region72
        $region71: #{tpu_custom_call.1} parent=55 // pred_region
          %430 = dma.done [#allocation10], 6144
        $region72: #{tpu_custom_call.1} parent=55 // pred_fallthru
          _
        // Predicated region
        $region73: #{tpu_custom_call.1} parent=55 // pred_check
          %p431 = pneg %p139
        $region74: #{tpu_custom_call.1} parent=55 // pred_check_branch
          %433 = sbr.rel (%p431) target = $region76
        $region75: #{tpu_custom_call.1} parent=55 // pred_region
          %435 = dma.done [#allocation10], 6144
        $region76: #{tpu_custom_call.1} parent=55 // pred_fallthru
          _
        // Predicated region
        $region77: #{tpu_custom_call.1} parent=55 // pred_check
          %p436 = pneg %p181
        $region78: #{tpu_custom_call.1} parent=55 // pred_check_branch
          %438 = sbr.rel (%p436) target = $region80
        $region79: #{tpu_custom_call.1} parent=55 // pred_region
          %440 = dma.done [#allocation13], 48
        $region80: #{tpu_custom_call.1} parent=55 // pred_fallthru
          _
        // Predicated region
        $region81: #{tpu_custom_call.1} parent=55 // pred_check
          %p441 = pneg %p202
        $region82: #{tpu_custom_call.1} parent=55 // pred_check_branch
          %443 = sbr.rel (%p441) target = $region84
        $region83: #{tpu_custom_call.1} parent=55 // pred_region
          %445 = dma.done [#allocation13], 4096
        $region84: #{tpu_custom_call.1} parent=55 // pred_fallthru
          _
        %s446 = sand.u32 %s42, 1
        %s447 = scalar_lea.sflag [#allocation4], %s446
        %s448 = sand.u32 %s42, 1
        %s449 = smul.addr %s448, 8
        %s450 = scalar_lea.vmem [#allocation3], %s449
        %p451 = pneg %p55
        %p452 = pneg %p52
        %p453 = pneg %p76
        %p454 = pneg %p73
        %p455 = pneg %p97
        %p456 = pneg %p94
        %p457 = pneg %p118
        %p458 = pneg %p115
        %p459 = pneg %p139
        %p460 = pneg %p136
        %p461 = pneg %p160
        %p462 = pneg %p157
        %p463 = pneg %p181
        %p464 = pneg %p178
        %p465 = pneg %p202
        %p466 = pneg %p199
        %p467 = pneg %p223
        %p468 = pneg %p220
        %p469 = pneg %p249
        %p470 = pneg %p246
        %s471 = sand.u32 %s236, 1
        %s472 = scalar_lea.sflag [#allocation5], %s471
        %s473 = sand.u32 %s236, 1
        %s474 = smul.addr %s473, 8
        %s475 = scalar_lea.vmem [#allocation15], %s474
        %p476 = pneg %p275
        %p477 = pneg %p272
        %s478 = sand.u32 %s262, 1
        %s479 = scalar_lea.sflag [#allocation17], %s478
        %s480 = sand.u32 %s262, 1
        %s481 = smul.addr %s480, 8
        %s482 = scalar_lea.vmem [#allocation16], %s481
        %p483 = scmp.eq.s32.totalorder %s34, 0
        // Predicated region
        $region85: #{tpu_custom_call.1} parent=55 // pred_check
          %p484 = pneg %p483
        $region86: #{tpu_custom_call.1} parent=55 // pred_check_branch
          %486 = sbr.rel (%p484) target = $region88
        $region87: #{tpu_custom_call.1} parent=55 // pred_region
          %v487 = vld [vmem:[#allocation6] sm:$0xff]
          %488 = vst [vmem:[#allocation2] sm:$0xff] %v487
        $region88: #{tpu_custom_call.1} parent=55 // pred_fallthru
          _
        %v489 = vld [vmem:[%s410] sm:$0xff]
        %v490 = vld [vmem:[#allocation2] sm:$0xff]
        %v491 = vld [vmem:[#allocation9] sm:$0xff]
        %v492 = vld [vmem:[#allocation9 + $0x8] sm:$0xff]
        %v493 = vld [vmem:[#allocation9 + $0x10] sm:$0xff]
        %v494 = vld [vmem:[#allocation9 + $0x18] sm:$0xff]
        %v495 = vld [vmem:[#allocation9 + $0x20] sm:$0xff]
        %v496 = vld [vmem:[#allocation9 + $0x28] sm:$0xff]
        %v497 = vld [vmem:[#allocation9 + $0x30] sm:$0xff]
        %v498 = vld [vmem:[#allocation9 + $0x38] sm:$0xff]
        %v499 = vld [vmem:[#allocation9 + $0x40] sm:$0xff]
        %v500 = vld [vmem:[#allocation9 + $0x48] sm:$0xff]
        %v501 = vld [vmem:[#allocation9 + $0x50] sm:$0xff]
        %v502 = vld [vmem:[#allocation9 + $0x58] sm:$0xff]
        %v503 = vld [vmem:[#allocation9 + $0x60] sm:$0xff]
        %v504 = vld [vmem:[#allocation9 + $0x68] sm:$0xff]
        %v505 = vld [vmem:[#allocation9 + $0x70] sm:$0xff]
        %v506 = vld [vmem:[#allocation9 + $0x78] sm:$0xff]
        %v507 = vld [vmem:[#allocation9 + $0x80] sm:$0xff]
        %v508 = vld [vmem:[#allocation9 + $0x88] sm:$0xff]
        %v509 = vld [vmem:[#allocation9 + $0x90] sm:$0xff]
        %v510 = vld [vmem:[#allocation9 + $0x98] sm:$0xff]
        %v511 = vld [vmem:[#allocation9 + $0xa0] sm:$0xff]
        %v512 = vld [vmem:[#allocation9 + $0xa8] sm:$0xff]
        %v513 = vld [vmem:[#allocation9 + $0xb0] sm:$0xff]
        %v514 = vld [vmem:[#allocation9 + $0xb8] sm:$0xff]
        %v515 = vld [vmem:[#allocation9 + $0xc0] sm:$0xff]
        %v516 = vld [vmem:[#allocation9 + $0xc8] sm:$0xff]
        %v517 = vld [vmem:[#allocation9 + $0xd0] sm:$0xff]
        %v518 = vld [vmem:[#allocation9 + $0xd8] sm:$0xff]
        %v519 = vld [vmem:[#allocation9 + $0xe0] sm:$0xff]
        %v520 = vld [vmem:[#allocation9 + $0xe8] sm:$0xff]
        %v521 = vld [vmem:[#allocation9 + $0xf0] sm:$0xff]
        %v522 = vld [vmem:[#allocation9 + $0xf8] sm:$0xff]
        %v523 = vld [vmem:[#allocation9 + $0x100] sm:$0xff]
        %v524 = vld [vmem:[#allocation9 + $0x108] sm:$0xff]
        %v525 = vld [vmem:[#allocation9 + $0x110] sm:$0xff]
        %v526 = vld [vmem:[#allocation9 + $0x118] sm:$0xff]
        %v527 = vld [vmem:[#allocation9 + $0x120] sm:$0xff]
        %v528 = vld [vmem:[#allocation9 + $0x128] sm:$0xff]
        %v529 = vld [vmem:[#allocation9 + $0x130] sm:$0xff]
        %v530 = vld [vmem:[#allocation9 + $0x138] sm:$0xff]
        %v531 = vld [vmem:[#allocation9 + $0x140] sm:$0xff]
        %v532 = vld [vmem:[#allocation9 + $0x148] sm:$0xff]
        %v533 = vld [vmem:[#allocation9 + $0x150] sm:$0xff]
        %v534 = vld [vmem:[#allocation9 + $0x158] sm:$0xff]
        %v535 = vld [vmem:[#allocation9 + $0x160] sm:$0xff]
        %v536 = vld [vmem:[#allocation9 + $0x168] sm:$0xff]
        %v537 = vld [vmem:[#allocation9 + $0x170] sm:$0xff]
        %v538 = vld [vmem:[#allocation9 + $0x178] sm:$0xff]
        %v539 = vld [vmem:[%s5] sm:$0x7]
        %v541 = vperm.slane %v539, 0
        %v542 = vperm.slane %v539, 1
        %v543 = vperm.slane %v539, 2
        %547 = vmatpush.msra.mxu0 %v536
        %548 = vmatpush.msra.mxu0 %v533
        %549 = vmatpush.msra.mxu0 %v530
        %550 = vmatpush.msra.mxu0 %v527
        %551 = vmatpush.msra.mxu0 %v524
        %552 = vmatpush.msra.mxu0 %v521
        %553 = vmatpush.msra.mxu0 %v518
        %554 = vmatpush.msra.mxu0 %v515
        %555 = vmatpush.msra.mxu0 %v512
        %556 = vmatpush.msra.mxu0 %v509
        %557 = vmatpush.msra.mxu0 %v506
        %558 = vmatpush.msra.mxu0 %v503
        %559 = vmatpush.msra.mxu0 %v500
        %560 = vmatpush.msra.mxu0 %v497
        %561 = vmatpush.msra.mxu0 %v494
        %562 = vmatpush.msra.mxu0 %v491
        %563 = vmatmul.f32.gmra.mxu0 %v489
        %v564 = vpop.f32.mrf.mxu0
        %v565 = vadd.f32 %v541, %v564
        %566 = vdwg.mxu0
        %567 = vmatpush.msra.mxu0 %v537
        %568 = vmatpush.msra.mxu0 %v534
        %569 = vmatpush.msra.mxu0 %v531
        %570 = vmatpush.msra.mxu0 %v528
        %571 = vmatpush.msra.mxu0 %v525
        %572 = vmatpush.msra.mxu0 %v522
        %573 = vmatpush.msra.mxu0 %v519
        %574 = vmatpush.msra.mxu0 %v516
        %575 = vmatpush.msra.mxu0 %v513
        %576 = vmatpush.msra.mxu0 %v510
        %577 = vmatpush.msra.mxu0 %v507
        %578 = vmatpush.msra.mxu0 %v504
        %579 = vmatpush.msra.mxu0 %v501
        %580 = vmatpush.msra.mxu0 %v498
        %581 = vmatpush.msra.mxu0 %v495
        %582 = vmatpush.msra.mxu0 %v492
        %583 = vmatmul.f32.gmra.mxu0 %v489
        %v584 = vpop.f32.mrf.mxu0
        %v585 = vadd.f32 %v542, %v584
        %586 = vdwg.mxu0
        %587 = vmatpush.msra.mxu0 %v538
        %588 = vmatpush.msra.mxu0 %v535
        %589 = vmatpush.msra.mxu0 %v532
        %590 = vmatpush.msra.mxu0 %v529
        %591 = vmatpush.msra.mxu0 %v526
        %592 = vmatpush.msra.mxu0 %v523
        %593 = vmatpush.msra.mxu0 %v520
        %594 = vmatpush.msra.mxu0 %v517
        %595 = vmatpush.msra.mxu0 %v514
        %596 = vmatpush.msra.mxu0 %v511
        %597 = vmatpush.msra.mxu0 %v508
        %598 = vmatpush.msra.mxu0 %v505
        %599 = vmatpush.msra.mxu0 %v502
        %600 = vmatpush.msra.mxu0 %v499
        %601 = vmatpush.msra.mxu0 %v496
        %602 = vmatpush.msra.mxu0 %v493
        %603 = vmatmul.f32.gmra.mxu0 %v489
        %v604 = vpop.f32.mrf.mxu0
        %v605 = vadd.f32 %v543, %v604
        %606 = vdwg.mxu0
        %v607 = vld [vmem:[#allocation11] sm:$0xff]
        %v608 = vld [vmem:[#allocation11 + $0x8] sm:$0xff]
        %v609 = vld [vmem:[#allocation11 + $0x10] sm:$0xff]
        %v610 = vld [vmem:[#allocation11 + $0x18] sm:$0xff]
        %v611 = vld [vmem:[#allocation11 + $0x20] sm:$0xff]
        %v612 = vld [vmem:[#allocation11 + $0x28] sm:$0xff]
        %v613 = vld [vmem:[#allocation11 + $0x30] sm:$0xff]
        %v614 = vld [vmem:[#allocation11 + $0x38] sm:$0xff]
        %v615 = vld [vmem:[#allocation11 + $0x40] sm:$0xff]
        %v616 = vld [vmem:[#allocation11 + $0x48] sm:$0xff]
        %v617 = vld [vmem:[#allocation11 + $0x50] sm:$0xff]
        %v618 = vld [vmem:[#allocation11 + $0x58] sm:$0xff]
        %v619 = vld [vmem:[#allocation11 + $0x60] sm:$0xff]
        %v620 = vld [vmem:[#allocation11 + $0x68] sm:$0xff]
        %v621 = vld [vmem:[#allocation11 + $0x70] sm:$0xff]
        %v622 = vld [vmem:[#allocation11 + $0x78] sm:$0xff]
        %v623 = vld [vmem:[#allocation11 + $0x80] sm:$0xff]
        %v624 = vld [vmem:[#allocation11 + $0x88] sm:$0xff]
        %v625 = vld [vmem:[#allocation11 + $0x90] sm:$0xff]
        %v626 = vld [vmem:[#allocation11 + $0x98] sm:$0xff]
        %v627 = vld [vmem:[#allocation11 + $0xa0] sm:$0xff]
        %v628 = vld [vmem:[#allocation11 + $0xa8] sm:$0xff]
        %v629 = vld [vmem:[#allocation11 + $0xb0] sm:$0xff]
        %v630 = vld [vmem:[#allocation11 + $0xb8] sm:$0xff]
        %v631 = vld [vmem:[#allocation11 + $0xc0] sm:$0xff]
        %v632 = vld [vmem:[#allocation11 + $0xc8] sm:$0xff]
        %v633 = vld [vmem:[#allocation11 + $0xd0] sm:$0xff]
        %v634 = vld [vmem:[#allocation11 + $0xd8] sm:$0xff]
        %v635 = vld [vmem:[#allocation11 + $0xe0] sm:$0xff]
        %v636 = vld [vmem:[#allocation11 + $0xe8] sm:$0xff]
        %v637 = vld [vmem:[#allocation11 + $0xf0] sm:$0xff]
        %v638 = vld [vmem:[#allocation11 + $0xf8] sm:$0xff]
        %v639 = vld [vmem:[#allocation11 + $0x100] sm:$0xff]
        %v640 = vld [vmem:[#allocation11 + $0x108] sm:$0xff]
        %v641 = vld [vmem:[#allocation11 + $0x110] sm:$0xff]
        %v642 = vld [vmem:[#allocation11 + $0x118] sm:$0xff]
        %v643 = vld [vmem:[#allocation11 + $0x120] sm:$0xff]
        %v644 = vld [vmem:[#allocation11 + $0x128] sm:$0xff]
        %v645 = vld [vmem:[#allocation11 + $0x130] sm:$0xff]
        %v646 = vld [vmem:[#allocation11 + $0x138] sm:$0xff]
        %v647 = vld [vmem:[#allocation11 + $0x140] sm:$0xff]
        %v648 = vld [vmem:[#allocation11 + $0x148] sm:$0xff]
        %v649 = vld [vmem:[#allocation11 + $0x150] sm:$0xff]
        %v650 = vld [vmem:[#allocation11 + $0x158] sm:$0xff]
        %v651 = vld [vmem:[#allocation11 + $0x160] sm:$0xff]
        %v652 = vld [vmem:[#allocation11 + $0x168] sm:$0xff]
        %v653 = vld [vmem:[#allocation11 + $0x170] sm:$0xff]
        %v654 = vld [vmem:[#allocation11 + $0x178] sm:$0xff]
        %v655 = vld [vmem:[#allocation12] sm:$0x7]
        %v657 = vperm.slane %v655, 0
        %v658 = vperm.slane %v655, 1
        %v659 = vperm.slane %v655, 2
        %663 = vmatpush.msra.mxu0 %v652
        %664 = vmatpush.msra.mxu0 %v649
        %665 = vmatpush.msra.mxu0 %v646
        %666 = vmatpush.msra.mxu0 %v643
        %667 = vmatpush.msra.mxu0 %v640
        %668 = vmatpush.msra.mxu0 %v637
        %669 = vmatpush.msra.mxu0 %v634
        %670 = vmatpush.msra.mxu0 %v631
        %671 = vmatpush.msra.mxu0 %v628
        %672 = vmatpush.msra.mxu0 %v625
        %673 = vmatpush.msra.mxu0 %v622
        %674 = vmatpush.msra.mxu0 %v619
        %675 = vmatpush.msra.mxu0 %v616
        %676 = vmatpush.msra.mxu0 %v613
        %677 = vmatpush.msra.mxu0 %v610
        %678 = vmatpush.msra.mxu0 %v607
        %679 = vmatmul.f32.gmra.mxu0 %v490
        %v680 = vpop.f32.mrf.mxu0
        %v681 = vadd.f32 %v657, %v680
        %682 = vdwg.mxu0
        %683 = vmatpush.msra.mxu0 %v653
        %684 = vmatpush.msra.mxu0 %v650
        %685 = vmatpush.msra.mxu0 %v647
        %686 = vmatpush.msra.mxu0 %v644
        %687 = vmatpush.msra.mxu0 %v641
        %688 = vmatpush.msra.mxu0 %v638
        %689 = vmatpush.msra.mxu0 %v635
        %690 = vmatpush.msra.mxu0 %v632
        %691 = vmatpush.msra.mxu0 %v629
        %692 = vmatpush.msra.mxu0 %v626
        %693 = vmatpush.msra.mxu0 %v623
        %694 = vmatpush.msra.mxu0 %v620
        %695 = vmatpush.msra.mxu0 %v617
        %696 = vmatpush.msra.mxu0 %v614
        %697 = vmatpush.msra.mxu0 %v611
        %698 = vmatpush.msra.mxu0 %v608
        %699 = vmatmul.f32.gmra.mxu0 %v490
        %v700 = vpop.f32.mrf.mxu0
        %v701 = vadd.f32 %v658, %v700
        %702 = vdwg.mxu0
        %703 = vmatpush.msra.mxu0 %v654
        %704 = vmatpush.msra.mxu0 %v651
        %705 = vmatpush.msra.mxu0 %v648
        %706 = vmatpush.msra.mxu0 %v645
        %707 = vmatpush.msra.mxu0 %v642
        %708 = vmatpush.msra.mxu0 %v639
        %709 = vmatpush.msra.mxu0 %v636
        %710 = vmatpush.msra.mxu0 %v633
        %711 = vmatpush.msra.mxu0 %v630
        %712 = vmatpush.msra.mxu0 %v627
        %713 = vmatpush.msra.mxu0 %v624
        %714 = vmatpush.msra.mxu0 %v621
        %715 = vmatpush.msra.mxu0 %v618
        %716 = vmatpush.msra.mxu0 %v615
        %717 = vmatpush.msra.mxu0 %v612
        %718 = vmatpush.msra.mxu0 %v609
        %719 = vmatmul.f32.gmra.mxu0 %v490
        %v720 = vpop.f32.mrf.mxu0
        %v721 = vadd.f32 %v659, %v720
        %722 = vdwg.mxu0
        %v723 = vadd.f32 %v565, %v681
        %v724 = vxor.u32 %v723, 2147483648
        %v725 = vmul.f32 %v724, 1.442695
        %v726 = vpow.pop %v725
        %v727 = vadd.f32 %v726, 1.0
        %v728 = vrcp.pop %v727
        %v729 = vmul.f32 %v727, %v728
        %v730 = vsub.f32 1.0, %v729
        %v731 = vmul.f32 %v728, %v730
        %v732 = vadd.f32 %v728, %v731
        %vm733 = vweird.f32 %v727
        %vm734 = vweird.f32 %v728
        %vm735 = vmor %vm733, %vm734
        %v736 = vsel %vm735, %v728, %v732
        %v737 = vand.u32 2147483647, %v727
        %vm738 = vcmp.eq.f32.partialorder %v737, 8.507059e+37
        %v739 = vand.u32 %v727, 2147483648
        %v740 = vor.u32 1.1754944e-38, %v739
        %v741 = vsel %vm738, %v740, %v736
        %v742 = vmul.f32 1.0, %v741
        %v743 = vadd.f32 %v585, %v701
        %v744 = vxor.u32 %v743, 2147483648
        %v745 = vmul.f32 %v744, 1.442695
        %v746 = vpow.pop %v745
        %v747 = vadd.f32 %v746, 1.0
        %v748 = vrcp.pop %v747
        %v749 = vmul.f32 %v747, %v748
        %v750 = vsub.f32 1.0, %v749
        %v751 = vmul.f32 %v748, %v750
        %v752 = vadd.f32 %v748, %v751
        %vm753 = vweird.f32 %v747
        %vm754 = vweird.f32 %v748
        %vm755 = vmor %vm753, %vm754
        %v756 = vsel %vm755, %v748, %v752
        %v757 = vand.u32 2147483647, %v747
        %vm758 = vcmp.eq.f32.partialorder %v757, 8.507059e+37
        %v759 = vand.u32 %v747, 2147483648
        %v760 = vor.u32 1.1754944e-38, %v759
        %v761 = vsel %vm758, %v760, %v756
        %v762 = vmul.f32 1.0, %v761
        %v763 = vmul.f32 %v742, %v721
        %v764 = vadd.f32 %v605, %v763
        %v765 = vtanh.pop %v764
        %v766 = vsub.f32 1.0, %v762
        %v767 = vmul.f32 %v766, %v765
        %v768 = vmul.f32 %v762, %v490
        %v769 = vadd.f32 %v767, %v768
        %v770 = vld [vmem:[#allocation8] sm:$0xff]
        %v771 = vld [vmem:[#allocation8 + $0x8] sm:$0xff]
        %v772 = vld [vmem:[#allocation8 + $0x10] sm:$0xff]
        %v773 = vld [vmem:[#allocation8 + $0x18] sm:$0xff]
        %v774 = vld [vmem:[#allocation8 + $0x20] sm:$0xff]
        %v775 = vld [vmem:[#allocation8 + $0x28] sm:$0xff]
        %v776 = vld [vmem:[#allocation8 + $0x30] sm:$0xff]
        %v777 = vld [vmem:[#allocation8 + $0x38] sm:$0xff]
        %v779 = vrot.slane %v769, 1
        %v780 = vrot.slane %v769, 2
        %v781 = vrot.slane %v769, 3
        %v782 = vrot.slane %v769, 4
        %v783 = vrot.slane %v769, 5
        %v784 = vrot.slane %v769, 6
        %v785 = vrot.slane %v769, 7
        %v786 = vperm.slane %v769, 0
        %v787 = vperm.slane %v779, 0
        %v788 = vperm.slane %v780, 0
        %v789 = vperm.slane %v781, 0
        %v790 = vperm.slane %v782, 0
        %v791 = vperm.slane %v783, 0
        %v792 = vperm.slane %v784, 0
        %v793 = vperm.slane %v785, 0
        %v802 = vmul.f32 %v786, %v770
        %v803 = vmul.f32 %v787, %v771
        %v804 = vmul.f32 %v788, %v772
        %v805 = vmul.f32 %v789, %v773
        %v806 = vmul.f32 %v790, %v774
        %v807 = vmul.f32 %v791, %v775
        %v808 = vmul.f32 %v792, %v776
        %v809 = vmul.f32 %v793, %v777
        %810 = vadd.xlane.f32.xlu0 %v802
        %v811 = vpop.xlane.xlu0 %810
        %812 = vadd.xlane.f32.xlu0 %v803
        %v813 = vpop.xlane.xlu0 %812
        %814 = vadd.xlane.f32.xlu0 %v804
        %v815 = vpop.xlane.xlu0 %814
        %816 = vadd.xlane.f32.xlu0 %v805
        %v817 = vpop.xlane.xlu0 %816
        %818 = vadd.xlane.f32.xlu0 %v806
        %v819 = vpop.xlane.xlu0 %818
        %820 = vadd.xlane.f32.xlu0 %v807
        %v821 = vpop.xlane.xlu0 %820
        %822 = vadd.xlane.f32.xlu0 %v808
        %v823 = vpop.xlane.xlu0 %822
        %824 = vadd.xlane.f32.xlu0 %v809
        %v825 = vpop.xlane.xlu0 %824
        %v834 = vlaneseq
        %v835 = vand.u32 %v834, 127
        %v836 = vperm.slane %v811, %v835
        %v837 = vperm.slane %v813, %v835
        %v838 = vperm.slane %v815, %v835
        %v839 = vperm.slane %v817, %v835
        %v840 = vperm.slane %v819, %v835
        %v841 = vperm.slane %v821, %v835
        %v842 = vperm.slane %v823, %v835
        %v843 = vperm.slane %v825, %v835
        %vm844 = vcmask 1041409
        %v845 = vsel %vm844, %v837, %v836
        %vm846 = vcmask 1042434
        %v847 = vsel %vm846, %v838, %v845
        %vm848 = vcmask 1043459
        %v849 = vsel %vm848, %v839, %v847
        %vm850 = vcmask 1044484
        %v851 = vsel %vm850, %v840, %v849
        %vm852 = vcmask 1045509
        %v853 = vsel %vm852, %v841, %v851
        %vm854 = vcmask 1046534
        %v855 = vsel %vm854, %v842, %v853
        %vm856 = vcmask 1047559
        %v857 = vsel %vm856, %v843, %v855
        %vm859 = vcmask 64512
        %v860 = vsel %vm859, %v857, -inf
        %861 = vmax.xlane.f32.xlu0 %v860
        %v862 = vpop.xlane.xlu0 %861
        %v864 = vperm.slane %v862, 0
        %v865 = vperm.slane %v862, 1
        %v866 = vperm.slane %v862, 2
        %v867 = vperm.slane %v862, 3
        %v868 = vperm.slane %v862, 4
        %v869 = vperm.slane %v862, 5
        %v870 = vperm.slane %v862, 6
        %v871 = vperm.slane %v862, 7
        %v880 = vsub.f32 %v811, %v864
        %v881 = vsub.f32 %v813, %v865
        %v882 = vsub.f32 %v815, %v866
        %v883 = vsub.f32 %v817, %v867
        %v884 = vsub.f32 %v819, %v868
        %v885 = vsub.f32 %v821, %v869
        %v886 = vsub.f32 %v823, %v870
        %v887 = vsub.f32 %v825, %v871
        %v888 = vmul.f32 %v880, 1.442695
        %v889 = vpow.pop %v888
        %v890 = vmul.f32 %v881, 1.442695
        %v891 = vpow.pop %v890
        %v892 = vmul.f32 %v882, 1.442695
        %v893 = vpow.pop %v892
        %v894 = vmul.f32 %v883, 1.442695
        %v895 = vpow.pop %v894
        %v896 = vmul.f32 %v884, 1.442695
        %v897 = vpow.pop %v896
        %v898 = vmul.f32 %v885, 1.442695
        %v899 = vpow.pop %v898
        %v900 = vmul.f32 %v886, 1.442695
        %v901 = vpow.pop %v900
        %v902 = vmul.f32 %v887, 1.442695
        %v903 = vpow.pop %v902
        %912 = vset.pattern.permute.xlu0 0
        %913 = vperm.xlu0 %912, %v889
        %v914 = vpop.permute.xlu0 %913
        %915 = vset.pattern.permute.xlu0 0
        %916 = vperm.xlu0 %915, %v891
        %v917 = vpop.permute.xlu0 %916
        %918 = vset.pattern.permute.xlu0 0
        %919 = vperm.xlu0 %918, %v893
        %v920 = vpop.permute.xlu0 %919
        %921 = vset.pattern.permute.xlu0 0
        %922 = vperm.xlu0 %921, %v895
        %v923 = vpop.permute.xlu0 %922
        %924 = vset.pattern.permute.xlu0 0
        %925 = vperm.xlu0 %924, %v897
        %v926 = vpop.permute.xlu0 %925
        %927 = vset.pattern.permute.xlu0 0
        %928 = vperm.xlu0 %927, %v899
        %v929 = vpop.permute.xlu0 %928
        %930 = vset.pattern.permute.xlu0 0
        %931 = vperm.xlu0 %930, %v901
        %v932 = vpop.permute.xlu0 %931
        %933 = vset.pattern.permute.xlu0 0
        %934 = vperm.xlu0 %933, %v903
        %v935 = vpop.permute.xlu0 %934
        %v936 = vperm.slane %v914, %v835
        %v937 = vperm.slane %v917, %v835
        %v938 = vperm.slane %v920, %v835
        %v939 = vperm.slane %v923, %v835
        %v940 = vperm.slane %v926, %v835
        %v941 = vperm.slane %v929, %v835
        %v942 = vperm.slane %v932, %v835
        %v943 = vperm.slane %v935, %v835
        %v944 = vsel %vm844, %v937, %v936
        %v945 = vsel %vm846, %v938, %v944
        %v946 = vsel %vm848, %v939, %v945
        %v947 = vsel %vm850, %v940, %v946
        %v948 = vsel %vm852, %v941, %v947
        %v949 = vsel %vm854, %v942, %v948
        %v950 = vsel %vm856, %v943, %v949
        %v952 = vsel %vm859, %v950, 0.0
        %953 = vadd.xlane.f32.xlu0 %v952
        %v954 = vpop.xlane.xlu0 %953
        %v955 = vrcp.pop %v954
        %v957 = vperm.slane %v955, 0
        %v958 = vperm.slane %v955, 1
        %v959 = vperm.slane %v955, 2
        %v960 = vperm.slane %v955, 3
        %v961 = vperm.slane %v955, 4
        %v962 = vperm.slane %v955, 5
        %v963 = vperm.slane %v955, 6
        %v964 = vperm.slane %v955, 7
        %v973 = vmul.f32 %v889, %v957
        %v974 = vmul.f32 %v891, %v958
        %v975 = vmul.f32 %v893, %v959
        %v976 = vmul.f32 %v895, %v960
        %v977 = vmul.f32 %v897, %v961
        %v978 = vmul.f32 %v899, %v962
        %v979 = vmul.f32 %v901, %v963
        %v980 = vmul.f32 %v903, %v964
        %982 = vset.pattern.permute.xlu0 0
        %983 = vperm.xlu0 %982, %v973
        %v984 = vpop.permute.xlu0 %983
        %987 = vset.pattern.permute.xlu0 0
        %988 = vperm.xlu0 %987, %v974
        %v989 = vpop.permute.xlu0 %988
        %992 = vset.pattern.permute.xlu0 0
        %993 = vperm.xlu0 %992, %v975
        %v994 = vpop.permute.xlu0 %993
        %997 = vset.pattern.permute.xlu0 0
        %998 = vperm.xlu0 %997, %v976
        %v999 = vpop.permute.xlu0 %998
        %1002 = vset.pattern.permute.xlu0 0
        %1003 = vperm.xlu0 %1002, %v977
        %v1004 = vpop.permute.xlu0 %1003
        %1007 = vset.pattern.permute.xlu0 0
        %1008 = vperm.xlu0 %1007, %v978
        %v1009 = vpop.permute.xlu0 %1008
        %1012 = vset.pattern.permute.xlu0 0
        %1013 = vperm.xlu0 %1012, %v979
        %v1014 = vpop.permute.xlu0 %1013
        %1017 = vset.pattern.permute.xlu0 0
        %1018 = vperm.xlu0 %1017, %v980
        %v1019 = vpop.permute.xlu0 %1018
        %v1021 = vmul.f32 %v984, %v770
        %v1022 = vmul.f32 %v989, %v771
        %v1023 = vmul.f32 %v994, %v772
        %v1024 = vmul.f32 %v999, %v773
        %v1025 = vmul.f32 %v1004, %v774
        %v1026 = vmul.f32 %v1009, %v775
        %v1027 = vmul.f32 %v1014, %v776
        %v1028 = vmul.f32 %v1019, %v777
        %v1029 = vrot.slane %v1021, 4
        %v1030 = vadd.f32 %v1021, %v1029
        %v1031 = vrot.slane %v1030, 2
        %v1032 = vadd.f32 %v1030, %v1031
        %v1033 = vrot.slane %v1032, 1
        %v1034 = vadd.f32 %v1032, %v1033
        %v1035 = vrot.slane %v1022, 4
        %v1036 = vadd.f32 %v1022, %v1035
        %v1037 = vrot.slane %v1036, 2
        %v1038 = vadd.f32 %v1036, %v1037
        %v1039 = vrot.slane %v1038, 1
        %v1040 = vadd.f32 %v1038, %v1039
        %v1041 = vrot.slane %v1023, 4
        %v1042 = vadd.f32 %v1023, %v1041
        %v1043 = vrot.slane %v1042, 2
        %v1044 = vadd.f32 %v1042, %v1043
        %v1045 = vrot.slane %v1044, 1
        %v1046 = vadd.f32 %v1044, %v1045
        %v1047 = vrot.slane %v1024, 4
        %v1048 = vadd.f32 %v1024, %v1047
        %v1049 = vrot.slane %v1048, 2
        %v1050 = vadd.f32 %v1048, %v1049
        %v1051 = vrot.slane %v1050, 1
        %v1052 = vadd.f32 %v1050, %v1051
        %v1053 = vrot.slane %v1025, 4
        %v1054 = vadd.f32 %v1025, %v1053
        %v1055 = vrot.slane %v1054, 2
        %v1056 = vadd.f32 %v1054, %v1055
        %v1057 = vrot.slane %v1056, 1
        %v1058 = vadd.f32 %v1056, %v1057
        %v1059 = vrot.slane %v1026, 4
        %v1060 = vadd.f32 %v1026, %v1059
        %v1061 = vrot.slane %v1060, 2
        %v1062 = vadd.f32 %v1060, %v1061
        %v1063 = vrot.slane %v1062, 1
        %v1064 = vadd.f32 %v1062, %v1063
        %v1065 = vrot.slane %v1027, 4
        %v1066 = vadd.f32 %v1027, %v1065
        %v1067 = vrot.slane %v1066, 2
        %v1068 = vadd.f32 %v1066, %v1067
        %v1069 = vrot.slane %v1068, 1
        %v1070 = vadd.f32 %v1068, %v1069
        %v1071 = vrot.slane %v1028, 4
        %v1072 = vadd.f32 %v1028, %v1071
        %v1073 = vrot.slane %v1072, 2
        %v1074 = vadd.f32 %v1072, %v1073
        %v1075 = vrot.slane %v1074, 1
        %v1076 = vadd.f32 %v1074, %v1075
        %v1085 = vsel %vm844, %v1040, %v1034
        %v1086 = vsel %vm846, %v1046, %v1085
        %v1087 = vsel %vm848, %v1052, %v1086
        %v1088 = vsel %vm850, %v1058, %v1087
        %v1089 = vsel %vm852, %v1064, %v1088
        %v1090 = vsel %vm854, %v1070, %v1089
        %v1091 = vsel %vm856, %v1076, %v1090
        %v1093 = vld [vmem:[#allocation14] sm:$0xff]
        %v1094 = vld [vmem:[#allocation14 + $0x8] sm:$0xff]
        %v1095 = vld [vmem:[#allocation14 + $0x10] sm:$0xff]
        %v1096 = vld [vmem:[#allocation14 + $0x18] sm:$0xff]
        %v1097 = vld [vmem:[#allocation14 + $0x20] sm:$0xff]
        %v1098 = vld [vmem:[#allocation14 + $0x28] sm:$0xff]
        %v1099 = vld [vmem:[#allocation14 + $0x30] sm:$0xff]
        %v1100 = vld [vmem:[#allocation14 + $0x38] sm:$0xff]
        %v1101 = vld [vmem:[#allocation14 + $0x40] sm:$0xff]
        %v1102 = vld [vmem:[#allocation14 + $0x48] sm:$0xff]
        %v1103 = vld [vmem:[#allocation14 + $0x50] sm:$0xff]
        %v1104 = vld [vmem:[#allocation14 + $0x58] sm:$0xff]
        %v1105 = vld [vmem:[#allocation14 + $0x60] sm:$0xff]
        %v1106 = vld [vmem:[#allocation14 + $0x68] sm:$0xff]
        %v1107 = vld [vmem:[#allocation14 + $0x70] sm:$0xff]
        %v1108 = vld [vmem:[#allocation14 + $0x78] sm:$0xff]
        %v1109 = vld [vmem:[#allocation14 + $0x80] sm:$0xff]
        %v1110 = vld [vmem:[#allocation14 + $0x88] sm:$0xff]
        %v1111 = vld [vmem:[#allocation14 + $0x90] sm:$0xff]
        %v1112 = vld [vmem:[#allocation14 + $0x98] sm:$0xff]
        %v1113 = vld [vmem:[#allocation14 + $0xa0] sm:$0xff]
        %v1114 = vld [vmem:[#allocation14 + $0xa8] sm:$0xff]
        %v1115 = vld [vmem:[#allocation14 + $0xb0] sm:$0xff]
        %v1116 = vld [vmem:[#allocation14 + $0xb8] sm:$0xff]
        %v1117 = vld [vmem:[#allocation14 + $0xc0] sm:$0xff]
        %v1118 = vld [vmem:[#allocation14 + $0xc8] sm:$0xff]
        %v1119 = vld [vmem:[#allocation14 + $0xd0] sm:$0xff]
        %v1120 = vld [vmem:[#allocation14 + $0xd8] sm:$0xff]
        %v1121 = vld [vmem:[#allocation14 + $0xe0] sm:$0xff]
        %v1122 = vld [vmem:[#allocation14 + $0xe8] sm:$0xff]
        %v1123 = vld [vmem:[#allocation14 + $0xf0] sm:$0xff]
        %v1124 = vld [vmem:[#allocation14 + $0xf8] sm:$0xff]
        %v1125 = vld [vmem:[%s8] sm:$0x1]
        %v1127 = vperm.slane %v1125, 0
        %1129 = vmatpush.msra.mxu0 %v1108
        %1130 = vmatpush.msra.mxu0 %v1107
        %1131 = vmatpush.msra.mxu0 %v1106
        %1132 = vmatpush.msra.mxu0 %v1105
        %1133 = vmatpush.msra.mxu0 %v1104
        %1134 = vmatpush.msra.mxu0 %v1103
        %1135 = vmatpush.msra.mxu0 %v1102
        %1136 = vmatpush.msra.mxu0 %v1101
        %1137 = vmatpush.msra.mxu0 %v1100
        %1138 = vmatpush.msra.mxu0 %v1099
        %1139 = vmatpush.msra.mxu0 %v1098
        %1140 = vmatpush.msra.mxu0 %v1097
        %1141 = vmatpush.msra.mxu0 %v1096
        %1142 = vmatpush.msra.mxu0 %v1095
        %1143 = vmatpush.msra.mxu0 %v1094
        %1144 = vmatpush.msra.mxu0 %v1093
        %1145 = vmatmul.f32.gmra.mxu0 %v769
        %v1146 = vpop.f32.mrf.mxu0
        %v1147 = vadd.f32 %v1127, %v1146
        %1148 = vdwg.mxu0
        %1149 = vmatpush.msra.mxu0 %v1124
        %1150 = vmatpush.msra.mxu0 %v1123
        %1151 = vmatpush.msra.mxu0 %v1122
        %1152 = vmatpush.msra.mxu0 %v1121
        %1153 = vmatpush.msra.mxu0 %v1120
        %1154 = vmatpush.msra.mxu0 %v1119
        %1155 = vmatpush.msra.mxu0 %v1118
        %1156 = vmatpush.msra.mxu0 %v1117
        %1157 = vmatpush.msra.mxu0 %v1116
        %1158 = vmatpush.msra.mxu0 %v1115
        %1159 = vmatpush.msra.mxu0 %v1114
        %1160 = vmatpush.msra.mxu0 %v1113
        %1161 = vmatpush.msra.mxu0 %v1112
        %1162 = vmatpush.msra.mxu0 %v1111
        %1163 = vmatpush.msra.mxu0 %v1110
        %1164 = vmatpush.msra.mxu0 %v1109
        %1165 = vmatmul.f32.gmra.mxu0 %v1091
        %v1166 = vpop.f32.mrf.mxu0
        %v1167 = vadd.f32 %v1147, %v1166
        %1168 = vdwg.mxu0
        %v1169 = vtanh.pop %v1167
        %1170 = vst [vmem:[%s475] sm:$0xff] %v1169
        %1171 = vst [vmem:[%s482] sm:$0xff] %v769
        %1172 = vst [vmem:[#allocation2] sm:$0xff] %v769
        %s1173 = sand.u32 %s236, 1
        %s1174 = scalar_lea.sflag [#allocation5], %s1173
        %s1175 = sand.u32 %s236, 1
        %s1176 = smul.addr %s1175, 8
        %s1177 = scalar_lea.vmem [#allocation15], %s1176
        %s1178 = sand.u32 %s262, 1
        %s1179 = scalar_lea.sflag [#allocation17], %s1178
        %s1180 = sand.u32 %s262, 1
        %s1181 = smul.addr %s1180, 8
        %s1182 = scalar_lea.vmem [#allocation16], %s1181
        // Predicated region
        $region89: #{tpu_custom_call.1} parent=55 // pred_check
          %p1183 = pneg %p246
        $region90: #{tpu_custom_call.1} parent=55 // pred_check_branch
          %1185 = sbr.rel (%p1183) target = $region92
        $region91: #{tpu_custom_call.1} parent=55 // pred_region
          %1187 = vsyncadd %s1174, 0
          %s1188 = smul.addr %s34, 8
          %s1189 = scalar_lea.hbm %s9, %s1188
          %s1191 = sshll.u32 %s1177, 4
          %s1192 = int_to_ptr.vmem [resolvable:$true] %s1191
          %s1193 = sshll.u32 %s1189, 4
          %s1194 = int_to_ptr.hbm [resolvable:$true] %s1193
          %1196 = dma.vmem_to_hbm [thread:$0]  %s1192, 128, %s1194, %s1174
        $region92: #{tpu_custom_call.1} parent=55 // pred_fallthru
          _
        // Predicated region
        $region93: #{tpu_custom_call.1} parent=55 // pred_check
          %p1197 = pneg %p272
        $region94: #{tpu_custom_call.1} parent=55 // pred_check_branch
          %1199 = sbr.rel (%p1197) target = $region96
        $region95: #{tpu_custom_call.1} parent=55 // pred_region
          %1201 = vsyncadd %s1179, 0
          %s1202 = smul.addr %s34, 8
          %s1203 = scalar_lea.hbm %s10, %s1202
          %s1205 = sshll.u32 %s1182, 4
          %s1206 = int_to_ptr.vmem [resolvable:$true] %s1205
          %s1207 = sshll.u32 %s1203, 4
          %s1208 = int_to_ptr.hbm [resolvable:$true] %s1207
          %1210 = dma.vmem_to_hbm [thread:$0]  %s1206, 128, %s1208, %s1179
        $region96: #{tpu_custom_call.1} parent=55 // pred_fallthru
          _
      $region56: #{tpu_custom_call.1} parent=5 // pred_fallthru
        _
      %p1211 = scmp.le.s32.totalorder 2, %s29
      // Predicated region
      $region97: #{tpu_custom_call.1} parent=5 // pred_check
        %p1212 = pneg %p1211
      $region98: #{tpu_custom_call.1} parent=5 // pred_check_branch
        %1214 = sbr.rel (%p1212) target = $region100
      $region99: #{tpu_custom_call.1} parent=5 // pred_region
        %s1215 = ssub.s32 %s29, 2
        // Predicated region
        $region101: #{tpu_custom_call.1} parent=99 // pred_check
          %p1216 = pneg %p252
        $region102: #{tpu_custom_call.1} parent=99 // pred_check_branch
          %1218 = sbr.rel (%p1216) target = $region104
        $region103: #{tpu_custom_call.1} parent=99 // pred_region
          %s1219 = sand.u32 %s237, 1
          %s1220 = scalar_lea.sflag [#allocation5], %s1219
          %s1221 = sand.u32 %s237, 1
          %s1222 = smul.addr %s1221, 8
          %s1223 = scalar_lea.vmem [#allocation15], %s1222
          %1225 = dma.done %s1220, 128
        $region104: #{tpu_custom_call.1} parent=99 // pred_fallthru
          _
        // Predicated region
        $region105: #{tpu_custom_call.1} parent=99 // pred_check
          %p1226 = pneg %p278
        $region106: #{tpu_custom_call.1} parent=99 // pred_check_branch
          %1228 = sbr.rel (%p1226) target = $region108
        $region107: #{tpu_custom_call.1} parent=99 // pred_region
          %s1229 = sand.u32 %s263, 1
          %s1230 = scalar_lea.sflag [#allocation17], %s1229
          %s1231 = sand.u32 %s263, 1
          %s1232 = smul.addr %s1231, 8
          %s1233 = scalar_lea.vmem [#allocation16], %s1232
          %1235 = dma.done %s1230, 128
        $region108: #{tpu_custom_call.1} parent=99 // pred_fallthru
          _
      $region100: #{tpu_custom_call.1} parent=5 // pred_fallthru
        _
    $region6: #{tpu_custom_call.1} parent=1 // loop_footer
      %s33 = sadd.s32 1, %s29
    $region7: #{tpu_custom_call.1} parent=1 // loop_footer_branch
      %28 = sbr.rel target = $region3
    $region8: #{tpu_custom_call.1} parent=1 // loop_exit
      _
    %1236 = vsyncpa [#allocation4], 1
    %s1237 = scalar_lea.sflag [#allocation4], 1
    %1238 = vsyncpa %s1237, 1
    %1239 = vsyncpa [#allocation7], 1
    %1240 = vsyncpa [#allocation10], 1
    %1241 = vsyncpa [#allocation13], 1
    %1242 = vsyncpa [#allocation5], 1
    %s1243 = scalar_lea.sflag [#allocation5], 1
    %1244 = vsyncpa %s1243, 1
    %1245 = vsyncpa [#allocation17], 1
    %s1246 = scalar_lea.sflag [#allocation17], 1
    %1247 = vsyncpa %s1246, 1

// kernel: tpu_custom_call.1
$region0: #{tpu_custom_call.1}
  #allocation0 [shape = 'u32[]', space=smem, size = 0x4, offset = 0x4, fixed_abs, tag = 'smem constant byte address 0x4 - core index']
  #allocation1 [shape = 'u32[72,128]{1,0:T(1,128)}', space=vmem, size = 0x9000, scoped, tag = 'internal scratch']
  #allocation2 [shape = 'f32[8,128]{1,0:T(8,128)}', space=vmem, size = 0x1000, scoped, tag = 'scratch operand']
  %s0 = inlined_call_operand.hbm [shape: f32[5,8,128], index: 0, kind: input, shape index: {}]
  %s1 = inlined_call_operand.hbm [shape: f32[8,128], index: 1, kind: input, shape index: {}]
  %s2 = inlined_call_operand.hbm [shape: f32[8,8,128], index: 2, kind: input, shape index: {}]
  %s3 = inlined_call_operand.hbm [shape: f32[128,384], index: 3, kind: input, shape index: {}]
  %s4 = inlined_call_operand.hbm [shape: f32[128,384], index: 4, kind: input, shape index: {}]
  %s5 = inlined_call_operand.vmem [shape: f32[1,384], index: 5, kind: input, shape index: {}]
  %s6 = inlined_call_operand.hbm [shape: f32[1,384], index: 6, kind: input, shape index: {}]
  %s7 = inlined_call_operand.hbm [shape: f32[256,128], index: 7, kind: input, shape index: {}]
  %s8 = inlined_call_operand.vmem [shape: f32[1,128], index: 8, kind: input, shape index: {}]
  %s9 = inlined_call_operand.hbm [shape: f32[5,8,128], index: 9, kind: output, shape index: {0}]
  %s10 = inlined_call_operand.hbm [shape: f32[5,8,128], index: 10, kind: output, shape index: {1}]
  %11 = xla_tuple %s9, %s10
  %s12 = sld [smem:[#allocation0]]
  $region109: #{tpu_custom_call.1} parent=0
    _
  %s14 = ssub.s32 1, %s12
  %s15 = scalar_select 0, %s14, %s12
  $region1: #{tpu_custom_call.1} parent=0
    #allocation3 [shape = 'u8[8192]{0}', space=vmem, size = 0x2000, scoped, tag = 'input window, operand 0']
    #allocation4 [shape = 's32[2]{0}', space=sflag, size = 0x8, scoped, tag = 'scoped memory for tpu_custom_call.1']
    #allocation5 [shape = 's32[2]{0}', space=sflag, size = 0x8, scoped, tag = 'scoped memory for tpu_custom_call.1']
    #allocation6 [shape = 'u8[4096]{0}', space=vmem, size = 0x1000, scoped, tag = 'input window, operand 1, single buffered']
    #allocation7 [shape = 's32[1]{0}', space=sflag, size = 0x4, scoped, tag = 'scoped memory for tpu_custom_call.1']
    #allocation8 [shape = 'u8[32768]{0}', space=vmem, size = 0x8000, scoped, tag = 'input window, operand 2, single buffered']
    #allocation9 [shape = 'u8[196608]{0}', space=vmem, size = 0x30000, scoped, tag = 'input window, operand 3, single buffered']
    #allocation10 [shape = 's32[1]{0}', space=sflag, size = 0x4, scoped, tag = 'scoped memory for tpu_custom_call.1']
    #allocation11 [shape = 'u8[196608]{0}', space=vmem, size = 0x30000, scoped, tag = 'input window, operand 4, single buffered']
    #allocation12 [shape = 'u8[1536]{0}', space=vmem, size = 0x800, scoped, tag = 'input window, operand 6, single buffered']
    #allocation13 [shape = 's32[1]{0}', space=sflag, size = 0x4, scoped, tag = 'scoped memory for tpu_custom_call.1']
    #allocation14 [shape = 'u8[131072]{0}', space=vmem, size = 0x20000, scoped, tag = 'input window, operand 7, single buffered']
    #allocation15 [shape = 'u8[8192]{0}', space=vmem, size = 0x2000, scoped, tag = 'output window, operand 0']
    #allocation16 [shape = 'u8[8192]{0}', space=vmem, size = 0x2000, scoped, tag = 'output window, operand 1']
    #allocation17 [shape = 's32[2]{0}', space=sflag, size = 0x8, scoped, tag = 'scoped memory for tpu_custom_call.1']
    %16 = vsyncpa [#allocation4], 0
    %s17 = scalar_lea.sflag [#allocation4], 1
    %18 = vsyncpa %s17, 0
    %19 = vsyncpa [#allocation7], 0
    %20 = vsyncpa [#allocation10], 0
    %21 = vsyncpa [#allocation13], 0
    %22 = vsyncpa [#allocation5], 0
    %s23 = scalar_lea.sflag [#allocation5], 1
    %24 = vsyncpa %s23, 0
    %25 = vsyncpa [#allocation17], 0
    %s26 = scalar_lea.sflag [#allocation17], 1
    %27 = vsyncpa %s26, 0
    loop: start=0, step=1, limit=7
    $region2: #{tpu_custom_call.1} parent=1 // loop_pre_header
      _
    $region3: #{tpu_custom_call.1} parent=1 // loop_header
      %s29 = sphi 0, %s33
      %p30 = scmp.ge.s32.totalorder %s29, 7
      %s39 = sphi 0, %s41
      %s42 = sphi 0, %s39
      %s43 = sphi 0, %s42
      %s59 = sphi 0, %s43
      %s63 = sphi 0, %s63
      %s65 = sphi 0, %s63
      %s66 = sphi 0, %s65
      %s80 = sphi 0, %s66
      %s84 = sphi 0, %s84
      %s86 = sphi 0, %s84
      %s87 = sphi 0, %s86
      %s101 = sphi 0, %s87
      %s105 = sphi 0, %s105
      %s107 = sphi 0, %s105
      %s108 = sphi 0, %s107
      %s122 = sphi 0, %s108
      %s126 = sphi 0, %s126
      %s128 = sphi 0, %s126
      %s129 = sphi 0, %s128
      %s143 = sphi 0, %s129
      %s147 = sphi 0, %s147
      %s149 = sphi 0, %s147
      %s150 = sphi 0, %s149
      %s164 = sphi 0, %s150
      %s168 = sphi 0, %s168
      %s170 = sphi 0, %s168
      %s171 = sphi 0, %s170
      %s185 = sphi 0, %s171
      %s189 = sphi 0, %s189
      %s191 = sphi 0, %s189
      %s192 = sphi 0, %s191
      %s206 = sphi 0, %s192
      %s210 = sphi 0, %s210
      %s212 = sphi 0, %s210
      %s213 = sphi 0, %s212
      %s227 = sphi 0, %s213
      %s233 = sphi 0, %s235
      %s236 = sphi 0, %s233
      %s237 = sphi 0, %s236
      %s253 = sphi 0, %s237
      %s259 = sphi 0, %s261
      %s262 = sphi 0, %s259
      %s263 = sphi 0, %s262
      %s279 = sphi 0, %s263
    $region4: #{tpu_custom_call.1} parent=1 // loop_header_branch
      %32 = sbr.rel (%p30) target = $region8
    $region5: #{tpu_custom_call.1} parent=1 // loop_body
      %s34 = ssub.s32 %s29, 1
      %s35 = ssub.s32 %s29, 2
      %s36 = sadd.s32 %s29, 1
      %s37 = ssub.s32 %s29, %s36
      %p38 = scmp.eq.s32.totalorder %s37, 0
      %s40 = sadd.s32 %s39, 1
      %s41 = scalar_select %p38, %s39, %s40
      %p44 = pneg %p38
      %p45 = scmp.eq.s32.totalorder %s29, 4
      %p46 = por %p44, %p45
      %p47 = scmp.ne.s32.totalorder %s39, %s42
      %p48 = scmp.eq.s32.totalorder %s29, 0
      %p49 = por %p47, %p48
      %p50 = scmp.ne.s32.totalorder %s39, %s42
      %p51 = scmp.eq.s32.totalorder %s34, 4
      %p52 = por %p50, %p51
      %p53 = scmp.ne.s32.totalorder %s42, %s43
      %p54 = scmp.eq.s32.totalorder %s34, 0
      %p55 = por %p53, %p54
      %p56 = scmp.ne.s32.totalorder %s42, %s43
      %p57 = scmp.eq.s32.totalorder %s35, 4
      %p58 = por %p56, %p57
      %p60 = scmp.ne.s32.totalorder %s43, %s59
      %p61 = scmp.eq.s32.totalorder %s35, 0
      %p62 = por %p60, %p61
      %s64 = sadd.s32 %s63, 1
      %p67 = scmp.eq.s32.totalorder %s29, 4
      %p68 = scmp.ne.s32.totalorder %s63, %s65
      %p69 = scmp.eq.s32.totalorder %s29, 0
      %p70 = por %p68, %p69
      %p71 = scmp.ne.s32.totalorder %s63, %s65
      %p72 = scmp.eq.s32.totalorder %s34, 4
      %p73 = por %p71, %p72
      %p74 = scmp.ne.s32.totalorder %s65, %s66
      %p75 = scmp.eq.s32.totalorder %s34, 0
      %p76 = por %p74, %p75
      %p77 = scmp.ne.s32.totalorder %s65, %s66
      %p78 = scmp.eq.s32.totalorder %s35, 4
      %p79 = por %p77, %p78
      %p81 = scmp.ne.s32.totalorder %s66, %s80
      %p82 = scmp.eq.s32.totalorder %s35, 0
      %p83 = por %p81, %p82
      %s85 = sadd.s32 %s84, 1
      %p88 = scmp.eq.s32.totalorder %s29, 4
      %p89 = scmp.ne.s32.totalorder %s84, %s86
      %p90 = scmp.eq.s32.totalorder %s29, 0
      %p91 = por %p89, %p90
      %p92 = scmp.ne.s32.totalorder %s84, %s86
      %p93 = scmp.eq.s32.totalorder %s34, 4
      %p94 = por %p92, %p93
      %p95 = scmp.ne.s32.totalorder %s86, %s87
      %p96 = scmp.eq.s32.totalorder %s34, 0
      %p97 = por %p95, %p96
      %p98 = scmp.ne.s32.totalorder %s86, %s87
      %p99 = scmp.eq.s32.totalorder %s35, 4
      %p100 = por %p98, %p99
      %p102 = scmp.ne.s32.totalorder %s87, %s101
      %p103 = scmp.eq.s32.totalorder %s35, 0
      %p104 = por %p102, %p103
      %s106 = sadd.s32 %s105, 1
      %p109 = scmp.eq.s32.totalorder %s29, 4
      %p110 = scmp.ne.s32.totalorder %s105, %s107
      %p111 = scmp.eq.s32.totalorder %s29, 0
      %p112 = por %p110, %p111
      %p113 = scmp.ne.s32.totalorder %s105, %s107
      %p114 = scmp.eq.s32.totalorder %s34, 4
      %p115 = por %p113, %p114
      %p116 = scmp.ne.s32.totalorder %s107, %s108
      %p117 = scmp.eq.s32.totalorder %s34, 0
      %p118 = por %p116, %p117
      %p119 = scmp.ne.s32.totalorder %s107, %s108
      %p120 = scmp.eq.s32.totalorder %s35, 4
      %p121 = por %p119, %p120
      %p123 = scmp.ne.s32.totalorder %s108, %s122
      %p124 = scmp.eq.s32.totalorder %s35, 0
      %p125 = por %p123, %p124
      %s127 = sadd.s32 %s126, 1
      %p130 = scmp.eq.s32.totalorder %s29, 4
      %p131 = scmp.ne.s32.totalorder %s126, %s128
      %p132 = scmp.eq.s32.totalorder %s29, 0
      %p133 = por %p131, %p132
      %p134 = scmp.ne.s32.totalorder %s126, %s128
      %p135 = scmp.eq.s32.totalorder %s34, 4
      %p136 = por %p134, %p135
      %p137 = scmp.ne.s32.totalorder %s128, %s129
      %p138 = scmp.eq.s32.totalorder %s34, 0
      %p139 = por %p137, %p138
      %p140 = scmp.ne.s32.totalorder %s128, %s129
      %p141 = scmp.eq.s32.totalorder %s35, 4
      %p142 = por %p140, %p141
      %p144 = scmp.ne.s32.totalorder %s129, %s143
      %p145 = scmp.eq.s32.totalorder %s35, 0
      %p146 = por %p144, %p145
      %s148 = sadd.s32 %s147, 1
      %p151 = scmp.eq.s32.totalorder %s29, 4
      %p152 = scmp.ne.s32.totalorder %s147, %s149
      %p153 = scmp.eq.s32.totalorder %s29, 0
      %p154 = por %p152, %p153
      %p155 = scmp.ne.s32.totalorder %s147, %s149
      %p156 = scmp.eq.s32.totalorder %s34, 4
      %p157 = por %p155, %p156
      %p158 = scmp.ne.s32.totalorder %s149, %s150
      %p159 = scmp.eq.s32.totalorder %s34, 0
      %p160 = por %p158, %p159
      %p161 = scmp.ne.s32.totalorder %s149, %s150
      %p162 = scmp.eq.s32.totalorder %s35, 4
      %p163 = por %p161, %p162
      %p165 = scmp.ne.s32.totalorder %s150, %s164
      %p166 = scmp.eq.s32.totalorder %s35, 0
      %p167 = por %p165, %p166
      %s169 = sadd.s32 %s168, 1
      %p172 = scmp.eq.s32.totalorder %s29, 4
      %p173 = scmp.ne.s32.totalorder %s168, %s170
      %p174 = scmp.eq.s32.totalorder %s29, 0
      %p175 = por %p173, %p174
      %p176 = scmp.ne.s32.totalorder %s168, %s170
      %p177 = scmp.eq.s32.totalorder %s34, 4
      %p178 = por %p176, %p177
      %p179 = scmp.ne.s32.totalorder %s170, %s171
      %p180 = scmp.eq.s32.totalorder %s34, 0
      %p181 = por %p179, %p180
      %p182 = scmp.ne.s32.totalorder %s170, %s171
      %p183 = scmp.eq.s32.totalorder %s35, 4
      %p184 = por %p182, %p183
      %p186 = scmp.ne.s32.totalorder %s171, %s185
      %p187 = scmp.eq.s32.totalorder %s35, 0
      %p188 = por %p186, %p187
      %s190 = sadd.s32 %s189, 1
      %p193 = scmp.eq.s32.totalorder %s29, 4
      %p194 = scmp.ne.s32.totalorder %s189, %s191
      %p195 = scmp.eq.s32.totalorder %s29, 0
      %p196 = por %p194, %p195
      %p197 = scmp.ne.s32.totalorder %s189, %s191
      %p198 = scmp.eq.s32.totalorder %s34, 4
      %p199 = por %p197, %p198
      %p200 = scmp.ne.s32.totalorder %s191, %s192
      %p201 = scmp.eq.s32.totalorder %s34, 0
      %p202 = por %p200, %p201
      %p203 = scmp.ne.s32.totalorder %s191, %s192
      %p204 = scmp.eq.s32.totalorder %s35, 4
      %p205 = por %p203, %p204
      %p207 = scmp.ne.s32.totalorder %s192, %s206
      %p208 = scmp.eq.s32.totalorder %s35, 0
      %p209 = por %p207, %p208
      %s211 = sadd.s32 %s210, 1
      %p214 = scmp.eq.s32.totalorder %s29, 4
      %p215 = scmp.ne.s32.totalorder %s210, %s212
      %p216 = scmp.eq.s32.totalorder %s29, 0
      %p217 = por %p215, %p216
      %p218 = scmp.ne.s32.totalorder %s210, %s212
      %p219 = scmp.eq.s32.totalorder %s34, 4
      %p220 = por %p218, %p219
      %p221 = scmp.ne.s32.totalorder %s212, %s213
      %p222 = scmp.eq.s32.totalorder %s34, 0
      %p223 = por %p221, %p222
      %p224 = scmp.ne.s32.totalorder %s212, %s213
      %p225 = scmp.eq.s32.totalorder %s35, 4
      %p226 = por %p224, %p225
      %p228 = scmp.ne.s32.totalorder %s213, %s227
      %p229 = scmp.eq.s32.totalorder %s35, 0
      %p230 = por %p228, %p229
      %s231 = ssub.s32 %s29, %s36
      %p232 = scmp.eq.s32.totalorder %s231, 0
      %s234 = sadd.s32 %s233, 1
      %s235 = scalar_select %p232, %s233, %s234
      %p238 = pneg %p232
      %p239 = scmp.eq.s32.totalorder %s29, 4
      %p240 = por %p238, %p239
      %p241 = scmp.ne.s32.totalorder %s233, %s236
      %p242 = scmp.eq.s32.totalorder %s29, 0
      %p243 = por %p241, %p242
      %p244 = scmp.ne.s32.totalorder %s233, %s236
      %p245 = scmp.eq.s32.totalorder %s34, 4
      %p246 = por %p244, %p245
      %p247 = scmp.ne.s32.totalorder %s236, %s237
      %p248 = scmp.eq.s32.totalorder %s34, 0
      %p249 = por %p247, %p248
      %p250 = scmp.ne.s32.totalorder %s236, %s237
      %p251 = scmp.eq.s32.totalorder %s35, 4
      %p252 = por %p250, %p251
      %p254 = scmp.ne.s32.totalorder %s237, %s253
      %p255 = scmp.eq.s32.totalorder %s35, 0
      %p256 = por %p254, %p255
      %s257 = ssub.s32 %s29, %s36
      %p258 = scmp.eq.s32.totalorder %s257, 0
      %s260 = sadd.s32 %s259, 1
      %s261 = scalar_select %p258, %s259, %s260
      %p264 = pneg %p258
      %p265 = scmp.eq.s32.totalorder %s29, 4
      %p266 = por %p264, %p265
      %p267 = scmp.ne.s32.totalorder %s259, %s262
      %p268 = scmp.eq.s32.totalorder %s29, 0
      %p269 = por %p267, %p268
      %p270 = scmp.ne.s32.totalorder %s259, %s262
      %p271 = scmp.eq.s32.totalorder %s34, 4
      %p272 = por %p270, %p271
      %p273 = scmp.ne.s32.totalorder %s262, %s263
      %p274 = scmp.eq.s32.totalorder %s34, 0
      %p275 = por %p273, %p274
      %p276 = scmp.ne.s32.totalorder %s262, %s263
      %p277 = scmp.eq.s32.totalorder %s35, 4
      %p278 = por %p276, %p277
      %p280 = scmp.ne.s32.totalorder %s263, %s279
      %p281 = scmp.eq.s32.totalorder %s35, 0
      %p282 = por %p280, %p281
      %p283 = scmp.le.s32.totalorder 1, %s29
      %p284 = scmp.lt.s32.totalorder %s29, 6
      %p285 = pnand %p283, %p284
      %p286 = pneg %p285
      // Predicated region
      $region9: #{tpu_custom_call.1} parent=5 // pred_check
        _
      $region10: #{tpu_custom_call.1} parent=5 // pred_check_branch
        %288 = sbr.rel (%p285) target = $region12
      $region11: #{tpu_custom_call.1} parent=5 // pred_region
        %s289 = ssub.s32 %s29, 1
        // Predicated region
        $region13: #{tpu_custom_call.1} parent=11 // pred_check
          %p290 = pneg %p76
        $region14: #{tpu_custom_call.1} parent=11 // pred_check_branch
          %292 = sbr.rel (%p290) target = $region16
        $region15: #{tpu_custom_call.1} parent=11 // pred_region
          %294 = vsyncadd [#allocation7], 0
          %s296 = sshll.u32 %s1, 4
          %s297 = int_to_ptr.hbm [resolvable:$true] %s296
          %s298 = sshll.u32 [#allocation6], 4
          %s299 = int_to_ptr.vmem [resolvable:$true] %s298
          %301 = dma.hbm_to_vmem [thread:$0]  %s297, 128, %s299, [#allocation7]
        $region16: #{tpu_custom_call.1} parent=11 // pred_fallthru
          _
        // Predicated region
        $region17: #{tpu_custom_call.1} parent=11 // pred_check
          %p302 = pneg %p97
        $region18: #{tpu_custom_call.1} parent=11 // pred_check_branch
          %304 = sbr.rel (%p302) target = $region20
        $region19: #{tpu_custom_call.1} parent=11 // pred_region
          %306 = vsyncadd [#allocation7], 0
          %s307 = sshll.u32 %s2, 4
          %s308 = int_to_ptr.hbm [resolvable:$true] %s307
          %s309 = sshll.u32 [#allocation8], 4
          %s310 = int_to_ptr.vmem [resolvable:$true] %s309
          %315 = dma.hbm_to_vmem [thread:$0]  %s308, 1024, %s310, [#allocation7], 128, 128, 8
        $region20: #{tpu_custom_call.1} parent=11 // pred_fallthru
          _
        // Predicated region
        $region21: #{tpu_custom_call.1} parent=11 // pred_check
          %p316 = pneg %p118
        $region22: #{tpu_custom_call.1} parent=11 // pred_check_branch
          %318 = sbr.rel (%p316) target = $region24
        $region23: #{tpu_custom_call.1} parent=11 // pred_region
          %320 = vsyncadd [#allocation10], 0
          %s321 = sshll.u32 %s3, 4
          %s322 = int_to_ptr.hbm [resolvable:$true] %s321
          %s323 = sshll.u32 [#allocation9], 4
          %s324 = int_to_ptr.vmem [resolvable:$true] %s323
          %329 = dma.hbm_to_vmem [thread:$0]  %s322, 6144, %s324, [#allocation10], 384, 384, 24
        $region24: #{tpu_custom_call.1} parent=11 // pred_fallthru
          _
        // Predicated region
        $region25: #{tpu_custom_call.1} parent=11 // pred_check
          %p330 = pneg %p139
        $region26: #{tpu_custom_call.1} parent=11 // pred_check_branch
          %332 = sbr.rel (%p330) target = $region28
        $region27: #{tpu_custom_call.1} parent=11 // pred_region
          %334 = vsyncadd [#allocation10], 0
          %s335 = sshll.u32 %s4, 4
          %s336 = int_to_ptr.hbm [resolvable:$true] %s335
          %s337 = sshll.u32 [#allocation11], 4
          %s338 = int_to_ptr.vmem [resolvable:$true] %s337
          %343 = dma.hbm_to_vmem [thread:$0]  %s336, 6144, %s338, [#allocation10], 384, 384, 24
        $region28: #{tpu_custom_call.1} parent=11 // pred_fallthru
          _
        // Predicated region
        $region29: #{tpu_custom_call.1} parent=11 // pred_check
          %p344 = pneg %p160
        $region30: #{tpu_custom_call.1} parent=11 // pred_check_branch
          %346 = sbr.rel (%p344) target = $region32
        $region31: #{tpu_custom_call.1} parent=11 // pred_region
          _
        $region32: #{tpu_custom_call.1} parent=11 // pred_fallthru
          _
        // Predicated region
        $region33: #{tpu_custom_call.1} parent=11 // pred_check
          %p347 = pneg %p181
        $region34: #{tpu_custom_call.1} parent=11 // pred_check_branch
          %349 = sbr.rel (%p347) target = $region36
        $region35: #{tpu_custom_call.1} parent=11 // pred_region
          %351 = vsyncadd [#allocation13], 0
          %s353 = sshll.u32 %s6, 4
          %s354 = int_to_ptr.hbm [resolvable:$true] %s353
          %s355 = sshll.u32 [#allocation12], 4
          %s356 = int_to_ptr.vmem [resolvable:$true] %s355
          %358 = dma.hbm_to_vmem [thread:$0]  %s354, 48, %s356, [#allocation13]
        $region36: #{tpu_custom_call.1} parent=11 // pred_fallthru
          _
        // Predicated region
        $region37: #{tpu_custom_call.1} parent=11 // pred_check
          %p359 = pneg %p202
        $region38: #{tpu_custom_call.1} parent=11 // pred_check_branch
          %361 = sbr.rel (%p359) target = $region40
        $region39: #{tpu_custom_call.1} parent=11 // pred_region
          %363 = vsyncadd [#allocation13], 0
          %s364 = sshll.u32 %s7, 4
          %s365 = int_to_ptr.hbm [resolvable:$true] %s364
          %s366 = sshll.u32 [#allocation14], 4
          %s367 = int_to_ptr.vmem [resolvable:$true] %s366
          %372 = dma.hbm_to_vmem [thread:$0]  %s365, 4096, %s367, [#allocation13], 128, 128, 8
        $region40: #{tpu_custom_call.1} parent=11 // pred_fallthru
          _
        // Predicated region
        $region41: #{tpu_custom_call.1} parent=11 // pred_check
          %p373 = pneg %p223
        $region42: #{tpu_custom_call.1} parent=11 // pred_check_branch
          %375 = sbr.rel (%p373) target = $region44
        $region43: #{tpu_custom_call.1} parent=11 // pred_region
          _
        $region44: #{tpu_custom_call.1} parent=11 // pred_fallthru
          _
      $region12: #{tpu_custom_call.1} parent=5 // pred_fallthru
        _
      %p376 = scmp.lt.s32.totalorder %s29, 5
      // Predicated region
      $region45: #{tpu_custom_call.1} parent=5 // pred_check
        %p377 = pneg %p376
      $region46: #{tpu_custom_call.1} parent=5 // pred_check_branch
        %379 = sbr.rel (%p377) target = $region48
      $region47: #{tpu_custom_call.1} parent=5 // pred_region
        // Predicated region
        $region49: #{tpu_custom_call.1} parent=47 // pred_check
          %p380 = pneg %p49
        $region50: #{tpu_custom_call.1} parent=47 // pred_check_branch
          %382 = sbr.rel (%p380) target = $region52
        $region51: #{tpu_custom_call.1} parent=47 // pred_region
          %s383 = sand.u32 %s39, 1
          %s384 = scalar_lea.sflag [#allocation4], %s383
          %s385 = sand.u32 %s39, 1
          %s386 = smul.addr %s385, 8
          %s387 = scalar_lea.vmem [#allocation3], %s386
          %389 = vsyncadd %s384, 0
          %s390 = smul.addr %s29, 8
          %s391 = scalar_lea.hbm %s0, %s390
          %s393 = sshll.u32 %s391, 4
          %s394 = int_to_ptr.hbm [resolvable:$true] %s393
          %s395 = sshll.u32 %s387, 4
          %s396 = int_to_ptr.vmem [resolvable:$true] %s395
          %398 = dma.hbm_to_vmem [thread:$0]  %s394, 128, %s396, %s384
        $region52: #{tpu_custom_call.1} parent=47 // pred_fallthru
          _
      $region48: #{tpu_custom_call.1} parent=5 // pred_fallthru
        _
      %p399 = scmp.le.s32.totalorder 1, %s29
      %p400 = scmp.lt.s32.totalorder %s29, 6
      %p401 = pnand %p399, %p400
      %p402 = pneg %p401
      // Predicated region
      $region53: #{tpu_custom_call.1} parent=5 // pred_check
        _
      $region54: #{tpu_custom_call.1} parent=5 // pred_check_branch
        %404 = sbr.rel (%p401) target = $region56
      $region55: #{tpu_custom_call.1} parent=5 // pred_region
        %s405 = ssub.s32 %s29, 1
        %s406 = sand.u32 %s42, 1
        %s407 = scalar_lea.sflag [#allocation4], %s406
        %s408 = sand.u32 %s42, 1
        %s409 = smul.addr %s408, 8
        %s410 = scalar_lea.vmem [#allocation3], %s409
        // Predicated region
        $region57: #{tpu_custom_call.1} parent=55 // pred_check
          %p411 = pneg %p55
        $region58: #{tpu_custom_call.1} parent=55 // pred_check_branch
          %413 = sbr.rel (%p411) target = $region60
        $region59: #{tpu_custom_call.1} parent=55 // pred_region
          %415 = dma.done %s407, 128
        $region60: #{tpu_custom_call.1} parent=55 // pred_fallthru
          _
        // Predicated region
        $region61: #{tpu_custom_call.1} parent=55 // pred_check
          %p416 = pneg %p76
        $region62: #{tpu_custom_call.1} parent=55 // pred_check_branch
          %418 = sbr.rel (%p416) target = $region64
        $region63: #{tpu_custom_call.1} parent=55 // pred_region
          %420 = dma.done [#allocation7], 128
        $region64: #{tpu_custom_call.1} parent=55 // pred_fallthru
          _
        // Predicated region
        $region65: #{tpu_custom_call.1} parent=55 // pred_check
          %p421 = pneg %p97
        $region66: #{tpu_custom_call.1} parent=55 // pred_check_branch
          %423 = sbr.rel (%p421) target = $region68
        $region67: #{tpu_custom_call.1} parent=55 // pred_region
          %425 = dma.done [#allocation7], 1024
        $region68: #{tpu_custom_call.1} parent=55 // pred_fallthru
          _
        // Predicated region
        $region69: #{tpu_custom_call.1} parent=55 // pred_check
          %p426 = pneg %p118
        $region70: #{tpu_custom_call.1} parent=55 // pred_check_branch
          %428 = sbr.rel (%p426) target = $region72
        $region71: #{tpu_custom_call.1} parent=55 // pred_region
          %430 = dma.done [#allocation10], 6144
        $region72: #{tpu_custom_call.1} parent=55 // pred_fallthru
          _
        // Predicated region
        $region73: #{tpu_custom_call.1} parent=55 // pred_check
          %p431 = pneg %p139
        $region74: #{tpu_custom_call.1} parent=55 // pred_check_branch
          %433 = sbr.rel (%p431) target = $region76
        $region75: #{tpu_custom_call.1} parent=55 // pred_region
          %435 = dma.done [#allocation10], 6144
        $region76: #{tpu_custom_call.1} parent=55 // pred_fallthru
          _
        // Predicated region
        $region77: #{tpu_custom_call.1} parent=55 // pred_check
          %p436 = pneg %p181
        $region78: #{tpu_custom_call.1} parent=55 // pred_check_branch
          %438 = sbr.rel (%p436) target = $region80
        $region79: #{tpu_custom_call.1} parent=55 // pred_region
          %440 = dma.done [#allocation13], 48
        $region80: #{tpu_custom_call.1} parent=55 // pred_fallthru
          _
        // Predicated region
        $region81: #{tpu_custom_call.1} parent=55 // pred_check
          %p441 = pneg %p202
        $region82: #{tpu_custom_call.1} parent=55 // pred_check_branch
          %443 = sbr.rel (%p441) target = $region84
        $region83: #{tpu_custom_call.1} parent=55 // pred_region
          %445 = dma.done [#allocation13], 4096
        $region84: #{tpu_custom_call.1} parent=55 // pred_fallthru
          _
        %s446 = sand.u32 %s42, 1
        %s447 = scalar_lea.sflag [#allocation4], %s446
        %s448 = sand.u32 %s42, 1
        %s449 = smul.addr %s448, 8
        %s450 = scalar_lea.vmem [#allocation3], %s449
        %p451 = pneg %p55
        %p452 = pneg %p52
        %p453 = pneg %p76
        %p454 = pneg %p73
        %p455 = pneg %p97
        %p456 = pneg %p94
        %p457 = pneg %p118
        %p458 = pneg %p115
        %p459 = pneg %p139
        %p460 = pneg %p136
        %p461 = pneg %p160
        %p462 = pneg %p157
        %p463 = pneg %p181
        %p464 = pneg %p178
        %p465 = pneg %p202
        %p466 = pneg %p199
        %p467 = pneg %p223
        %p468 = pneg %p220
        %p469 = pneg %p249
        %p470 = pneg %p246
        %s471 = sand.u32 %s236, 1
        %s472 = scalar_lea.sflag [#allocation5], %s471
        %s473 = sand.u32 %s236, 1
        %s474 = smul.addr %s473, 8
        %s475 = scalar_lea.vmem [#allocation15], %s474
        %p476 = pneg %p275
        %p477 = pneg %p272
        %s478 = sand.u32 %s262, 1
        %s479 = scalar_lea.sflag [#allocation17], %s478
        %s480 = sand.u32 %s262, 1
        %s481 = smul.addr %s480, 8
        %s482 = scalar_lea.vmem [#allocation16], %s481
        %p483 = scmp.eq.s32.totalorder %s34, 0
        // Predicated region
        $region85: #{tpu_custom_call.1} parent=55 // pred_check
          %p484 = pneg %p483
        $region86: #{tpu_custom_call.1} parent=55 // pred_check_branch
          %486 = sbr.rel (%p484) target = $region88
        $region87: #{tpu_custom_call.1} parent=55 // pred_region
          %v487 = vld [vmem:[#allocation6] sm:$0xff]
          %488 = vst [vmem:[#allocation2] sm:$0xff] %v487
        $region88: #{tpu_custom_call.1} parent=55 // pred_fallthru
          _
        %v489 = vld [vmem:[%s410] sm:$0xff]
        %v490 = vld [vmem:[#allocation2] sm:$0xff]
        %v491 = vld [vmem:[#allocation9] sm:$0xff]
        %v492 = vld [vmem:[#allocation9 + $0x8] sm:$0xff]
        %v493 = vld [vmem:[#allocation9 + $0x10] sm:$0xff]
        %v494 = vld [vmem:[#allocation9 + $0x18] sm:$0xff]
        %v495 = vld [vmem:[#allocation9 + $0x20] sm:$0xff]
        %v496 = vld [vmem:[#allocation9 + $0x28] sm:$0xff]
        %v497 = vld [vmem:[#allocation9 + $0x30] sm:$0xff]
        %v498 = vld [vmem:[#allocation9 + $0x38] sm:$0xff]
        %v499 = vld [vmem:[#allocation9 + $0x40] sm:$0xff]
        %v500 = vld [vmem:[#allocation9 + $0x48] sm:$0xff]
        %v501 = vld [vmem:[#allocation9 + $0x50] sm:$0xff]
        %v502 = vld [vmem:[#allocation9 + $0x58] sm:$0xff]
        %v503 = vld [vmem:[#allocation9 + $0x60] sm:$0xff]
        %v504 = vld [vmem:[#allocation9 + $0x68] sm:$0xff]
        %v505 = vld [vmem:[#allocation9 + $0x70] sm:$0xff]
        %v506 = vld [vmem:[#allocation9 + $0x78] sm:$0xff]
        %v507 = vld [vmem:[#allocation9 + $0x80] sm:$0xff]
        %v508 = vld [vmem:[#allocation9 + $0x88] sm:$0xff]
        %v509 = vld [vmem:[#allocation9 + $0x90] sm:$0xff]
        %v510 = vld [vmem:[#allocation9 + $0x98] sm:$0xff]
        %v511 = vld [vmem:[#allocation9 + $0xa0] sm:$0xff]
        %v512 = vld [vmem:[#allocation9 + $0xa8] sm:$0xff]
        %v513 = vld [vmem:[#allocation9 + $0xb0] sm:$0xff]
        %v514 = vld [vmem:[#allocation9 + $0xb8] sm:$0xff]
        %v515 = vld [vmem:[#allocation9 + $0xc0] sm:$0xff]
        %v516 = vld [vmem:[#allocation9 + $0xc8] sm:$0xff]
        %v517 = vld [vmem:[#allocation9 + $0xd0] sm:$0xff]
        %v518 = vld [vmem:[#allocation9 + $0xd8] sm:$0xff]
        %v519 = vld [vmem:[#allocation9 + $0xe0] sm:$0xff]
        %v520 = vld [vmem:[#allocation9 + $0xe8] sm:$0xff]
        %v521 = vld [vmem:[#allocation9 + $0xf0] sm:$0xff]
        %v522 = vld [vmem:[#allocation9 + $0xf8] sm:$0xff]
        %v523 = vld [vmem:[#allocation9 + $0x100] sm:$0xff]
        %v524 = vld [vmem:[#allocation9 + $0x108] sm:$0xff]
        %v525 = vld [vmem:[#allocation9 + $0x110] sm:$0xff]
        %v526 = vld [vmem:[#allocation9 + $0x118] sm:$0xff]
        %v527 = vld [vmem:[#allocation9 + $0x120] sm:$0xff]
        %v528 = vld [vmem:[#allocation9 + $0x128] sm:$0xff]
        %v529 = vld [vmem:[#allocation9 + $0x130] sm:$0xff]
        %v530 = vld [vmem:[#allocation9 + $0x138] sm:$0xff]
        %v531 = vld [vmem:[#allocation9 + $0x140] sm:$0xff]
        %v532 = vld [vmem:[#allocation9 + $0x148] sm:$0xff]
        %v533 = vld [vmem:[#allocation9 + $0x150] sm:$0xff]
        %v534 = vld [vmem:[#allocation9 + $0x158] sm:$0xff]
        %v535 = vld [vmem:[#allocation9 + $0x160] sm:$0xff]
        %v536 = vld [vmem:[#allocation9 + $0x168] sm:$0xff]
        %v537 = vld [vmem:[#allocation9 + $0x170] sm:$0xff]
        %v538 = vld [vmem:[#allocation9 + $0x178] sm:$0xff]
        %v539 = vld [vmem:[%s5] sm:$0x7]
        %v541 = vperm.slane %v539, 0
        %v542 = vperm.slane %v539, 1
        %v543 = vperm.slane %v539, 2
        %547 = vmatpush.msra.mxu0 %v536
        %548 = vmatpush.msra.mxu0 %v533
        %549 = vmatpush.msra.mxu0 %v530
        %550 = vmatpush.msra.mxu0 %v527
        %551 = vmatpush.msra.mxu0 %v524
        %552 = vmatpush.msra.mxu0 %v521
        %553 = vmatpush.msra.mxu0 %v518
        %554 = vmatpush.msra.mxu0 %v515
        %555 = vmatpush.msra.mxu0 %v512
        %556 = vmatpush.msra.mxu0 %v509
        %557 = vmatpush.msra.mxu0 %v506
        %558 = vmatpush.msra.mxu0 %v503
        %559 = vmatpush.msra.mxu0 %v500
        %560 = vmatpush.msra.mxu0 %v497
        %561 = vmatpush.msra.mxu0 %v494
        %562 = vmatpush.msra.mxu0 %v491
        %563 = vmatmul.f32.gmra.mxu0 %v489
        %v564 = vpop.f32.mrf.mxu0
        %v565 = vadd.f32 %v541, %v564
        %566 = vdwg.mxu0
        %567 = vmatpush.msra.mxu0 %v537
        %568 = vmatpush.msra.mxu0 %v534
        %569 = vmatpush.msra.mxu0 %v531
        %570 = vmatpush.msra.mxu0 %v528
        %571 = vmatpush.msra.mxu0 %v525
        %572 = vmatpush.msra.mxu0 %v522
        %573 = vmatpush.msra.mxu0 %v519
        %574 = vmatpush.msra.mxu0 %v516
        %575 = vmatpush.msra.mxu0 %v513
        %576 = vmatpush.msra.mxu0 %v510
        %577 = vmatpush.msra.mxu0 %v507
        %578 = vmatpush.msra.mxu0 %v504
        %579 = vmatpush.msra.mxu0 %v501
        %580 = vmatpush.msra.mxu0 %v498
        %581 = vmatpush.msra.mxu0 %v495
        %582 = vmatpush.msra.mxu0 %v492
        %583 = vmatmul.f32.gmra.mxu0 %v489
        %v584 = vpop.f32.mrf.mxu0
        %v585 = vadd.f32 %v542, %v584
        %586 = vdwg.mxu0
        %587 = vmatpush.msra.mxu0 %v538
        %588 = vmatpush.msra.mxu0 %v535
        %589 = vmatpush.msra.mxu0 %v532
        %590 = vmatpush.msra.mxu0 %v529
        %591 = vmatpush.msra.mxu0 %v526
        %592 = vmatpush.msra.mxu0 %v523
        %593 = vmatpush.msra.mxu0 %v520
        %594 = vmatpush.msra.mxu0 %v517
        %595 = vmatpush.msra.mxu0 %v514
        %596 = vmatpush.msra.mxu0 %v511
        %597 = vmatpush.msra.mxu0 %v508
        %598 = vmatpush.msra.mxu0 %v505
        %599 = vmatpush.msra.mxu0 %v502
        %600 = vmatpush.msra.mxu0 %v499
        %601 = vmatpush.msra.mxu0 %v496
        %602 = vmatpush.msra.mxu0 %v493
        %603 = vmatmul.f32.gmra.mxu0 %v489
        %v604 = vpop.f32.mrf.mxu0
        %v605 = vadd.f32 %v543, %v604
        %606 = vdwg.mxu0
        %v607 = vld [vmem:[#allocation11] sm:$0xff]
        %v608 = vld [vmem:[#allocation11 + $0x8] sm:$0xff]
        %v609 = vld [vmem:[#allocation11 + $0x10] sm:$0xff]
        %v610 = vld [vmem:[#allocation11 + $0x18] sm:$0xff]
        %v611 = vld [vmem:[#allocation11 + $0x20] sm:$0xff]
        %v612 = vld [vmem:[#allocation11 + $0x28] sm:$0xff]
        %v613 = vld [vmem:[#allocation11 + $0x30] sm:$0xff]
        %v614 = vld [vmem:[#allocation11 + $0x38] sm:$0xff]
        %v615 = vld [vmem:[#allocation11 + $0x40] sm:$0xff]
        %v616 = vld [vmem:[#allocation11 + $0x48] sm:$0xff]
        %v617 = vld [vmem:[#allocation11 + $0x50] sm:$0xff]
        %v618 = vld [vmem:[#allocation11 + $0x58] sm:$0xff]
        %v619 = vld [vmem:[#allocation11 + $0x60] sm:$0xff]
        %v620 = vld [vmem:[#allocation11 + $0x68] sm:$0xff]
        %v621 = vld [vmem:[#allocation11 + $0x70] sm:$0xff]
        %v622 = vld [vmem:[#allocation11 + $0x78] sm:$0xff]
        %v623 = vld [vmem:[#allocation11 + $0x80] sm:$0xff]
        %v624 = vld [vmem:[#allocation11 + $0x88] sm:$0xff]
        %v625 = vld [vmem:[#allocation11 + $0x90] sm:$0xff]
        %v626 = vld [vmem:[#allocation11 + $0x98] sm:$0xff]
        %v627 = vld [vmem:[#allocation11 + $0xa0] sm:$0xff]
        %v628 = vld [vmem:[#allocation11 + $0xa8] sm:$0xff]
        %v629 = vld [vmem:[#allocation11 + $0xb0] sm:$0xff]
        %v630 = vld [vmem:[#allocation11 + $0xb8] sm:$0xff]
        %v631 = vld [vmem:[#allocation11 + $0xc0] sm:$0xff]
        %v632 = vld [vmem:[#allocation11 + $0xc8] sm:$0xff]
        %v633 = vld [vmem:[#allocation11 + $0xd0] sm:$0xff]
        %v634 = vld [vmem:[#allocation11 + $0xd8] sm:$0xff]
        %v635 = vld [vmem:[#allocation11 + $0xe0] sm:$0xff]
        %v636 = vld [vmem:[#allocation11 + $0xe8] sm:$0xff]
        %v637 = vld [vmem:[#allocation11 + $0xf0] sm:$0xff]
        %v638 = vld [vmem:[#allocation11 + $0xf8] sm:$0xff]
        %v639 = vld [vmem:[#allocation11 + $0x100] sm:$0xff]
        %v640 = vld [vmem:[#allocation11 + $0x108] sm:$0xff]
        %v641 = vld [vmem:[#allocation11 + $0x110] sm:$0xff]
        %v642 = vld [vmem:[#allocation11 + $0x118] sm:$0xff]
        %v643 = vld [vmem:[#allocation11 + $0x120] sm:$0xff]
        %v644 = vld [vmem:[#allocation11 + $0x128] sm:$0xff]
        %v645 = vld [vmem:[#allocation11 + $0x130] sm:$0xff]
        %v646 = vld [vmem:[#allocation11 + $0x138] sm:$0xff]
        %v647 = vld [vmem:[#allocation11 + $0x140] sm:$0xff]
        %v648 = vld [vmem:[#allocation11 + $0x148] sm:$0xff]
        %v649 = vld [vmem:[#allocation11 + $0x150] sm:$0xff]
        %v650 = vld [vmem:[#allocation11 + $0x158] sm:$0xff]
        %v651 = vld [vmem:[#allocation11 + $0x160] sm:$0xff]
        %v652 = vld [vmem:[#allocation11 + $0x168] sm:$0xff]
        %v653 = vld [vmem:[#allocation11 + $0x170] sm:$0xff]
        %v654 = vld [vmem:[#allocation11 + $0x178] sm:$0xff]
        %v655 = vld [vmem:[#allocation12] sm:$0x7]
        %v657 = vperm.slane %v655, 0
        %v658 = vperm.slane %v655, 1
        %v659 = vperm.slane %v655, 2
        %663 = vmatpush.msra.mxu0 %v652
        %664 = vmatpush.msra.mxu0 %v649
        %665 = vmatpush.msra.mxu0 %v646
        %666 = vmatpush.msra.mxu0 %v643
        %667 = vmatpush.msra.mxu0 %v640
        %668 = vmatpush.msra.mxu0 %v637
        %669 = vmatpush.msra.mxu0 %v634
        %670 = vmatpush.msra.mxu0 %v631
        %671 = vmatpush.msra.mxu0 %v628
        %672 = vmatpush.msra.mxu0 %v625
        %673 = vmatpush.msra.mxu0 %v622
        %674 = vmatpush.msra.mxu0 %v619
        %675 = vmatpush.msra.mxu0 %v616
        %676 = vmatpush.msra.mxu0 %v613
        %677 = vmatpush.msra.mxu0 %v610
        %678 = vmatpush.msra.mxu0 %v607
        %679 = vmatmul.f32.gmra.mxu0 %v490
        %v680 = vpop.f32.mrf.mxu0
        %v681 = vadd.f32 %v657, %v680
        %682 = vdwg.mxu0
        %683 = vmatpush.msra.mxu0 %v653
        %684 = vmatpush.msra.mxu0 %v650
        %685 = vmatpush.msra.mxu0 %v647
        %686 = vmatpush.msra.mxu0 %v644
        %687 = vmatpush.msra.mxu0 %v641
        %688 = vmatpush.msra.mxu0 %v638
        %689 = vmatpush.msra.mxu0 %v635
        %690 = vmatpush.msra.mxu0 %v632
        %691 = vmatpush.msra.mxu0 %v629
        %692 = vmatpush.msra.mxu0 %v626
        %693 = vmatpush.msra.mxu0 %v623
        %694 = vmatpush.msra.mxu0 %v620
        %695 = vmatpush.msra.mxu0 %v617
        %696 = vmatpush.msra.mxu0 %v614
        %697 = vmatpush.msra.mxu0 %v611
        %698 = vmatpush.msra.mxu0 %v608
        %699 = vmatmul.f32.gmra.mxu0 %v490
        %v700 = vpop.f32.mrf.mxu0
        %v701 = vadd.f32 %v658, %v700
        %702 = vdwg.mxu0
        %703 = vmatpush.msra.mxu0 %v654
        %704 = vmatpush.msra.mxu0 %v651
        %705 = vmatpush.msra.mxu0 %v648
        %706 = vmatpush.msra.mxu0 %v645
        %707 = vmatpush.msra.mxu0 %v642
        %708 = vmatpush.msra.mxu0 %v639
        %709 = vmatpush.msra.mxu0 %v636
        %710 = vmatpush.msra.mxu0 %v633
        %711 = vmatpush.msra.mxu0 %v630
        %712 = vmatpush.msra.mxu0 %v627
        %713 = vmatpush.msra.mxu0 %v624
        %714 = vmatpush.msra.mxu0 %v621
        %715 = vmatpush.msra.mxu0 %v618
        %716 = vmatpush.msra.mxu0 %v615
        %717 = vmatpush.msra.mxu0 %v612
        %718 = vmatpush.msra.mxu0 %v609
        %719 = vmatmul.f32.gmra.mxu0 %v490
        %v720 = vpop.f32.mrf.mxu0
        %v721 = vadd.f32 %v659, %v720
        %722 = vdwg.mxu0
        %v723 = vadd.f32 %v565, %v681
        %v724 = vxor.u32 %v723, 2147483648
        %v725 = vmul.f32 %v724, 1.442695
        %v726 = vpow.pop %v725
        %v727 = vadd.f32 %v726, 1.0
        %v728 = vrcp.pop %v727
        %v729 = vmul.f32 %v727, %v728
        %v730 = vsub.f32 1.0, %v729
        %v731 = vmul.f32 %v728, %v730
        %v732 = vadd.f32 %v728, %v731
        %vm733 = vweird.f32 %v727
        %vm734 = vweird.f32 %v728
        %vm735 = vmor %vm733, %vm734
        %v736 = vsel %vm735, %v728, %v732
        %v737 = vand.u32 2147483647, %v727
        %vm738 = vcmp.eq.f32.partialorder %v737, 8.507059e+37
        %v739 = vand.u32 %v727, 2147483648
        %v740 = vor.u32 1.1754944e-38, %v739
        %v741 = vsel %vm738, %v740, %v736
        %v742 = vmul.f32 1.0, %v741
        %v743 = vadd.f32 %v585, %v701
        %v744 = vxor.u32 %v743, 2147483648
        %v745 = vmul.f32 %v744, 1.442695
        %v746 = vpow.pop %v745
        %v747 = vadd.f32 %v746, 1.0
        %v748 = vrcp.pop %v747
        %v749 = vmul.f32 %v747, %v748
        %v750 = vsub.f32 1.0, %v749
        %v751 = vmul.f32 %v748, %v750
        %v752 = vadd.f32 %v748, %v751
        %vm753 = vweird.f32 %v747
        %vm754 = vweird.f32 %v748
        %vm755 = vmor %vm753, %vm754
        %v756 = vsel %vm755, %v748, %v752
        %v757 = vand.u32 2147483647, %v747
        %vm758 = vcmp.eq.f32.partialorder %v757, 8.507059e+37
        %v759 = vand.u32 %v747, 2147483648
        %v760 = vor.u32 1.1754944e-38, %v759
        %v761 = vsel %vm758, %v760, %v756
        %v762 = vmul.f32 1.0, %v761
        %v763 = vmul.f32 %v742, %v721
        %v764 = vadd.f32 %v605, %v763
        %v765 = vtanh.pop %v764
        %v766 = vsub.f32 1.0, %v762
        %v767 = vmul.f32 %v766, %v765
        %v768 = vmul.f32 %v762, %v490
        %v769 = vadd.f32 %v767, %v768
        %v770 = vld [vmem:[#allocation8] sm:$0xff]
        %v771 = vld [vmem:[#allocation8 + $0x8] sm:$0xff]
        %v772 = vld [vmem:[#allocation8 + $0x10] sm:$0xff]
        %v773 = vld [vmem:[#allocation8 + $0x18] sm:$0xff]
        %v774 = vld [vmem:[#allocation8 + $0x20] sm:$0xff]
        %v775 = vld [vmem:[#allocation8 + $0x28] sm:$0xff]
        %v776 = vld [vmem:[#allocation8 + $0x30] sm:$0xff]
        %v777 = vld [vmem:[#allocation8 + $0x38] sm:$0xff]
        %v779 = vrot.slane %v769, 1
        %v780 = vrot.slane %v769, 2
        %v781 = vrot.slane %v769, 3
        %v782 = vrot.slane %v769, 4
        %v783 = vrot.slane %v769, 5
        %v784 = vrot.slane %v769, 6
        %v785 = vrot.slane %v769, 7
        %v786 = vperm.slane %v769, 0
        %v787 = vperm.slane %v779, 0
        %v788 = vperm.slane %v780, 0
        %v789 = vperm.slane %v781, 0
        %v790 = vperm.slane %v782, 0
        %v791 = vperm.slane %v783, 0
        %v792 = vperm.slane %v784, 0
        %v793 = vperm.slane %v785, 0
        %v802 = vmul.f32 %v786, %v770
        %v803 = vmul.f32 %v787, %v771
        %v804 = vmul.f32 %v788, %v772
        %v805 = vmul.f32 %v789, %v773
        %v806 = vmul.f32 %v790, %v774
        %v807 = vmul.f32 %v791, %v775
        %v808 = vmul.f32 %v792, %v776
        %v809 = vmul.f32 %v793, %v777
        %810 = vadd.xlane.f32.xlu0 %v802
        %v811 = vpop.xlane.xlu0 %810
        %812 = vadd.xlane.f32.xlu0 %v803
        %v813 = vpop.xlane.xlu0 %812
        %814 = vadd.xlane.f32.xlu0 %v804
        %v815 = vpop.xlane.xlu0 %814
        %816 = vadd.xlane.f32.xlu0 %v805
        %v817 = vpop.xlane.xlu0 %816
        %818 = vadd.xlane.f32.xlu0 %v806
        %v819 = vpop.xlane.xlu0 %818
        %820 = vadd.xlane.f32.xlu0 %v807
        %v821 = vpop.xlane.xlu0 %820
        %822 = vadd.xlane.f32.xlu0 %v808
        %v823 = vpop.xlane.xlu0 %822
        %824 = vadd.xlane.f32.xlu0 %v809
        %v825 = vpop.xlane.xlu0 %824
        %v834 = vlaneseq
        %v835 = vand.u32 %v834, 127
        %v836 = vperm.slane %v811, %v835
        %v837 = vperm.slane %v813, %v835
        %v838 = vperm.slane %v815, %v835
        %v839 = vperm.slane %v817, %v835
        %v840 = vperm.slane %v819, %v835
        %v841 = vperm.slane %v821, %v835
        %v842 = vperm.slane %v823, %v835
        %v843 = vperm.slane %v825, %v835
        %vm844 = vcmask 1041409
        %v845 = vsel %vm844, %v837, %v836
        %vm846 = vcmask 1042434
        %v847 = vsel %vm846, %v838, %v845
        %vm848 = vcmask 1043459
        %v849 = vsel %vm848, %v839, %v847
        %vm850 = vcmask 1044484
        %v851 = vsel %vm850, %v840, %v849
        %vm852 = vcmask 1045509
        %v853 = vsel %vm852, %v841, %v851
        %vm854 = vcmask 1046534
        %v855 = vsel %vm854, %v842, %v853
        %vm856 = vcmask 1047559
        %v857 = vsel %vm856, %v843, %v855
        %vm859 = vcmask 64512
        %v860 = vsel %vm859, %v857, -inf
        %861 = vmax.xlane.f32.xlu0 %v860
        %v862 = vpop.xlane.xlu0 %861
        %v864 = vperm.slane %v862, 0
        %v865 = vperm.slane %v862, 1
        %v866 = vperm.slane %v862, 2
        %v867 = vperm.slane %v862, 3
        %v868 = vperm.slane %v862, 4
        %v869 = vperm.slane %v862, 5
        %v870 = vperm.slane %v862, 6
        %v871 = vperm.slane %v862, 7
        %v880 = vsub.f32 %v811, %v864
        %v881 = vsub.f32 %v813, %v865
        %v882 = vsub.f32 %v815, %v866
        %v883 = vsub.f32 %v817, %v867
        %v884 = vsub.f32 %v819, %v868
        %v885 = vsub.f32 %v821, %v869
        %v886 = vsub.f32 %v823, %v870
        %v887 = vsub.f32 %v825, %v871
        %v888 = vmul.f32 %v880, 1.442695
        %v889 = vpow.pop %v888
        %v890 = vmul.f32 %v881, 1.442695
        %v891 = vpow.pop %v890
        %v892 = vmul.f32 %v882, 1.442695
        %v893 = vpow.pop %v892
        %v894 = vmul.f32 %v883, 1.442695
        %v895 = vpow.pop %v894
        %v896 = vmul.f32 %v884, 1.442695
        %v897 = vpow.pop %v896
        %v898 = vmul.f32 %v885, 1.442695
        %v899 = vpow.pop %v898
        %v900 = vmul.f32 %v886, 1.442695
        %v901 = vpow.pop %v900
        %v902 = vmul.f32 %v887, 1.442695
        %v903 = vpow.pop %v902
        %912 = vset.pattern.permute.xlu0 0
        %913 = vperm.xlu0 %912, %v889
        %v914 = vpop.permute.xlu0 %913
        %915 = vset.pattern.permute.xlu0 0
        %916 = vperm.xlu0 %915, %v891
        %v917 = vpop.permute.xlu0 %916
        %918 = vset.pattern.permute.xlu0 0
        %919 = vperm.xlu0 %918, %v893
        %v920 = vpop.permute.xlu0 %919
        %921 = vset.pattern.permute.xlu0 0
        %922 = vperm.xlu0 %921, %v895
        %v923 = vpop.permute.xlu0 %922
        %924 = vset.pattern.permute.xlu0 0
        %925 = vperm.xlu0 %924, %v897
        %v926 = vpop.permute.xlu0 %925
        %927 = vset.pattern.permute.xlu0 0
        %928 = vperm.xlu0 %927, %v899
        %v929 = vpop.permute.xlu0 %928
        %930 = vset.pattern.permute.xlu0 0
        %931 = vperm.xlu0 %930, %v901
        %v932 = vpop.permute.xlu0 %931
        %933 = vset.pattern.permute.xlu0 0
        %934 = vperm.xlu0 %933, %v903
        %v935 = vpop.permute.xlu0 %934
        %v936 = vperm.slane %v914, %v835
        %v937 = vperm.slane %v917, %v835
        %v938 = vperm.slane %v920, %v835
        %v939 = vperm.slane %v923, %v835
        %v940 = vperm.slane %v926, %v835
        %v941 = vperm.slane %v929, %v835
        %v942 = vperm.slane %v932, %v835
        %v943 = vperm.slane %v935, %v835
        %v944 = vsel %vm844, %v937, %v936
        %v945 = vsel %vm846, %v938, %v944
        %v946 = vsel %vm848, %v939, %v945
        %v947 = vsel %vm850, %v940, %v946
        %v948 = vsel %vm852, %v941, %v947
        %v949 = vsel %vm854, %v942, %v948
        %v950 = vsel %vm856, %v943, %v949
        %v952 = vsel %vm859, %v950, 0.0
        %953 = vadd.xlane.f32.xlu0 %v952
        %v954 = vpop.xlane.xlu0 %953
        %v955 = vrcp.pop %v954
        %v957 = vperm.slane %v955, 0
        %v958 = vperm.slane %v955, 1
        %v959 = vperm.slane %v955, 2
        %v960 = vperm.slane %v955, 3
        %v961 = vperm.slane %v955, 4
        %v962 = vperm.slane %v955, 5
        %v963 = vperm.slane %v955, 6
        %v964 = vperm.slane %v955, 7
        %v973 = vmul.f32 %v889, %v957
        %v974 = vmul.f32 %v891, %v958
        %v975 = vmul.f32 %v893, %v959
        %v976 = vmul.f32 %v895, %v960
        %v977 = vmul.f32 %v897, %v961
        %v978 = vmul.f32 %v899, %v962
        %v979 = vmul.f32 %v901, %v963
        %v980 = vmul.f32 %v903, %v964
        %982 = vset.pattern.permute.xlu0 0
        %983 = vperm.xlu0 %982, %v973
        %v984 = vpop.permute.xlu0 %983
        %987 = vset.pattern.permute.xlu0 0
        %988 = vperm.xlu0 %987, %v974
        %v989 = vpop.permute.xlu0 %988
        %992 = vset.pattern.permute.xlu0 0
        %993 = vperm.xlu0 %992, %v975
        %v994 = vpop.permute.xlu0 %993
        %997 = vset.pattern.permute.xlu0 0
        %998 = vperm.xlu0 %997, %v976
        %v999 = vpop.permute.xlu0 %998
        %1002 = vset.pattern.permute.xlu0 0
        %1003 = vperm.xlu0 %1002, %v977
        %v1004 = vpop.permute.xlu0 %1003
        %1007 = vset.pattern.permute.xlu0 0
        %1008 = vperm.xlu0 %1007, %v978
        %v1009 = vpop.permute.xlu0 %1008
        %1012 = vset.pattern.permute.xlu0 0
        %1013 = vperm.xlu0 %1012, %v979
        %v1014 = vpop.permute.xlu0 %1013
        %1017 = vset.pattern.permute.xlu0 0
        %1018 = vperm.xlu0 %1017, %v980
        %v1019 = vpop.permute.xlu0 %1018
        %v1021 = vmul.f32 %v984, %v770
        %v1022 = vmul.f32 %v989, %v771
        %v1023 = vmul.f32 %v994, %v772
        %v1024 = vmul.f32 %v999, %v773
        %v1025 = vmul.f32 %v1004, %v774
        %v1026 = vmul.f32 %v1009, %v775
        %v1027 = vmul.f32 %v1014, %v776
        %v1028 = vmul.f32 %v1019, %v777
        %v1029 = vrot.slane %v1021, 4
        %v1030 = vadd.f32 %v1021, %v1029
        %v1031 = vrot.slane %v1030, 2
        %v1032 = vadd.f32 %v1030, %v1031
        %v1033 = vrot.slane %v1032, 1
        %v1034 = vadd.f32 %v1032, %v1033
        %v1035 = vrot.slane %v1022, 4
        %v1036 = vadd.f32 %v1022, %v1035
        %v1037 = vrot.slane %v1036, 2
        %v1038 = vadd.f32 %v1036, %v1037
        %v1039 = vrot.slane %v1038, 1
        %v1040 = vadd.f32 %v1038, %v1039
        %v1041 = vrot.slane %v1023, 4
        %v1042 = vadd.f32 %v1023, %v1041
        %v1043 = vrot.slane %v1042, 2
        %v1044 = vadd.f32 %v1042, %v1043
        %v1045 = vrot.slane %v1044, 1
        %v1046 = vadd.f32 %v1044, %v1045
        %v1047 = vrot.slane %v1024, 4
        %v1048 = vadd.f32 %v1024, %v1047
        %v1049 = vrot.slane %v1048, 2
        %v1050 = vadd.f32 %v1048, %v1049
        %v1051 = vrot.slane %v1050, 1
        %v1052 = vadd.f32 %v1050, %v1051
        %v1053 = vrot.slane %v1025, 4
        %v1054 = vadd.f32 %v1025, %v1053
        %v1055 = vrot.slane %v1054, 2
        %v1056 = vadd.f32 %v1054, %v1055
        %v1057 = vrot.slane %v1056, 1
        %v1058 = vadd.f32 %v1056, %v1057
        %v1059 = vrot.slane %v1026, 4
        %v1060 = vadd.f32 %v1026, %v1059
        %v1061 = vrot.slane %v1060, 2
        %v1062 = vadd.f32 %v1060, %v1061
        %v1063 = vrot.slane %v1062, 1
        %v1064 = vadd.f32 %v1062, %v1063
        %v1065 = vrot.slane %v1027, 4
        %v1066 = vadd.f32 %v1027, %v1065
        %v1067 = vrot.slane %v1066, 2
        %v1068 = vadd.f32 %v1066, %v1067
        %v1069 = vrot.slane %v1068, 1
        %v1070 = vadd.f32 %v1068, %v1069
        %v1071 = vrot.slane %v1028, 4
        %v1072 = vadd.f32 %v1028, %v1071
        %v1073 = vrot.slane %v1072, 2
        %v1074 = vadd.f32 %v1072, %v1073
        %v1075 = vrot.slane %v1074, 1
        %v1076 = vadd.f32 %v1074, %v1075
        %v1085 = vsel %vm844, %v1040, %v1034
        %v1086 = vsel %vm846, %v1046, %v1085
        %v1087 = vsel %vm848, %v1052, %v1086
        %v1088 = vsel %vm850, %v1058, %v1087
        %v1089 = vsel %vm852, %v1064, %v1088
        %v1090 = vsel %vm854, %v1070, %v1089
        %v1091 = vsel %vm856, %v1076, %v1090
        %v1093 = vld [vmem:[#allocation14] sm:$0xff]
        %v1094 = vld [vmem:[#allocation14 + $0x8] sm:$0xff]
        %v1095 = vld [vmem:[#allocation14 + $0x10] sm:$0xff]
        %v1096 = vld [vmem:[#allocation14 + $0x18] sm:$0xff]
        %v1097 = vld [vmem:[#allocation14 + $0x20] sm:$0xff]
        %v1098 = vld [vmem:[#allocation14 + $0x28] sm:$0xff]
        %v1099 = vld [vmem:[#allocation14 + $0x30] sm:$0xff]
        %v1100 = vld [vmem:[#allocation14 + $0x38] sm:$0xff]
        %v1101 = vld [vmem:[#allocation14 + $0x40] sm:$0xff]
        %v1102 = vld [vmem:[#allocation14 + $0x48] sm:$0xff]
        %v1103 = vld [vmem:[#allocation14 + $0x50] sm:$0xff]
        %v1104 = vld [vmem:[#allocation14 + $0x58] sm:$0xff]
        %v1105 = vld [vmem:[#allocation14 + $0x60] sm:$0xff]
        %v1106 = vld [vmem:[#allocation14 + $0x68] sm:$0xff]
        %v1107 = vld [vmem:[#allocation14 + $0x70] sm:$0xff]
        %v1108 = vld [vmem:[#allocation14 + $0x78] sm:$0xff]
        %v1109 = vld [vmem:[#allocation14 + $0x80] sm:$0xff]
        %v1110 = vld [vmem:[#allocation14 + $0x88] sm:$0xff]
        %v1111 = vld [vmem:[#allocation14 + $0x90] sm:$0xff]
        %v1112 = vld [vmem:[#allocation14 + $0x98] sm:$0xff]
        %v1113 = vld [vmem:[#allocation14 + $0xa0] sm:$0xff]
        %v1114 = vld [vmem:[#allocation14 + $0xa8] sm:$0xff]
        %v1115 = vld [vmem:[#allocation14 + $0xb0] sm:$0xff]
        %v1116 = vld [vmem:[#allocation14 + $0xb8] sm:$0xff]
        %v1117 = vld [vmem:[#allocation14 + $0xc0] sm:$0xff]
        %v1118 = vld [vmem:[#allocation14 + $0xc8] sm:$0xff]
        %v1119 = vld [vmem:[#allocation14 + $0xd0] sm:$0xff]
        %v1120 = vld [vmem:[#allocation14 + $0xd8] sm:$0xff]
        %v1121 = vld [vmem:[#allocation14 + $0xe0] sm:$0xff]
        %v1122 = vld [vmem:[#allocation14 + $0xe8] sm:$0xff]
        %v1123 = vld [vmem:[#allocation14 + $0xf0] sm:$0xff]
        %v1124 = vld [vmem:[#allocation14 + $0xf8] sm:$0xff]
        %v1125 = vld [vmem:[%s8] sm:$0x1]
        %v1127 = vperm.slane %v1125, 0
        %1129 = vmatpush.msra.mxu0 %v1108
        %1130 = vmatpush.msra.mxu0 %v1107
        %1131 = vmatpush.msra.mxu0 %v1106
        %1132 = vmatpush.msra.mxu0 %v1105
        %1133 = vmatpush.msra.mxu0 %v1104
        %1134 = vmatpush.msra.mxu0 %v1103
        %1135 = vmatpush.msra.mxu0 %v1102
        %1136 = vmatpush.msra.mxu0 %v1101
        %1137 = vmatpush.msra.mxu0 %v1100
        %1138 = vmatpush.msra.mxu0 %v1099
        %1139 = vmatpush.msra.mxu0 %v1098
        %1140 = vmatpush.msra.mxu0 %v1097
        %1141 = vmatpush.msra.mxu0 %v1096
        %1142 = vmatpush.msra.mxu0 %v1095
        %1143 = vmatpush.msra.mxu0 %v1094
        %1144 = vmatpush.msra.mxu0 %v1093
        %1145 = vmatmul.f32.gmra.mxu0 %v769
        %v1146 = vpop.f32.mrf.mxu0
        %v1147 = vadd.f32 %v1127, %v1146
        %1148 = vdwg.mxu0
        %1149 = vmatpush.msra.mxu0 %v1124
        %1150 = vmatpush.msra.mxu0 %v1123
        %1151 = vmatpush.msra.mxu0 %v1122
        %1152 = vmatpush.msra.mxu0 %v1121
        %1153 = vmatpush.msra.mxu0 %v1120
        %1154 = vmatpush.msra.mxu0 %v1119
        %1155 = vmatpush.msra.mxu0 %v1118
        %1156 = vmatpush.msra.mxu0 %v1117
        %1157 = vmatpush.msra.mxu0 %v1116
        %1158 = vmatpush.msra.mxu0 %v1115
        %1159 = vmatpush.msra.mxu0 %v1114
        %1160 = vmatpush.msra.mxu0 %v1113
        %1161 = vmatpush.msra.mxu0 %v1112
        %1162 = vmatpush.msra.mxu0 %v1111
        %1163 = vmatpush.msra.mxu0 %v1110
        %1164 = vmatpush.msra.mxu0 %v1109
        %1165 = vmatmul.f32.gmra.mxu0 %v1091
        %v1166 = vpop.f32.mrf.mxu0
        %v1167 = vadd.f32 %v1147, %v1166
        %1168 = vdwg.mxu0
        %v1169 = vtanh.pop %v1167
        %1170 = vst [vmem:[%s475] sm:$0xff] %v1169
        %1171 = vst [vmem:[%s482] sm:$0xff] %v769
        %1172 = vst [vmem:[#allocation2] sm:$0xff] %v769
        %s1173 = sand.u32 %s236, 1
        %s1174 = scalar_lea.sflag [#allocation5], %s1173
        %s1175 = sand.u32 %s236, 1
        %s1176 = smul.addr %s1175, 8
        %s1177 = scalar_lea.vmem [#allocation15], %s1176
        %s1178 = sand.u32 %s262, 1
        %s1179 = scalar_lea.sflag [#allocation17], %s1178
        %s1180 = sand.u32 %s262, 1
        %s1181 = smul.addr %s1180, 8
        %s1182 = scalar_lea.vmem [#allocation16], %s1181
        // Predicated region
        $region89: #{tpu_custom_call.1} parent=55 // pred_check
          %p1183 = pneg %p246
        $region90: #{tpu_custom_call.1} parent=55 // pred_check_branch
          %1185 = sbr.rel (%p1183) target = $region92
        $region91: #{tpu_custom_call.1} parent=55 // pred_region
          %1187 = vsyncadd %s1174, 0
          %s1188 = smul.addr %s34, 8
          %s1189 = scalar_lea.hbm %s9, %s1188
          %s1191 = sshll.u32 %s1177, 4
          %s1192 = int_to_ptr.vmem [resolvable:$true] %s1191
          %s1193 = sshll.u32 %s1189, 4
          %s1194 = int_to_ptr.hbm [resolvable:$true] %s1193
          %1196 = dma.vmem_to_hbm [thread:$0]  %s1192, 128, %s1194, %s1174
        $region92: #{tpu_custom_call.1} parent=55 // pred_fallthru
          _
        // Predicated region
        $region93: #{tpu_custom_call.1} parent=55 // pred_check
          %p1197 = pneg %p272
        $region94: #{tpu_custom_call.1} parent=55 // pred_check_branch
          %1199 = sbr.rel (%p1197) target = $region96
        $region95: #{tpu_custom_call.1} parent=55 // pred_region
          %1201 = vsyncadd %s1179, 0
          %s1202 = smul.addr %s34, 8
          %s1203 = scalar_lea.hbm %s10, %s1202
          %s1205 = sshll.u32 %s1182, 4
          %s1206 = int_to_ptr.vmem [resolvable:$true] %s1205
          %s1207 = sshll.u32 %s1203, 4
          %s1208 = int_to_ptr.hbm [resolvable:$true] %s1207
          %1210 = dma.vmem_to_hbm [thread:$0]  %s1206, 128, %s1208, %s1179
        $region96: #{tpu_custom_call.1} parent=55 // pred_fallthru
          _
      $region56: #{tpu_custom_call.1} parent=5 // pred_fallthru
        _
      %p1211 = scmp.le.s32.totalorder 2, %s29
      // Predicated region
      $region97: #{tpu_custom_call.1} parent=5 // pred_check
        %p1212 = pneg %p1211
      $region98: #{tpu_custom_call.1} parent=5 // pred_check_branch
        %1214 = sbr.rel (%p1212) target = $region100
      $region99: #{tpu_custom_call.1} parent=5 // pred_region
        %s1215 = ssub.s32 %s29, 2
        // Predicated region
        $region101: #{tpu_custom_call.1} parent=99 // pred_check
          %p1216 = pneg %p252
        $region102: #{tpu_custom_call.1} parent=99 // pred_check_branch
          %1218 = sbr.rel (%p1216) target = $region104
        $region103: #{tpu_custom_call.1} parent=99 // pred_region
          %s1219 = sand.u32 %s237, 1
          %s1220 = scalar_lea.sflag [#allocation5], %s1219
          %s1221 = sand.u32 %s237, 1
          %s1222 = smul.addr %s1221, 8
          %s1223 = scalar_lea.vmem [#allocation15], %s1222
          %1225 = dma.done %s1220, 128
        $region104: #{tpu_custom_call.1} parent=99 // pred_fallthru
          _
        // Predicated region
        $region105: #{tpu_custom_call.1} parent=99 // pred_check
          %p1226 = pneg %p278
        $region106: #{tpu_custom_call.1} parent=99 // pred_check_branch
          %1228 = sbr.rel (%p1226) target = $region108
        $region107: #{tpu_custom_call.1} parent=99 // pred_region
          %s1229 = sand.u32 %s263, 1
          %s1230 = scalar_lea.sflag [#allocation17], %s1229
          %s1231 = sand.u32 %s263, 1
          %s1232 = smul.addr %s1231, 8
          %s1233 = scalar_lea.vmem [#allocation16], %s1232
          %1235 = dma.done %s1230, 128
        $region108: #{tpu_custom_call.1} parent=99 // pred_fallthru
          _
      $region100: #{tpu_custom_call.1} parent=5 // pred_fallthru
        _
    $region6: #{tpu_custom_call.1} parent=1 // loop_footer
      %s33 = sadd.s32 1, %s29
    $region7: #{tpu_custom_call.1} parent=1 // loop_footer_branch
      %28 = sbr.rel target = $region3
    $region8: #{tpu_custom_call.1} parent=1 // loop_exit
      _
    %1236 = vsyncpa [#allocation4], 1
    %s1237 = scalar_lea.sflag [#allocation4], 1
    %1238 = vsyncpa %s1237, 1
    %1239 = vsyncpa [#allocation7], 1
    %1240 = vsyncpa [#allocation10], 1
    %1241 = vsyncpa [#allocation13], 1
    %1242 = vsyncpa [#allocation5], 1
    %s1243 = scalar_lea.sflag [#allocation5], 1
    %1244 = vsyncpa %s1243, 1
    %1245 = vsyncpa [#allocation17], 1
    %s1246 = scalar_lea.sflag [#allocation17], 1
    %1247 = vsyncpa %s1246, 1

</llo_original>
